<compile_context>
chip_gen: v7x
topology: tpu7x:2x2x1
jax: 0.10.0
libtpu: 0.0.40
codegen_flags: <defaults>
</compile_context>

<pallas_src>
import numpy as np

import jax
import jax.numpy as jnp
from jax.experimental import pallas as pl
from jax.experimental.pallas import tpu as pltpu


# ----------------------------- Pallas kernel ------------------------------ #
def rnn_classifier_kernel(tok_ref, len_ref,
                          etab_f_ref, etab_b_ref, bias_f_ref, bias_b_ref,
                          whh_f_ref, whh_b_ref, bhh_fn_ref, bhh_bn_ref,
                          fcw_f_ref, fcw_b_ref, fcb_ref,
                          out_ref,
                          x_f, x_b):
    T, BT, _ = tok_ref.shape           # time steps, batch-tile rows
    V = etab_f_ref.shape[0]            # vocab
    H3 = etab_f_ref.shape[1]           # 3 * hidden
    H = H3 // 3
    TB = T * BT

    # ---- Embedding + input projection fused: K = V = 128 fills the MXU ----
    # One-time cost (not on the recurrent critical path) -> kept in f32.
    tok = tok_ref[...].reshape(TB, 1)                               # (T*BT, 1) int32
    onehot = (tok == jax.lax.broadcasted_iota(jnp.int32, (TB, V), 1)
              ).astype(jnp.float32)                                 # (T*BT, V)
    x_f[...] = (jnp.dot(onehot, etab_f_ref[...],
                        preferred_element_type=jnp.float32) + bias_f_ref[...])
    x_b[...] = (jnp.dot(onehot, etab_b_ref[...],
                        preferred_element_type=jnp.float32) + bias_b_ref[...])

    # hoist loop-invariant weights / lengths / masks out of the serial loop
    whh_f = whh_f_ref[...]             # (H, 3H) = [Whr.T | Whz.T | Whn.T]
    whh_b = whh_b_ref[...]
    bhh_fn = bhh_fn_ref[...]           # (1, H)
    bhh_bn = bhh_bn_ref[...]
    lens = len_ref[...]                # (BT, 1) int32
    step_mask = [lens > t for t in range(T)]   # packed-seq update masks, hoisted

    def gru_step(h, x, whh, bhh_n):
        # PyTorch GRU: r = s(xr + h Whr), z = s(xz + h Whz),
        #              n = tanh(xn + r*(h Whn + bhn)),  h' = (1-z)*n + z*h
        g = jnp.dot(h, whh, preferred_element_type=jnp.float32)     # one MXU push
        rz = jax.nn.sigmoid(x[:, :2 * H] + g[:, :2 * H])            # one EUP slab
        r = rz[:, :H]
        z = rz[:, H:2 * H]
        n = jnp.tanh(x[:, 2 * H:] + r * (g[:, 2 * H:] + bhh_n))
        return (1.0 - z) * n + z * h

    h_f = jnp.zeros((BT, H), jnp.float32)
    h_b = jnp.zeros((BT, H), jnp.float32)

    # fused forward/backward recurrence, fully unrolled (static slice starts);
    # the two independent dep chains interleave (2x ILP hides MXU/EUP latency).
    for i in range(T):
        tf = i
        tb = T - 1 - i
        xf = x_f[pl.ds(tf * BT, BT), :]        # (BT, 3H) lane-dense slab
        xb = x_b[pl.ds(tb * BT, BT), :]
        hf_new = gru_step(h_f, xf, whh_f, bhh_fn)
        hb_new = gru_step(h_b, xb, whh_b, bhh_bn)
        h_f = jnp.where(step_mask[tf], hf_new, h_f)   # packed-seq length masking
        h_b = jnp.where(step_mask[tb], hb_new, h_b)

    # fc over [h_b, h_f] without a lane concat: split-weight accumulate on MXU.
    # fc weights/bias are pre-padded to 128 lanes -> unmasked lane-dense store.
    out_ref[...] = (jnp.dot(h_b, fcw_b_ref[...], preferred_element_type=jnp.float32)
                    + jnp.dot(h_f, fcw_f_ref[...], preferred_element_type=jnp.float32)
                    + fcb_ref[...])


# ------------------------------ wrapper ----------------------------------- #
def rnn_classifier_forward(tokens, seq_len, params, batch_tile=8):
    """tokens: (batch, seq) int32, seq_len: (batch,) int32 (descending)."""
    B, T = tokens.shape
    V, H = params["emb"].shape
    O = params["fc_b"].shape[0]
    BT = batch_tile                       # one sublane group per grid step
    Bp = ((B + BT - 1) // BT) * BT        # pad batch to a multiple of the tile
    OP = 128                              # lane-dense padded output width

    tok = jnp.zeros((Bp, T), jnp.int32).at[:B].set(jnp.asarray(tokens, jnp.int32))
    lens = jnp.zeros((Bp, 1), jnp.int32).at[:B, 0].set(jnp.asarray(seq_len, jnp.int32))
    tok_t = tok.T.reshape(T, Bp, 1)       # time-major, 3D so batch tiles are blocks

    emb = params["emb"].astype(jnp.float32)
    # fold embedding into the input projections: one (V, 3H) table per direction
    etab_f = emb @ params["wih_f"].T
    etab_b = emb @ params["wih_b"].T

    def fold_bias(bih, bhh):
        # b_hr, b_hz sit outside r's multiply -> fold; b_hn cannot be folded.
        return jnp.concatenate([bih[:2 * H] + bhh[:2 * H], bih[2 * H:]]).reshape(1, 3 * H)

    bias_f = fold_bias(params["bih_f"], params["bhh_f"])
    bias_b = fold_bias(params["bih_b"], params["bhh_b"])

    # fused per-direction recurrent weights: whh.T = [Whr.T | Whz.T | Whn.T] (H, 3H)
    whh_f = params["whh_f"].T
    whh_b = params["whh_b"].T
    bhh_fn = params["bhh_f"][2 * H:].reshape(1, H)
    bhh_bn = params["bhh_b"][2 * H:].reshape(1, H)

    # hidden_cat = [h_b, h_f]: first H cols of fc_w act on h_b, last H on h_f;
    # pad output lanes to 128 for an unmasked store.
    fc_w = params["fc_w"]
    fcw_f = jnp.zeros((H, OP), jnp.float32).at[:, :O].set(fc_w[:, H:2 * H].T)
    fcw_b = jnp.zeros((H, OP), jnp.float32).at[:, :O].set(fc_w[:, :H].T)
    fcb = jnp.zeros((1, OP), jnp.float32).at[0, :O].set(params["fc_b"])

    kernel_inputs = (tok_t, lens, etab_f, etab_b, bias_f, bias_b,
                     whh_f, whh_b, bhh_fn, bhh_bn, fcw_f, fcw_b, fcb)

    grid_spec = pltpu.PrefetchScalarGridSpec(
        num_scalar_prefetch=0,
        grid=(Bp // BT,),                 # batch tiles; weights stay resident
        in_specs=[
            pl.BlockSpec((T, BT, 1), lambda i: (0, i, 0)),   # tokens (per tile)
            pl.BlockSpec((BT, 1), lambda i: (i, 0)),         # lengths (per tile)
            pl.BlockSpec((V, 3 * H), lambda i: (0, 0)),      # etab_f
            pl.BlockSpec((V, 3 * H), lambda i: (0, 0)),      # etab_b
            pl.BlockSpec((1, 3 * H), lambda i: (0, 0)),      # bias_f
            pl.BlockSpec((1, 3 * H), lambda i: (0, 0)),      # bias_b
            pl.BlockSpec((H, 3 * H), lambda i: (0, 0)),      # whh_f (fused gates)
            pl.BlockSpec((H, 3 * H), lambda i: (0, 0)),      # whh_b
            pl.BlockSpec((1, H), lambda i: (0, 0)),          # bhh_fn
            pl.BlockSpec((1, H), lambda i: (0, 0)),          # bhh_bn
            pl.BlockSpec((H, OP), lambda i: (0, 0)),         # fcw_f (lane-padded)
            pl.BlockSpec((H, OP), lambda i: (0, 0)),         # fcw_b
            pl.BlockSpec((1, OP), lambda i: (0, 0)),         # fcb
        ],
        out_specs=pl.BlockSpec((BT, OP), lambda i: (i, 0)),
        scratch_shapes=[pltpu.VMEM((T * BT, 3 * H), jnp.float32) for _ in range(2)],
    )

    out = pl.pallas_call(
        rnn_classifier_kernel,
        out_shape=jax.ShapeDtypeStruct((Bp, OP), jnp.float32),
        grid_spec=grid_spec,
        compiler_params=pltpu.CompilerParams(
            dimension_semantics=("parallel",),        # megacore sharding on v7x
            vmem_limit_bytes=32 * 1024 * 1024),
        # TODO(synk): if V / T / Bp grow, tile the one-hot embedding matmul over V
        # (or switch to a scalar-prefetched DMA row-gather) before scaling up.
    )(*kernel_inputs)
    return out[:B, :O]


# --------------------------- pure-JAX reference ---------------------------- #
def reference_forward(tokens, seq_len, p):
    B, T = tokens.shape
    H = p["emb"].shape[1]
    emb = p["emb"][jnp.asarray(tokens, jnp.int32).T]               # (T, B, H)
    lens = jnp.asarray(seq_len, jnp.int32).reshape(B, 1)

    def cell(x, h, wih, whh, bih, bhh):
        gi = x @ wih.T + bih
        gh = h @ whh.T + bhh
        r = jax.nn.sigmoid(gi[:, :H] + gh[:, :H])
        z = jax.nn.sigmoid(gi[:, H:2 * H] + gh[:, H:2 * H])
        n = jnp.tanh(gi[:, 2 * H:] + r * gh[:, 2 * H:])
        return (1.0 - z) * n + z * h

    h_f = jnp.zeros((B, H), jnp.float32)
    for t in range(T):
        m = (t < lens).astype(jnp.float32)
        h_f = m * cell(emb[t], h_f, p["wih_f"], p["whh_f"], p["bih_f"], p["bhh_f"]) + (1 - m) * h_f

    h_b = jnp.zeros((B, H), jnp.float32)
    for t in range(T - 1, -1, -1):
        m = (t < lens).astype(jnp.float32)
        h_b = m * cell(emb[t], h_b, p["wih_b"], p["whh_b"], p["bih_b"], p["bhh_b"]) + (1 - m) * h_b

    hidden_cat = jnp.concatenate([h_b, h_f], axis=1)
    return hidden_cat @ p["fc_w"].T + p["fc_b"]


# ------------------------------ parameters --------------------------------- #
def init_params(key, vocab, hidden, output):
    ks = jax.random.split(key, 12)
    bound = 1.0 / np.sqrt(hidden)
    u = lambda k, shape: jax.random.uniform(k, shape, jnp.float32, -bound, bound)
    return {
        "emb":   jax.random.normal(ks[0], (vocab, hidden), jnp.float32) * 0.1,
        "wih_f": u(ks[1], (3 * hidden, hidden)), "whh_f": u(ks[2], (3 * hidden, hidden)),
        "bih_f": u(ks[3], (3 * hidden,)),        "bhh_f": u(ks[4], (3 * hidden,)),
        "wih_b": u(ks[5], (3 * hidden, hidden)), "whh_b": u(ks[6], (3 * hidden, hidden)),
        "bih_b": u(ks[7], (3 * hidden,)),        "bhh_b": u(ks[8], (3 * hidden,)),
        "fc_w":  u(ks[9], (output, 2 * hidden)), "fc_b":  u(ks[10], (output,)),
    }


if __name__ == "__main__":
    VOCAB, HIDDEN, OUTPUT = 128, 32, 8
    BATCH, SEQ = 4, 8

    key = jax.random.PRNGKey(0)
    k_tok, k_par = jax.random.split(key)

    # lengths sorted descending (as pack_padded_sequence requires)
    seq_len = jnp.array([8, 6, 5, 3], jnp.int32)
    tokens = jax.random.randint(k_tok, (BATCH, SEQ), 1, VOCAB, jnp.int32)
    pos = jnp.arange(SEQ)[None, :]
    tokens = jnp.where(pos < seq_len[:, None], tokens, 0)          # zero-pad like make_tensor

    params = init_params(k_par, VOCAB, HIDDEN, OUTPUT)

    out = rnn_classifier_forward(tokens, seq_len, params)
    out = jax.block_until_ready(out)

    ref = reference_forward(tokens, seq_len, params)
    np.testing.assert_allclose(np.asarray(out), np.asarray(ref), atol=1e-4, rtol=1e-4)

    print("KERNEL_OK")
</pallas_src>

<mosaic_0001>
module attributes {stable_mosaic.version = 11 : i64} {
  func.func @rnn_classifier_kernel(%arg0: i32, %arg1: memref<8x8x1xi32, #tpu.memory_space<vmem>>, %arg2: memref<8x1xi32, #tpu.memory_space<vmem>>, %arg3: memref<128x96xf32, #tpu.memory_space<vmem>>, %arg4: memref<128x96xf32, #tpu.memory_space<vmem>>, %arg5: memref<1x96xf32, #tpu.memory_space<vmem>>, %arg6: memref<1x96xf32, #tpu.memory_space<vmem>>, %arg7: memref<32x96xf32, #tpu.memory_space<vmem>>, %arg8: memref<32x96xf32, #tpu.memory_space<vmem>>, %arg9: memref<1x32xf32, #tpu.memory_space<vmem>>, %arg10: memref<1x32xf32, #tpu.memory_space<vmem>>, %arg11: memref<32x128xf32, #tpu.memory_space<vmem>>, %arg12: memref<32x128xf32, #tpu.memory_space<vmem>>, %arg13: memref<1x128xf32, #tpu.memory_space<vmem>>, %arg14: memref<8x128xf32, #tpu.memory_space<vmem>>, %arg15: memref<64x96xf32, #tpu.memory_space<vmem>>, %arg16: memref<64x96xf32, #tpu.memory_space<vmem>>) attributes {dimension_semantics = [#tpu.dimension_semantics<parallel>], iteration_bounds = array<i64: 1>, scalar_prefetch = 0 : i64, scratch_operands = 2 : i64, tpu.core_type = #tpu.core_type<tc>, window_params = [{transform_indices = @transform_0, window_bounds = array<i64: 8, 8, 1>}, {transform_indices = @transform_1, window_bounds = array<i64: 8, 1>}, {pipeline_mode = #tpu.pipeline_mode<synchronous>, transform_indices = @transform_2, window_bounds = array<i64: 128, 96>}, {pipeline_mode = #tpu.pipeline_mode<synchronous>, transform_indices = @transform_3, window_bounds = array<i64: 128, 96>}, {pipeline_mode = #tpu.pipeline_mode<synchronous>, transform_indices = @transform_4, window_bounds = array<i64: 1, 96>}, {pipeline_mode = #tpu.pipeline_mode<synchronous>, transform_indices = @transform_5, window_bounds = array<i64: 1, 96>}, {pipeline_mode = #tpu.pipeline_mode<synchronous>, transform_indices = @transform_6, window_bounds = array<i64: 32, 96>}, {pipeline_mode = #tpu.pipeline_mode<synchronous>, transform_indices = @transform_7, window_bounds = array<i64: 32, 96>}, {pipeline_mode = #tpu.pipeline_mode<synchronous>, transform_indices = @transform_8, window_bounds = array<i64: 1, 32>}, {pipeline_mode = #tpu.pipeline_mode<synchronous>, transform_indices = @transform_9, window_bounds = array<i64: 1, 32>}, {pipeline_mode = #tpu.pipeline_mode<synchronous>, transform_indices = @transform_10, window_bounds = array<i64: 32, 128>}, {pipeline_mode = #tpu.pipeline_mode<synchronous>, transform_indices = @transform_11, window_bounds = array<i64: 32, 128>}, {pipeline_mode = #tpu.pipeline_mode<synchronous>, transform_indices = @transform_12, window_bounds = array<i64: 1, 128>}, {transform_indices = @transform_13, window_bounds = array<i64: 8, 128>}]} {
    %c0 = arith.constant 0 : index
    %c0_0 = arith.constant 0 : index
    %c0_1 = arith.constant 0 : index
    %0 = vector.load %arg1[%c0, %c0_0, %c0_1] : memref<8x8x1xi32, #tpu.memory_space<vmem>>, vector<8x8x1xi32>
    %1 = vector.shape_cast %0 : vector<8x8x1xi32> to vector<64x1xi32>
    %2 = tpu.iota {dimensions = array<i32: 1>} : vector<64x128xi32>
    %3 = vector.broadcast %1 : vector<64x1xi32> to vector<64x128xi32>
    %4 = arith.cmpi eq, %3, %2 : vector<64x128xi32>
    %5 = arith.extui %4 : vector<64x128xi1> to vector<64x128xi32>
    %6 = arith.sitofp %5 : vector<64x128xi32> to vector<64x128xf32>
    %c0_2 = arith.constant 0 : index
    %c0_3 = arith.constant 0 : index
    %7 = vector.load %arg3[%c0_2, %c0_3] : memref<128x96xf32, #tpu.memory_space<vmem>>, vector<128x96xf32>
    %cst = arith.constant dense<0.000000e+00> : vector<64x96xf32>
    %8 = tpu.matmul %6, %7, %cst {dimension_numbers = #tpu.dot_dimension_numbers<[1], [0], [0], [1], [0, 0, 1, 1], [], []>} : vector<64x128xf32>, vector<128x96xf32>, vector<64x96xf32> -> vector<64x96xf32>
    %c0_4 = arith.constant 0 : index
    %c0_5 = arith.constant 0 : index
    %9 = vector.load %arg5[%c0_4, %c0_5] : memref<1x96xf32, #tpu.memory_space<vmem>>, vector<1x96xf32>
    %10 = vector.broadcast %9 : vector<1x96xf32> to vector<64x96xf32>
    %11 = arith.addf %8, %10 : vector<64x96xf32>
    %c0_6 = arith.constant 0 : index
    %c0_7 = arith.constant 0 : index
    %12 = vector.load %arg15[%c0_6, %c0_7] : memref<64x96xf32, #tpu.memory_space<vmem>>, vector<64x96xf32>
    tpu.vector_store %arg15[%c0_6, %c0_7], %11 {strides = array<i32>} : memref<64x96xf32, #tpu.memory_space<vmem>>, vector<64x96xf32>,
    %c0_8 = arith.constant 0 : index
    %c0_9 = arith.constant 0 : index
    %13 = vector.load %arg4[%c0_8, %c0_9] : memref<128x96xf32, #tpu.memory_space<vmem>>, vector<128x96xf32>
    %cst_10 = arith.constant dense<0.000000e+00> : vector<64x96xf32>
    %14 = tpu.matmul %6, %13, %cst_10 {dimension_numbers = #tpu.dot_dimension_numbers<[1], [0], [0], [1], [0, 0, 1, 1], [], []>} : vector<64x128xf32>, vector<128x96xf32>, vector<64x96xf32> -> vector<64x96xf32>
    %c0_11 = arith.constant 0 : index
    %c0_12 = arith.constant 0 : index
    %15 = vector.load %arg6[%c0_11, %c0_12] : memref<1x96xf32, #tpu.memory_space<vmem>>, vector<1x96xf32>
    %16 = vector.broadcast %15 : vector<1x96xf32> to vector<64x96xf32>
    %17 = arith.addf %14, %16 : vector<64x96xf32>
    %c0_13 = arith.constant 0 : index
    %c0_14 = arith.constant 0 : index
    %18 = vector.load %arg16[%c0_13, %c0_14] : memref<64x96xf32, #tpu.memory_space<vmem>>, vector<64x96xf32>
    tpu.vector_store %arg16[%c0_13, %c0_14], %17 {strides = array<i32>} : memref<64x96xf32, #tpu.memory_space<vmem>>, vector<64x96xf32>,
    %c0_15 = arith.constant 0 : index
    %c0_16 = arith.constant 0 : index
    %19 = vector.load %arg7[%c0_15, %c0_16] : memref<32x96xf32, #tpu.memory_space<vmem>>, vector<32x96xf32>
    %c0_17 = arith.constant 0 : index
    %c0_18 = arith.constant 0 : index
    %20 = vector.load %arg8[%c0_17, %c0_18] : memref<32x96xf32, #tpu.memory_space<vmem>>, vector<32x96xf32>
    %c0_19 = arith.constant 0 : index
    %c0_20 = arith.constant 0 : index
    %21 = vector.load %arg9[%c0_19, %c0_20] : memref<1x32xf32, #tpu.memory_space<vmem>>, vector<1x32xf32>
    %c0_21 = arith.constant 0 : index
    %c0_22 = arith.constant 0 : index
    %22 = vector.load %arg10[%c0_21, %c0_22] : memref<1x32xf32, #tpu.memory_space<vmem>>, vector<1x32xf32>
    %c0_23 = arith.constant 0 : index
    %c0_24 = arith.constant 0 : index
    %23 = vector.load %arg2[%c0_23, %c0_24] : memref<8x1xi32, #tpu.memory_space<vmem>>, vector<8x1xi32>
    %c0_i32 = arith.constant 0 : i32
    %24 = vector.broadcast %c0_i32 : i32 to vector<8x1xi32>
    %25 = arith.cmpi sgt, %23, %24 : vector<8x1xi32>
    %c1_i32 = arith.constant 1 : i32
    %26 = vector.broadcast %c1_i32 : i32 to vector<8x1xi32>
    %27 = arith.cmpi sgt, %23, %26 : vector<8x1xi32>
    %c2_i32 = arith.constant 2 : i32
    %28 = vector.broadcast %c2_i32 : i32 to vector<8x1xi32>
    %29 = arith.cmpi sgt, %23, %28 : vector<8x1xi32>
    %c3_i32 = arith.constant 3 : i32
    %30 = vector.broadcast %c3_i32 : i32 to vector<8x1xi32>
    %31 = arith.cmpi sgt, %23, %30 : vector<8x1xi32>
    %c4_i32 = arith.constant 4 : i32
    %32 = vector.broadcast %c4_i32 : i32 to vector<8x1xi32>
    %33 = arith.cmpi sgt, %23, %32 : vector<8x1xi32>
    %c5_i32 = arith.constant 5 : i32
    %34 = vector.broadcast %c5_i32 : i32 to vector<8x1xi32>
    %35 = arith.cmpi sgt, %23, %34 : vector<8x1xi32>
    %c6_i32 = arith.constant 6 : i32
    %36 = vector.broadcast %c6_i32 : i32 to vector<8x1xi32>
    %37 = arith.cmpi sgt, %23, %36 : vector<8x1xi32>
    %c7_i32 = arith.constant 7 : i32
    %38 = vector.broadcast %c7_i32 : i32 to vector<8x1xi32>
    %39 = arith.cmpi sgt, %23, %38 : vector<8x1xi32>
    %cst_25 = arith.constant 0.000000e+00 : f32
    %40 = vector.broadcast %cst_25 : f32 to vector<8x32xf32>
    %cst_26 = arith.constant 0.000000e+00 : f32
    %41 = vector.broadcast %cst_26 : f32 to vector<8x32xf32>
    %c0_27 = arith.constant 0 : index
    %c0_28 = arith.constant 0 : index
    %42 = vector.load %arg15[%c0_27, %c0_28] : memref<64x96xf32, #tpu.memory_space<vmem>>, vector<8x96xf32>
    %c56 = arith.constant 56 : index
    %c0_29 = arith.constant 0 : index
    %43 = vector.load %arg16[%c56, %c0_29] : memref<64x96xf32, #tpu.memory_space<vmem>>, vector<8x96xf32>
    %cst_30 = arith.constant dense<0.000000e+00> : vector<8x96xf32>
    %44 = tpu.matmul %40, %19, %cst_30 {dimension_numbers = #tpu.dot_dimension_numbers<[1], [0], [0], [1], [0, 0, 1, 1], [], []>} : vector<8x32xf32>, vector<32x96xf32>, vector<8x96xf32> -> vector<8x96xf32>
    %45 = vector.extract_strided_slice %42 {offsets = [0, 0], sizes = [8, 64], strides = [1, 1]} : vector<8x96xf32> to vector<8x64xf32>
    %46 = vector.extract_strided_slice %44 {offsets = [0, 0], sizes = [8, 64], strides = [1, 1]} : vector<8x96xf32> to vector<8x64xf32>
    %47 = arith.addf %45, %46 : vector<8x64xf32>
    %48 = arith.negf %47 : vector<8x64xf32>
    %49 = math.exp %48 : vector<8x64xf32>
    %cst_31 = arith.constant 1.000000e+00 : f32
    %50 = vector.broadcast %cst_31 : f32 to vector<8x64xf32>
    %51 = arith.addf %50, %49 : vector<8x64xf32>
    %52 = arith.divf %50, %51 : vector<8x64xf32>
    %53 = vector.extract_strided_slice %52 {offsets = [0, 0], sizes = [8, 32], strides = [1, 1]} : vector<8x64xf32> to vector<8x32xf32>
    %54 = vector.extract_strided_slice %52 {offsets = [0, 32], sizes = [8, 32], strides = [1, 1]} : vector<8x64xf32> to vector<8x32xf32>
    %55 = vector.extract_strided_slice %42 {offsets = [0, 64], sizes = [8, 32], strides = [1, 1]} : vector<8x96xf32> to vector<8x32xf32>
    %56 = vector.extract_strided_slice %44 {offsets = [0, 64], sizes = [8, 32], strides = [1, 1]} : vector<8x96xf32> to vector<8x32xf32>
    %57 = vector.broadcast %21 : vector<1x32xf32> to vector<8x32xf32>
    %58 = arith.addf %56, %57 : vector<8x32xf32>
    %59 = arith.mulf %53, %58 : vector<8x32xf32>
    %60 = arith.addf %55, %59 : vector<8x32xf32>
    %61 = math.tanh %60 : vector<8x32xf32>
    %cst_32 = arith.constant 1.000000e+00 : f32
    %62 = vector.broadcast %cst_32 : f32 to vector<8x32xf32>
    %63 = arith.subf %62, %54 : vector<8x32xf32>
    %64 = arith.mulf %63, %61 : vector<8x32xf32>
    %65 = arith.mulf %54, %40 : vector<8x32xf32>
    %66 = arith.addf %64, %65 : vector<8x32xf32>
    %cst_33 = arith.constant dense<0.000000e+00> : vector<8x96xf32>
    %67 = tpu.matmul %41, %20, %cst_33 {dimension_numbers = #tpu.dot_dimension_numbers<[1], [0], [0], [1], [0, 0, 1, 1], [], []>} : vector<8x32xf32>, vector<32x96xf32>, vector<8x96xf32> -> vector<8x96xf32>
    %68 = vector.extract_strided_slice %43 {offsets = [0, 0], sizes = [8, 64], strides = [1, 1]} : vector<8x96xf32> to vector<8x64xf32>
    %69 = vector.extract_strided_slice %67 {offsets = [0, 0], sizes = [8, 64], strides = [1, 1]} : vector<8x96xf32> to vector<8x64xf32>
    %70 = arith.addf %68, %69 : vector<8x64xf32>
    %71 = arith.negf %70 : vector<8x64xf32>
    %72 = math.exp %71 : vector<8x64xf32>
    %cst_34 = arith.constant 1.000000e+00 : f32
    %73 = vector.broadcast %cst_34 : f32 to vector<8x64xf32>
    %74 = arith.addf %73, %72 : vector<8x64xf32>
    %75 = arith.divf %73, %74 : vector<8x64xf32>
    %76 = vector.extract_strided_slice %75 {offsets = [0, 0], sizes = [8, 32], strides = [1, 1]} : vector<8x64xf32> to vector<8x32xf32>
    %77 = vector.extract_strided_slice %75 {offsets = [0, 32], sizes = [8, 32], strides = [1, 1]} : vector<8x64xf32> to vector<8x32xf32>
    %78 = vector.extract_strided_slice %43 {offsets = [0, 64], sizes = [8, 32], strides = [1, 1]} : vector<8x96xf32> to vector<8x32xf32>
    %79 = vector.extract_strided_slice %67 {offsets = [0, 64], sizes = [8, 32], strides = [1, 1]} : vector<8x96xf32> to vector<8x32xf32>
    %80 = vector.broadcast %22 : vector<1x32xf32> to vector<8x32xf32>
    %81 = arith.addf %79, %80 : vector<8x32xf32>
    %82 = arith.mulf %76, %81 : vector<8x32xf32>
    %83 = arith.addf %78, %82 : vector<8x32xf32>
    %84 = math.tanh %83 : vector<8x32xf32>
    %cst_35 = arith.constant 1.000000e+00 : f32
    %85 = vector.broadcast %cst_35 : f32 to vector<8x32xf32>
    %86 = arith.subf %85, %77 : vector<8x32xf32>
    %87 = arith.mulf %86, %84 : vector<8x32xf32>
    %88 = arith.mulf %77, %41 : vector<8x32xf32>
    %89 = arith.addf %87, %88 : vector<8x32xf32>
    %90 = vector.shape_cast %25 : vector<8x1xi1> to vector<8x1xi1>
    %91 = vector.broadcast %90 : vector<8x1xi1> to vector<8x32xi1>
    %92 = arith.select %91, %66, %40 : vector<8x32xi1>, vector<8x32xf32>
    %93 = vector.shape_cast %39 : vector<8x1xi1> to vector<8x1xi1>
    %94 = vector.broadcast %93 : vector<8x1xi1> to vector<8x32xi1>
    %95 = arith.select %94, %89, %41 : vector<8x32xi1>, vector<8x32xf32>
    %c8 = arith.constant 8 : index
    %c0_36 = arith.constant 0 : index
    %96 = vector.load %arg15[%c8, %c0_36] : memref<64x96xf32, #tpu.memory_space<vmem>>, vector<8x96xf32>
    %c48 = arith.constant 48 : index
    %c0_37 = arith.constant 0 : index
    %97 = vector.load %arg16[%c48, %c0_37] : memref<64x96xf32, #tpu.memory_space<vmem>>, vector<8x96xf32>
    %cst_38 = arith.constant dense<0.000000e+00> : vector<8x96xf32>
    %98 = tpu.matmul %92, %19, %cst_38 {dimension_numbers = #tpu.dot_dimension_numbers<[1], [0], [0], [1], [0, 0, 1, 1], [], []>} : vector<8x32xf32>, vector<32x96xf32>, vector<8x96xf32> -> vector<8x96xf32>
    %99 = vector.extract_strided_slice %96 {offsets = [0, 0], sizes = [8, 64], strides = [1, 1]} : vector<8x96xf32> to vector<8x64xf32>
    %100 = vector.extract_strided_slice %98 {offsets = [0, 0], sizes = [8, 64], strides = [1, 1]} : vector<8x96xf32> to vector<8x64xf32>
    %101 = arith.addf %99, %100 : vector<8x64xf32>
    %102 = arith.negf %101 : vector<8x64xf32>
    %103 = math.exp %102 : vector<8x64xf32>
    %cst_39 = arith.constant 1.000000e+00 : f32
    %104 = vector.broadcast %cst_39 : f32 to vector<8x64xf32>
    %105 = arith.addf %104, %103 : vector<8x64xf32>
    %106 = arith.divf %104, %105 : vector<8x64xf32>
    %107 = vector.extract_strided_slice %106 {offsets = [0, 0], sizes = [8, 32], strides = [1, 1]} : vector<8x64xf32> to vector<8x32xf32>
    %108 = vector.extract_strided_slice %106 {offsets = [0, 32], sizes = [8, 32], strides = [1, 1]} : vector<8x64xf32> to vector<8x32xf32>
    %109 = vector.extract_strided_slice %96 {offsets = [0, 64], sizes = [8, 32], strides = [1, 1]} : vector<8x96xf32> to vector<8x32xf32>
    %110 = vector.extract_strided_slice %98 {offsets = [0, 64], sizes = [8, 32], strides = [1, 1]} : vector<8x96xf32> to vector<8x32xf32>
    %111 = vector.broadcast %21 : vector<1x32xf32> to vector<8x32xf32>
    %112 = arith.addf %110, %111 : vector<8x32xf32>
    %113 = arith.mulf %107, %112 : vector<8x32xf32>
    %114 = arith.addf %109, %113 : vector<8x32xf32>
    %115 = math.tanh %114 : vector<8x32xf32>
    %cst_40 = arith.constant 1.000000e+00 : f32
    %116 = vector.broadcast %cst_40 : f32 to vector<8x32xf32>
    %117 = arith.subf %116, %108 : vector<8x32xf32>
    %118 = arith.mulf %117, %115 : vector<8x32xf32>
    %119 = arith.mulf %108, %92 : vector<8x32xf32>
    %120 = arith.addf %118, %119 : vector<8x32xf32>
    %cst_41 = arith.constant dense<0.000000e+00> : vector<8x96xf32>
    %121 = tpu.matmul %95, %20, %cst_41 {dimension_numbers = #tpu.dot_dimension_numbers<[1], [0], [0], [1], [0, 0, 1, 1], [], []>} : vector<8x32xf32>, vector<32x96xf32>, vector<8x96xf32> -> vector<8x96xf32>
    %122 = vector.extract_strided_slice %97 {offsets = [0, 0], sizes = [8, 64], strides = [1, 1]} : vector<8x96xf32> to vector<8x64xf32>
    %123 = vector.extract_strided_slice %121 {offsets = [0, 0], sizes = [8, 64], strides = [1, 1]} : vector<8x96xf32> to vector<8x64xf32>
    %124 = arith.addf %122, %123 : vector<8x64xf32>
    %125 = arith.negf %124 : vector<8x64xf32>
    %126 = math.exp %125 : vector<8x64xf32>
    %cst_42 = arith.constant 1.000000e+00 : f32
    %127 = vector.broadcast %cst_42 : f32 to vector<8x64xf32>
    %128 = arith.addf %127, %126 : vector<8x64xf32>
    %129 = arith.divf %127, %128 : vector<8x64xf32>
    %130 = vector.extract_strided_slice %129 {offsets = [0, 0], sizes = [8, 32], strides = [1, 1]} : vector<8x64xf32> to vector<8x32xf32>
    %131 = vector.extract_strided_slice %129 {offsets = [0, 32], sizes = [8, 32], strides = [1, 1]} : vector<8x64xf32> to vector<8x32xf32>
    %132 = vector.extract_strided_slice %97 {offsets = [0, 64], sizes = [8, 32], strides = [1, 1]} : vector<8x96xf32> to vector<8x32xf32>
    %133 = vector.extract_strided_slice %121 {offsets = [0, 64], sizes = [8, 32], strides = [1, 1]} : vector<8x96xf32> to vector<8x32xf32>
    %134 = vector.broadcast %22 : vector<1x32xf32> to vector<8x32xf32>
    %135 = arith.addf %133, %134 : vector<8x32xf32>
    %136 = arith.mulf %130, %135 : vector<8x32xf32>
    %137 = arith.addf %132, %136 : vector<8x32xf32>
    %138 = math.tanh %137 : vector<8x32xf32>
    %cst_43 = arith.constant 1.000000e+00 : f32
    %139 = vector.broadcast %cst_43 : f32 to vector<8x32xf32>
    %140 = arith.subf %139, %131 : vector<8x32xf32>
    %141 = arith.mulf %140, %138 : vector<8x32xf32>
    %142 = arith.mulf %131, %95 : vector<8x32xf32>
    %143 = arith.addf %141, %142 : vector<8x32xf32>
    %144 = vector.shape_cast %27 : vector<8x1xi1> to vector<8x1xi1>
    %145 = vector.broadcast %144 : vector<8x1xi1> to vector<8x32xi1>
    %146 = arith.select %145, %120, %92 : vector<8x32xi1>, vector<8x32xf32>
    %147 = vector.shape_cast %37 : vector<8x1xi1> to vector<8x1xi1>
    %148 = vector.broadcast %147 : vector<8x1xi1> to vector<8x32xi1>
    %149 = arith.select %148, %143, %95 : vector<8x32xi1>, vector<8x32xf32>
    %c16 = arith.constant 16 : index
    %c0_44 = arith.constant 0 : index
    %150 = vector.load %arg15[%c16, %c0_44] : memref<64x96xf32, #tpu.memory_space<vmem>>, vector<8x96xf32>
    %c40 = arith.constant 40 : index
    %c0_45 = arith.constant 0 : index
    %151 = vector.load %arg16[%c40, %c0_45] : memref<64x96xf32, #tpu.memory_space<vmem>>, vector<8x96xf32>
    %cst_46 = arith.constant dense<0.000000e+00> : vector<8x96xf32>
    %152 = tpu.matmul %146, %19, %cst_46 {dimension_numbers = #tpu.dot_dimension_numbers<[1], [0], [0], [1], [0, 0, 1, 1], [], []>} : vector<8x32xf32>, vector<32x96xf32>, vector<8x96xf32> -> vector<8x96xf32>
    %153 = vector.extract_strided_slice %150 {offsets = [0, 0], sizes = [8, 64], strides = [1, 1]} : vector<8x96xf32> to vector<8x64xf32>
    %154 = vector.extract_strided_slice %152 {offsets = [0, 0], sizes = [8, 64], strides = [1, 1]} : vector<8x96xf32> to vector<8x64xf32>
    %155 = arith.addf %153, %154 : vector<8x64xf32>
    %156 = arith.negf %155 : vector<8x64xf32>
    %157 = math.exp %156 : vector<8x64xf32>
    %cst_47 = arith.constant 1.000000e+00 : f32
    %158 = vector.broadcast %cst_47 : f32 to vector<8x64xf32>
    %159 = arith.addf %158, %157 : vector<8x64xf32>
    %160 = arith.divf %158, %159 : vector<8x64xf32>
    %161 = vector.extract_strided_slice %160 {offsets = [0, 0], sizes = [8, 32], strides = [1, 1]} : vector<8x64xf32> to vector<8x32xf32>
    %162 = vector.extract_strided_slice %160 {offsets = [0, 32], sizes = [8, 32], strides = [1, 1]} : vector<8x64xf32> to vector<8x32xf32>
    %163 = vector.extract_strided_slice %150 {offsets = [0, 64], sizes = [8, 32], strides = [1, 1]} : vector<8x96xf32> to vector<8x32xf32>
    %164 = vector.extract_strided_slice %152 {offsets = [0, 64], sizes = [8, 32], strides = [1, 1]} : vector<8x96xf32> to vector<8x32xf32>
    %165 = vector.broadcast %21 : vector<1x32xf32> to vector<8x32xf32>
    %166 = arith.addf %164, %165 : vector<8x32xf32>
    %167 = arith.mulf %161, %166 : vector<8x32xf32>
    %168 = arith.addf %163, %167 : vector<8x32xf32>
    %169 = math.tanh %168 : vector<8x32xf32>
    %cst_48 = arith.constant 1.000000e+00 : f32
    %170 = vector.broadcast %cst_48 : f32 to vector<8x32xf32>
    %171 = arith.subf %170, %162 : vector<8x32xf32>
    %172 = arith.mulf %171, %169 : vector<8x32xf32>
    %173 = arith.mulf %162, %146 : vector<8x32xf32>
    %174 = arith.addf %172, %173 : vector<8x32xf32>
    %cst_49 = arith.constant dense<0.000000e+00> : vector<8x96xf32>
    %175 = tpu.matmul %149, %20, %cst_49 {dimension_numbers = #tpu.dot_dimension_numbers<[1], [0], [0], [1], [0, 0, 1, 1], [], []>} : vector<8x32xf32>, vector<32x96xf32>, vector<8x96xf32> -> vector<8x96xf32>
    %176 = vector.extract_strided_slice %151 {offsets = [0, 0], sizes = [8, 64], strides = [1, 1]} : vector<8x96xf32> to vector<8x64xf32>
    %177 = vector.extract_strided_slice %175 {offsets = [0, 0], sizes = [8, 64], strides = [1, 1]} : vector<8x96xf32> to vector<8x64xf32>
    %178 = arith.addf %176, %177 : vector<8x64xf32>
    %179 = arith.negf %178 : vector<8x64xf32>
    %180 = math.exp %179 : vector<8x64xf32>
    %cst_50 = arith.constant 1.000000e+00 : f32
    %181 = vector.broadcast %cst_50 : f32 to vector<8x64xf32>
    %182 = arith.addf %181, %180 : vector<8x64xf32>
    %183 = arith.divf %181, %182 : vector<8x64xf32>
    %184 = vector.extract_strided_slice %183 {offsets = [0, 0], sizes = [8, 32], strides = [1, 1]} : vector<8x64xf32> to vector<8x32xf32>
    %185 = vector.extract_strided_slice %183 {offsets = [0, 32], sizes = [8, 32], strides = [1, 1]} : vector<8x64xf32> to vector<8x32xf32>
    %186 = vector.extract_strided_slice %151 {offsets = [0, 64], sizes = [8, 32], strides = [1, 1]} : vector<8x96xf32> to vector<8x32xf32>
    %187 = vector.extract_strided_slice %175 {offsets = [0, 64], sizes = [8, 32], strides = [1, 1]} : vector<8x96xf32> to vector<8x32xf32>
    %188 = vector.broadcast %22 : vector<1x32xf32> to vector<8x32xf32>
    %189 = arith.addf %187, %188 : vector<8x32xf32>
    %190 = arith.mulf %184, %189 : vector<8x32xf32>
    %191 = arith.addf %186, %190 : vector<8x32xf32>
    %192 = math.tanh %191 : vector<8x32xf32>
    %cst_51 = arith.constant 1.000000e+00 : f32
    %193 = vector.broadcast %cst_51 : f32 to vector<8x32xf32>
    %194 = arith.subf %193, %185 : vector<8x32xf32>
    %195 = arith.mulf %194, %192 : vector<8x32xf32>
    %196 = arith.mulf %185, %149 : vector<8x32xf32>
    %197 = arith.addf %195, %196 : vector<8x32xf32>
    %198 = vector.shape_cast %29 : vector<8x1xi1> to vector<8x1xi1>
    %199 = vector.broadcast %198 : vector<8x1xi1> to vector<8x32xi1>
    %200 = arith.select %199, %174, %146 : vector<8x32xi1>, vector<8x32xf32>
    %201 = vector.shape_cast %35 : vector<8x1xi1> to vector<8x1xi1>
    %202 = vector.broadcast %201 : vector<8x1xi1> to vector<8x32xi1>
    %203 = arith.select %202, %197, %149 : vector<8x32xi1>, vector<8x32xf32>
    %c24 = arith.constant 24 : index
    %c0_52 = arith.constant 0 : index
    %204 = vector.load %arg15[%c24, %c0_52] : memref<64x96xf32, #tpu.memory_space<vmem>>, vector<8x96xf32>
    %c32 = arith.constant 32 : index
    %c0_53 = arith.constant 0 : index
    %205 = vector.load %arg16[%c32, %c0_53] : memref<64x96xf32, #tpu.memory_space<vmem>>, vector<8x96xf32>
    %cst_54 = arith.constant dense<0.000000e+00> : vector<8x96xf32>
    %206 = tpu.matmul %200, %19, %cst_54 {dimension_numbers = #tpu.dot_dimension_numbers<[1], [0], [0], [1], [0, 0, 1, 1], [], []>} : vector<8x32xf32>, vector<32x96xf32>, vector<8x96xf32> -> vector<8x96xf32>
    %207 = vector.extract_strided_slice %204 {offsets = [0, 0], sizes = [8, 64], strides = [1, 1]} : vector<8x96xf32> to vector<8x64xf32>
    %208 = vector.extract_strided_slice %206 {offsets = [0, 0], sizes = [8, 64], strides = [1, 1]} : vector<8x96xf32> to vector<8x64xf32>
    %209 = arith.addf %207, %208 : vector<8x64xf32>
    %210 = arith.negf %209 : vector<8x64xf32>
    %211 = math.exp %210 : vector<8x64xf32>
    %cst_55 = arith.constant 1.000000e+00 : f32
    %212 = vector.broadcast %cst_55 : f32 to vector<8x64xf32>
    %213 = arith.addf %212, %211 : vector<8x64xf32>
    %214 = arith.divf %212, %213 : vector<8x64xf32>
    %215 = vector.extract_strided_slice %214 {offsets = [0, 0], sizes = [8, 32], strides = [1, 1]} : vector<8x64xf32> to vector<8x32xf32>
    %216 = vector.extract_strided_slice %214 {offsets = [0, 32], sizes = [8, 32], strides = [1, 1]} : vector<8x64xf32> to vector<8x32xf32>
    %217 = vector.extract_strided_slice %204 {offsets = [0, 64], sizes = [8, 32], strides = [1, 1]} : vector<8x96xf32> to vector<8x32xf32>
    %218 = vector.extract_strided_slice %206 {offsets = [0, 64], sizes = [8, 32], strides = [1, 1]} : vector<8x96xf32> to vector<8x32xf32>
    %219 = vector.broadcast %21 : vector<1x32xf32> to vector<8x32xf32>
    %220 = arith.addf %218, %219 : vector<8x32xf32>
    %221 = arith.mulf %215, %220 : vector<8x32xf32>
    %222 = arith.addf %217, %221 : vector<8x32xf32>
    %223 = math.tanh %222 : vector<8x32xf32>
    %cst_56 = arith.constant 1.000000e+00 : f32
    %224 = vector.broadcast %cst_56 : f32 to vector<8x32xf32>
    %225 = arith.subf %224, %216 : vector<8x32xf32>
    %226 = arith.mulf %225, %223 : vector<8x32xf32>
    %227 = arith.mulf %216, %200 : vector<8x32xf32>
    %228 = arith.addf %226, %227 : vector<8x32xf32>
    %cst_57 = arith.constant dense<0.000000e+00> : vector<8x96xf32>
    %229 = tpu.matmul %203, %20, %cst_57 {dimension_numbers = #tpu.dot_dimension_numbers<[1], [0], [0], [1], [0, 0, 1, 1], [], []>} : vector<8x32xf32>, vector<32x96xf32>, vector<8x96xf32> -> vector<8x96xf32>
    %230 = vector.extract_strided_slice %205 {offsets = [0, 0], sizes = [8, 64], strides = [1, 1]} : vector<8x96xf32> to vector<8x64xf32>
    %231 = vector.extract_strided_slice %229 {offsets = [0, 0], sizes = [8, 64], strides = [1, 1]} : vector<8x96xf32> to vector<8x64xf32>
    %232 = arith.addf %230, %231 : vector<8x64xf32>
    %233 = arith.negf %232 : vector<8x64xf32>
    %234 = math.exp %233 : vector<8x64xf32>
    %cst_58 = arith.constant 1.000000e+00 : f32
    %235 = vector.broadcast %cst_58 : f32 to vector<8x64xf32>
    %236 = arith.addf %235, %234 : vector<8x64xf32>
    %237 = arith.divf %235, %236 : vector<8x64xf32>
    %238 = vector.extract_strided_slice %237 {offsets = [0, 0], sizes = [8, 32], strides = [1, 1]} : vector<8x64xf32> to vector<8x32xf32>
    %239 = vector.extract_strided_slice %237 {offsets = [0, 32], sizes = [8, 32], strides = [1, 1]} : vector<8x64xf32> to vector<8x32xf32>
    %240 = vector.extract_strided_slice %205 {offsets = [0, 64], sizes = [8, 32], strides = [1, 1]} : vector<8x96xf32> to vector<8x32xf32>
    %241 = vector.extract_strided_slice %229 {offsets = [0, 64], sizes = [8, 32], strides = [1, 1]} : vector<8x96xf32> to vector<8x32xf32>
    %242 = vector.broadcast %22 : vector<1x32xf32> to vector<8x32xf32>
    %243 = arith.addf %241, %242 : vector<8x32xf32>
    %244 = arith.mulf %238, %243 : vector<8x32xf32>
    %245 = arith.addf %240, %244 : vector<8x32xf32>
    %246 = math.tanh %245 : vector<8x32xf32>
    %cst_59 = arith.constant 1.000000e+00 : f32
    %247 = vector.broadcast %cst_59 : f32 to vector<8x32xf32>
    %248 = arith.subf %247, %239 : vector<8x32xf32>
    %249 = arith.mulf %248, %246 : vector<8x32xf32>
    %250 = arith.mulf %239, %203 : vector<8x32xf32>
    %251 = arith.addf %249, %250 : vector<8x32xf32>
    %252 = vector.shape_cast %31 : vector<8x1xi1> to vector<8x1xi1>
    %253 = vector.broadcast %252 : vector<8x1xi1> to vector<8x32xi1>
    %254 = arith.select %253, %228, %200 : vector<8x32xi1>, vector<8x32xf32>
    %255 = vector.shape_cast %33 : vector<8x1xi1> to vector<8x1xi1>
    %256 = vector.broadcast %255 : vector<8x1xi1> to vector<8x32xi1>
    %257 = arith.select %256, %251, %203 : vector<8x32xi1>, vector<8x32xf32>
    %c32_60 = arith.constant 32 : index
    %c0_61 = arith.constant 0 : index
    %258 = vector.load %arg15[%c32_60, %c0_61] : memref<64x96xf32, #tpu.memory_space<vmem>>, vector<8x96xf32>
    %c24_62 = arith.constant 24 : index
    %c0_63 = arith.constant 0 : index
    %259 = vector.load %arg16[%c24_62, %c0_63] : memref<64x96xf32, #tpu.memory_space<vmem>>, vector<8x96xf32>
    %cst_64 = arith.constant dense<0.000000e+00> : vector<8x96xf32>
    %260 = tpu.matmul %254, %19, %cst_64 {dimension_numbers = #tpu.dot_dimension_numbers<[1], [0], [0], [1], [0, 0, 1, 1], [], []>} : vector<8x32xf32>, vector<32x96xf32>, vector<8x96xf32> -> vector<8x96xf32>
    %261 = vector.extract_strided_slice %258 {offsets = [0, 0], sizes = [8, 64], strides = [1, 1]} : vector<8x96xf32> to vector<8x64xf32>
    %262 = vector.extract_strided_slice %260 {offsets = [0, 0], sizes = [8, 64], strides = [1, 1]} : vector<8x96xf32> to vector<8x64xf32>
    %263 = arith.addf %261, %262 : vector<8x64xf32>
    %264 = arith.negf %263 : vector<8x64xf32>
    %265 = math.exp %264 : vector<8x64xf32>
    %cst_65 = arith.constant 1.000000e+00 : f32
    %266 = vector.broadcast %cst_65 : f32 to vector<8x64xf32>
    %267 = arith.addf %266, %265 : vector<8x64xf32>
    %268 = arith.divf %266, %267 : vector<8x64xf32>
    %269 = vector.extract_strided_slice %268 {offsets = [0, 0], sizes = [8, 32], strides = [1, 1]} : vector<8x64xf32> to vector<8x32xf32>
    %270 = vector.extract_strided_slice %268 {offsets = [0, 32], sizes = [8, 32], strides = [1, 1]} : vector<8x64xf32> to vector<8x32xf32>
    %271 = vector.extract_strided_slice %258 {offsets = [0, 64], sizes = [8, 32], strides = [1, 1]} : vector<8x96xf32> to vector<8x32xf32>
    %272 = vector.extract_strided_slice %260 {offsets = [0, 64], sizes = [8, 32], strides = [1, 1]} : vector<8x96xf32> to vector<8x32xf32>
    %273 = vector.broadcast %21 : vector<1x32xf32> to vector<8x32xf32>
    %274 = arith.addf %272, %273 : vector<8x32xf32>
    %275 = arith.mulf %269, %274 : vector<8x32xf32>
    %276 = arith.addf %271, %275 : vector<8x32xf32>
    %277 = math.tanh %276 : vector<8x32xf32>
    %cst_66 = arith.constant 1.000000e+00 : f32
    %278 = vector.broadcast %cst_66 : f32 to vector<8x32xf32>
    %279 = arith.subf %278, %270 : vector<8x32xf32>
    %280 = arith.mulf %279, %277 : vector<8x32xf32>
    %281 = arith.mulf %270, %254 : vector<8x32xf32>
    %282 = arith.addf %280, %281 : vector<8x32xf32>
    %cst_67 = arith.constant dense<0.000000e+00> : vector<8x96xf32>
    %283 = tpu.matmul %257, %20, %cst_67 {dimension_numbers = #tpu.dot_dimension_numbers<[1], [0], [0], [1], [0, 0, 1, 1], [], []>} : vector<8x32xf32>, vector<32x96xf32>, vector<8x96xf32> -> vector<8x96xf32>
    %284 = vector.extract_strided_slice %259 {offsets = [0, 0], sizes = [8, 64], strides = [1, 1]} : vector<8x96xf32> to vector<8x64xf32>
    %285 = vector.extract_strided_slice %283 {offsets = [0, 0], sizes = [8, 64], strides = [1, 1]} : vector<8x96xf32> to vector<8x64xf32>
    %286 = arith.addf %284, %285 : vector<8x64xf32>
    %287 = arith.negf %286 : vector<8x64xf32>
    %288 = math.exp %287 : vector<8x64xf32>
    %cst_68 = arith.constant 1.000000e+00 : f32
    %289 = vector.broadcast %cst_68 : f32 to vector<8x64xf32>
    %290 = arith.addf %289, %288 : vector<8x64xf32>
    %291 = arith.divf %289, %290 : vector<8x64xf32>
    %292 = vector.extract_strided_slice %291 {offsets = [0, 0], sizes = [8, 32], strides = [1, 1]} : vector<8x64xf32> to vector<8x32xf32>
    %293 = vector.extract_strided_slice %291 {offsets = [0, 32], sizes = [8, 32], strides = [1, 1]} : vector<8x64xf32> to vector<8x32xf32>
    %294 = vector.extract_strided_slice %259 {offsets = [0, 64], sizes = [8, 32], strides = [1, 1]} : vector<8x96xf32> to vector<8x32xf32>
    %295 = vector.extract_strided_slice %283 {offsets = [0, 64], sizes = [8, 32], strides = [1, 1]} : vector<8x96xf32> to vector<8x32xf32>
    %296 = vector.broadcast %22 : vector<1x32xf32> to vector<8x32xf32>
    %297 = arith.addf %295, %296 : vector<8x32xf32>
    %298 = arith.mulf %292, %297 : vector<8x32xf32>
    %299 = arith.addf %294, %298 : vector<8x32xf32>
    %300 = math.tanh %299 : vector<8x32xf32>
    %cst_69 = arith.constant 1.000000e+00 : f32
    %301 = vector.broadcast %cst_69 : f32 to vector<8x32xf32>
    %302 = arith.subf %301, %293 : vector<8x32xf32>
    %303 = arith.mulf %302, %300 : vector<8x32xf32>
    %304 = arith.mulf %293, %257 : vector<8x32xf32>
    %305 = arith.addf %303, %304 : vector<8x32xf32>
    %306 = vector.shape_cast %33 : vector<8x1xi1> to vector<8x1xi1>
    %307 = vector.broadcast %306 : vector<8x1xi1> to vector<8x32xi1>
    %308 = arith.select %307, %282, %254 : vector<8x32xi1>, vector<8x32xf32>
    %309 = vector.shape_cast %31 : vector<8x1xi1> to vector<8x1xi1>
    %310 = vector.broadcast %309 : vector<8x1xi1> to vector<8x32xi1>
    %311 = arith.select %310, %305, %257 : vector<8x32xi1>, vector<8x32xf32>
    %c40_70 = arith.constant 40 : index
    %c0_71 = arith.constant 0 : index
    %312 = vector.load %arg15[%c40_70, %c0_71] : memref<64x96xf32, #tpu.memory_space<vmem>>, vector<8x96xf32>
    %c16_72 = arith.constant 16 : index
    %c0_73 = arith.constant 0 : index
    %313 = vector.load %arg16[%c16_72, %c0_73] : memref<64x96xf32, #tpu.memory_space<vmem>>, vector<8x96xf32>
    %cst_74 = arith.constant dense<0.000000e+00> : vector<8x96xf32>
    %314 = tpu.matmul %308, %19, %cst_74 {dimension_numbers = #tpu.dot_dimension_numbers<[1], [0], [0], [1], [0, 0, 1, 1], [], []>} : vector<8x32xf32>, vector<32x96xf32>, vector<8x96xf32> -> vector<8x96xf32>
    %315 = vector.extract_strided_slice %312 {offsets = [0, 0], sizes = [8, 64], strides = [1, 1]} : vector<8x96xf32> to vector<8x64xf32>
    %316 = vector.extract_strided_slice %314 {offsets = [0, 0], sizes = [8, 64], strides = [1, 1]} : vector<8x96xf32> to vector<8x64xf32>
    %317 = arith.addf %315, %316 : vector<8x64xf32>
    %318 = arith.negf %317 : vector<8x64xf32>
    %319 = math.exp %318 : vector<8x64xf32>
    %cst_75 = arith.constant 1.000000e+00 : f32
    %320 = vector.broadcast %cst_75 : f32 to vector<8x64xf32>
    %321 = arith.addf %320, %319 : vector<8x64xf32>
    %322 = arith.divf %320, %321 : vector<8x64xf32>
    %323 = vector.extract_strided_slice %322 {offsets = [0, 0], sizes = [8, 32], strides = [1, 1]} : vector<8x64xf32> to vector<8x32xf32>
    %324 = vector.extract_strided_slice %322 {offsets = [0, 32], sizes = [8, 32], strides = [1, 1]} : vector<8x64xf32> to vector<8x32xf32>
    %325 = vector.extract_strided_slice %312 {offsets = [0, 64], sizes = [8, 32], strides = [1, 1]} : vector<8x96xf32> to vector<8x32xf32>
    %326 = vector.extract_strided_slice %314 {offsets = [0, 64], sizes = [8, 32], strides = [1, 1]} : vector<8x96xf32> to vector<8x32xf32>
    %327 = vector.broadcast %21 : vector<1x32xf32> to vector<8x32xf32>
    %328 = arith.addf %326, %327 : vector<8x32xf32>
    %329 = arith.mulf %323, %328 : vector<8x32xf32>
    %330 = arith.addf %325, %329 : vector<8x32xf32>
    %331 = math.tanh %330 : vector<8x32xf32>
    %cst_76 = arith.constant 1.000000e+00 : f32
    %332 = vector.broadcast %cst_76 : f32 to vector<8x32xf32>
    %333 = arith.subf %332, %324 : vector<8x32xf32>
    %334 = arith.mulf %333, %331 : vector<8x32xf32>
    %335 = arith.mulf %324, %308 : vector<8x32xf32>
    %336 = arith.addf %334, %335 : vector<8x32xf32>
    %cst_77 = arith.constant dense<0.000000e+00> : vector<8x96xf32>
    %337 = tpu.matmul %311, %20, %cst_77 {dimension_numbers = #tpu.dot_dimension_numbers<[1], [0], [0], [1], [0, 0, 1, 1], [], []>} : vector<8x32xf32>, vector<32x96xf32>, vector<8x96xf32> -> vector<8x96xf32>
    %338 = vector.extract_strided_slice %313 {offsets = [0, 0], sizes = [8, 64], strides = [1, 1]} : vector<8x96xf32> to vector<8x64xf32>
    %339 = vector.extract_strided_slice %337 {offsets = [0, 0], sizes = [8, 64], strides = [1, 1]} : vector<8x96xf32> to vector<8x64xf32>
    %340 = arith.addf %338, %339 : vector<8x64xf32>
    %341 = arith.negf %340 : vector<8x64xf32>
    %342 = math.exp %341 : vector<8x64xf32>
    %cst_78 = arith.constant 1.000000e+00 : f32
    %343 = vector.broadcast %cst_78 : f32 to vector<8x64xf32>
    %344 = arith.addf %343, %342 : vector<8x64xf32>
    %345 = arith.divf %343, %344 : vector<8x64xf32>
    %346 = vector.extract_strided_slice %345 {offsets = [0, 0], sizes = [8, 32], strides = [1, 1]} : vector<8x64xf32> to vector<8x32xf32>
    %347 = vector.extract_strided_slice %345 {offsets = [0, 32], sizes = [8, 32], strides = [1, 1]} : vector<8x64xf32> to vector<8x32xf32>
    %348 = vector.extract_strided_slice %313 {offsets = [0, 64], sizes = [8, 32], strides = [1, 1]} : vector<8x96xf32> to vector<8x32xf32>
    %349 = vector.extract_strided_slice %337 {offsets = [0, 64], sizes = [8, 32], strides = [1, 1]} : vector<8x96xf32> to vector<8x32xf32>
    %350 = vector.broadcast %22 : vector<1x32xf32> to vector<8x32xf32>
    %351 = arith.addf %349, %350 : vector<8x32xf32>
    %352 = arith.mulf %346, %351 : vector<8x32xf32>
    %353 = arith.addf %348, %352 : vector<8x32xf32>
    %354 = math.tanh %353 : vector<8x32xf32>
    %cst_79 = arith.constant 1.000000e+00 : f32
    %355 = vector.broadcast %cst_79 : f32 to vector<8x32xf32>
    %356 = arith.subf %355, %347 : vector<8x32xf32>
    %357 = arith.mulf %356, %354 : vector<8x32xf32>
    %358 = arith.mulf %347, %311 : vector<8x32xf32>
    %359 = arith.addf %357, %358 : vector<8x32xf32>
    %360 = vector.shape_cast %35 : vector<8x1xi1> to vector<8x1xi1>
    %361 = vector.broadcast %360 : vector<8x1xi1> to vector<8x32xi1>
    %362 = arith.select %361, %336, %308 : vector<8x32xi1>, vector<8x32xf32>
    %363 = vector.shape_cast %29 : vector<8x1xi1> to vector<8x1xi1>
    %364 = vector.broadcast %363 : vector<8x1xi1> to vector<8x32xi1>
    %365 = arith.select %364, %359, %311 : vector<8x32xi1>, vector<8x32xf32>
    %c48_80 = arith.constant 48 : index
    %c0_81 = arith.constant 0 : index
    %366 = vector.load %arg15[%c48_80, %c0_81] : memref<64x96xf32, #tpu.memory_space<vmem>>, vector<8x96xf32>
    %c8_82 = arith.constant 8 : index
    %c0_83 = arith.constant 0 : index
    %367 = vector.load %arg16[%c8_82, %c0_83] : memref<64x96xf32, #tpu.memory_space<vmem>>, vector<8x96xf32>
    %cst_84 = arith.constant dense<0.000000e+00> : vector<8x96xf32>
    %368 = tpu.matmul %362, %19, %cst_84 {dimension_numbers = #tpu.dot_dimension_numbers<[1], [0], [0], [1], [0, 0, 1, 1], [], []>} : vector<8x32xf32>, vector<32x96xf32>, vector<8x96xf32> -> vector<8x96xf32>
    %369 = vector.extract_strided_slice %366 {offsets = [0, 0], sizes = [8, 64], strides = [1, 1]} : vector<8x96xf32> to vector<8x64xf32>
    %370 = vector.extract_strided_slice %368 {offsets = [0, 0], sizes = [8, 64], strides = [1, 1]} : vector<8x96xf32> to vector<8x64xf32>
    %371 = arith.addf %369, %370 : vector<8x64xf32>
    %372 = arith.negf %371 : vector<8x64xf32>
    %373 = math.exp %372 : vector<8x64xf32>
    %cst_85 = arith.constant 1.000000e+00 : f32
    %374 = vector.broadcast %cst_85 : f32 to vector<8x64xf32>
    %375 = arith.addf %374, %373 : vector<8x64xf32>
    %376 = arith.divf %374, %375 : vector<8x64xf32>
    %377 = vector.extract_strided_slice %376 {offsets = [0, 0], sizes = [8, 32], strides = [1, 1]} : vector<8x64xf32> to vector<8x32xf32>
    %378 = vector.extract_strided_slice %376 {offsets = [0, 32], sizes = [8, 32], strides = [1, 1]} : vector<8x64xf32> to vector<8x32xf32>
    %379 = vector.extract_strided_slice %366 {offsets = [0, 64], sizes = [8, 32], strides = [1, 1]} : vector<8x96xf32> to vector<8x32xf32>
    %380 = vector.extract_strided_slice %368 {offsets = [0, 64], sizes = [8, 32], strides = [1, 1]} : vector<8x96xf32> to vector<8x32xf32>
    %381 = vector.broadcast %21 : vector<1x32xf32> to vector<8x32xf32>
    %382 = arith.addf %380, %381 : vector<8x32xf32>
    %383 = arith.mulf %377, %382 : vector<8x32xf32>
    %384 = arith.addf %379, %383 : vector<8x32xf32>
    %385 = math.tanh %384 : vector<8x32xf32>
    %cst_86 = arith.constant 1.000000e+00 : f32
    %386 = vector.broadcast %cst_86 : f32 to vector<8x32xf32>
    %387 = arith.subf %386, %378 : vector<8x32xf32>
    %388 = arith.mulf %387, %385 : vector<8x32xf32>
    %389 = arith.mulf %378, %362 : vector<8x32xf32>
    %390 = arith.addf %388, %389 : vector<8x32xf32>
    %cst_87 = arith.constant dense<0.000000e+00> : vector<8x96xf32>
    %391 = tpu.matmul %365, %20, %cst_87 {dimension_numbers = #tpu.dot_dimension_numbers<[1], [0], [0], [1], [0, 0, 1, 1], [], []>} : vector<8x32xf32>, vector<32x96xf32>, vector<8x96xf32> -> vector<8x96xf32>
    %392 = vector.extract_strided_slice %367 {offsets = [0, 0], sizes = [8, 64], strides = [1, 1]} : vector<8x96xf32> to vector<8x64xf32>
    %393 = vector.extract_strided_slice %391 {offsets = [0, 0], sizes = [8, 64], strides = [1, 1]} : vector<8x96xf32> to vector<8x64xf32>
    %394 = arith.addf %392, %393 : vector<8x64xf32>
    %395 = arith.negf %394 : vector<8x64xf32>
    %396 = math.exp %395 : vector<8x64xf32>
    %cst_88 = arith.constant 1.000000e+00 : f32
    %397 = vector.broadcast %cst_88 : f32 to vector<8x64xf32>
    %398 = arith.addf %397, %396 : vector<8x64xf32>
    %399 = arith.divf %397, %398 : vector<8x64xf32>
    %400 = vector.extract_strided_slice %399 {offsets = [0, 0], sizes = [8, 32], strides = [1, 1]} : vector<8x64xf32> to vector<8x32xf32>
    %401 = vector.extract_strided_slice %399 {offsets = [0, 32], sizes = [8, 32], strides = [1, 1]} : vector<8x64xf32> to vector<8x32xf32>
    %402 = vector.extract_strided_slice %367 {offsets = [0, 64], sizes = [8, 32], strides = [1, 1]} : vector<8x96xf32> to vector<8x32xf32>
    %403 = vector.extract_strided_slice %391 {offsets = [0, 64], sizes = [8, 32], strides = [1, 1]} : vector<8x96xf32> to vector<8x32xf32>
    %404 = vector.broadcast %22 : vector<1x32xf32> to vector<8x32xf32>
    %405 = arith.addf %403, %404 : vector<8x32xf32>
    %406 = arith.mulf %400, %405 : vector<8x32xf32>
    %407 = arith.addf %402, %406 : vector<8x32xf32>
    %408 = math.tanh %407 : vector<8x32xf32>
    %cst_89 = arith.constant 1.000000e+00 : f32
    %409 = vector.broadcast %cst_89 : f32 to vector<8x32xf32>
    %410 = arith.subf %409, %401 : vector<8x32xf32>
    %411 = arith.mulf %410, %408 : vector<8x32xf32>
    %412 = arith.mulf %401, %365 : vector<8x32xf32>
    %413 = arith.addf %411, %412 : vector<8x32xf32>
    %414 = vector.shape_cast %37 : vector<8x1xi1> to vector<8x1xi1>
    %415 = vector.broadcast %414 : vector<8x1xi1> to vector<8x32xi1>
    %416 = arith.select %415, %390, %362 : vector<8x32xi1>, vector<8x32xf32>
    %417 = vector.shape_cast %27 : vector<8x1xi1> to vector<8x1xi1>
    %418 = vector.broadcast %417 : vector<8x1xi1> to vector<8x32xi1>
    %419 = arith.select %418, %413, %365 : vector<8x32xi1>, vector<8x32xf32>
    %c56_90 = arith.constant 56 : index
    %c0_91 = arith.constant 0 : index
    %420 = vector.load %arg15[%c56_90, %c0_91] : memref<64x96xf32, #tpu.memory_space<vmem>>, vector<8x96xf32>
    %c0_92 = arith.constant 0 : index
    %c0_93 = arith.constant 0 : index
    %421 = vector.load %arg16[%c0_92, %c0_93] : memref<64x96xf32, #tpu.memory_space<vmem>>, vector<8x96xf32>
    %cst_94 = arith.constant dense<0.000000e+00> : vector<8x96xf32>
    %422 = tpu.matmul %416, %19, %cst_94 {dimension_numbers = #tpu.dot_dimension_numbers<[1], [0], [0], [1], [0, 0, 1, 1], [], []>} : vector<8x32xf32>, vector<32x96xf32>, vector<8x96xf32> -> vector<8x96xf32>
    %423 = vector.extract_strided_slice %420 {offsets = [0, 0], sizes = [8, 64], strides = [1, 1]} : vector<8x96xf32> to vector<8x64xf32>
    %424 = vector.extract_strided_slice %422 {offsets = [0, 0], sizes = [8, 64], strides = [1, 1]} : vector<8x96xf32> to vector<8x64xf32>
    %425 = arith.addf %423, %424 : vector<8x64xf32>
    %426 = arith.negf %425 : vector<8x64xf32>
    %427 = math.exp %426 : vector<8x64xf32>
    %cst_95 = arith.constant 1.000000e+00 : f32
    %428 = vector.broadcast %cst_95 : f32 to vector<8x64xf32>
    %429 = arith.addf %428, %427 : vector<8x64xf32>
    %430 = arith.divf %428, %429 : vector<8x64xf32>
    %431 = vector.extract_strided_slice %430 {offsets = [0, 0], sizes = [8, 32], strides = [1, 1]} : vector<8x64xf32> to vector<8x32xf32>
    %432 = vector.extract_strided_slice %430 {offsets = [0, 32], sizes = [8, 32], strides = [1, 1]} : vector<8x64xf32> to vector<8x32xf32>
    %433 = vector.extract_strided_slice %420 {offsets = [0, 64], sizes = [8, 32], strides = [1, 1]} : vector<8x96xf32> to vector<8x32xf32>
    %434 = vector.extract_strided_slice %422 {offsets = [0, 64], sizes = [8, 32], strides = [1, 1]} : vector<8x96xf32> to vector<8x32xf32>
    %435 = vector.broadcast %21 : vector<1x32xf32> to vector<8x32xf32>
    %436 = arith.addf %434, %435 : vector<8x32xf32>
    %437 = arith.mulf %431, %436 : vector<8x32xf32>
    %438 = arith.addf %433, %437 : vector<8x32xf32>
    %439 = math.tanh %438 : vector<8x32xf32>
    %cst_96 = arith.constant 1.000000e+00 : f32
    %440 = vector.broadcast %cst_96 : f32 to vector<8x32xf32>
    %441 = arith.subf %440, %432 : vector<8x32xf32>
    %442 = arith.mulf %441, %439 : vector<8x32xf32>
    %443 = arith.mulf %432, %416 : vector<8x32xf32>
    %444 = arith.addf %442, %443 : vector<8x32xf32>
    %cst_97 = arith.constant dense<0.000000e+00> : vector<8x96xf32>
    %445 = tpu.matmul %419, %20, %cst_97 {dimension_numbers = #tpu.dot_dimension_numbers<[1], [0], [0], [1], [0, 0, 1, 1], [], []>} : vector<8x32xf32>, vector<32x96xf32>, vector<8x96xf32> -> vector<8x96xf32>
    %446 = vector.extract_strided_slice %421 {offsets = [0, 0], sizes = [8, 64], strides = [1, 1]} : vector<8x96xf32> to vector<8x64xf32>
    %447 = vector.extract_strided_slice %445 {offsets = [0, 0], sizes = [8, 64], strides = [1, 1]} : vector<8x96xf32> to vector<8x64xf32>
    %448 = arith.addf %446, %447 : vector<8x64xf32>
    %449 = arith.negf %448 : vector<8x64xf32>
    %450 = math.exp %449 : vector<8x64xf32>
    %cst_98 = arith.constant 1.000000e+00 : f32
    %451 = vector.broadcast %cst_98 : f32 to vector<8x64xf32>
    %452 = arith.addf %451, %450 : vector<8x64xf32>
    %453 = arith.divf %451, %452 : vector<8x64xf32>
    %454 = vector.extract_strided_slice %453 {offsets = [0, 0], sizes = [8, 32], strides = [1, 1]} : vector<8x64xf32> to vector<8x32xf32>
    %455 = vector.extract_strided_slice %453 {offsets = [0, 32], sizes = [8, 32], strides = [1, 1]} : vector<8x64xf32> to vector<8x32xf32>
    %456 = vector.extract_strided_slice %421 {offsets = [0, 64], sizes = [8, 32], strides = [1, 1]} : vector<8x96xf32> to vector<8x32xf32>
    %457 = vector.extract_strided_slice %445 {offsets = [0, 64], sizes = [8, 32], strides = [1, 1]} : vector<8x96xf32> to vector<8x32xf32>
    %458 = vector.broadcast %22 : vector<1x32xf32> to vector<8x32xf32>
    %459 = arith.addf %457, %458 : vector<8x32xf32>
    %460 = arith.mulf %454, %459 : vector<8x32xf32>
    %461 = arith.addf %456, %460 : vector<8x32xf32>
    %462 = math.tanh %461 : vector<8x32xf32>
    %cst_99 = arith.constant 1.000000e+00 : f32
    %463 = vector.broadcast %cst_99 : f32 to vector<8x32xf32>
    %464 = arith.subf %463, %455 : vector<8x32xf32>
    %465 = arith.mulf %464, %462 : vector<8x32xf32>
    %466 = arith.mulf %455, %419 : vector<8x32xf32>
    %467 = arith.addf %465, %466 : vector<8x32xf32>
    %468 = vector.shape_cast %39 : vector<8x1xi1> to vector<8x1xi1>
    %469 = vector.broadcast %468 : vector<8x1xi1> to vector<8x32xi1>
    %470 = arith.select %469, %444, %416 : vector<8x32xi1>, vector<8x32xf32>
    %471 = vector.shape_cast %25 : vector<8x1xi1> to vector<8x1xi1>
    %472 = vector.broadcast %471 : vector<8x1xi1> to vector<8x32xi1>
    %473 = arith.select %472, %467, %419 : vector<8x32xi1>, vector<8x32xf32>
    %c0_100 = arith.constant 0 : index
    %c0_101 = arith.constant 0 : index
    %474 = vector.load %arg12[%c0_100, %c0_101] : memref<32x128xf32, #tpu.memory_space<vmem>>, vector<32x128xf32>
    %cst_102 = arith.constant dense<0.000000e+00> : vector<8x128xf32>
    %475 = tpu.matmul %473, %474, %cst_102 {dimension_numbers = #tpu.dot_dimension_numbers<[1], [0], [0], [1], [0, 0, 1, 1], [], []>} : vector<8x32xf32>, vector<32x128xf32>, vector<8x128xf32> -> vector<8x128xf32>
    %c0_103 = arith.constant 0 : index
    %c0_104 = arith.constant 0 : index
    %476 = vector.load %arg11[%c0_103, %c0_104] : memref<32x128xf32, #tpu.memory_space<vmem>>, vector<32x128xf32>
    %cst_105 = arith.constant dense<0.000000e+00> : vector<8x128xf32>
    %477 = tpu.matmul %470, %476, %cst_105 {dimension_numbers = #tpu.dot_dimension_numbers<[1], [0], [0], [1], [0, 0, 1, 1], [], []>} : vector<8x32xf32>, vector<32x128xf32>, vector<8x128xf32> -> vector<8x128xf32>
    %478 = arith.addf %475, %477 : vector<8x128xf32>
    %c0_106 = arith.constant 0 : index
    %c0_107 = arith.constant 0 : index
    %479 = vector.load %arg13[%c0_106, %c0_107] : memref<1x128xf32, #tpu.memory_space<vmem>>, vector<1x128xf32>
    %480 = vector.broadcast %479 : vector<1x128xf32> to vector<8x128xf32>
    %481 = arith.addf %478, %480 : vector<8x128xf32>
    %c0_108 = arith.constant 0 : index
    %c0_109 = arith.constant 0 : index
    %482 = vector.load %arg14[%c0_108, %c0_109] : memref<8x128xf32, #tpu.memory_space<vmem>>, vector<8x128xf32>
    tpu.vector_store %arg14[%c0_108, %c0_109], %481 {strides = array<i32>} : memref<8x128xf32, #tpu.memory_space<vmem>>, vector<8x128xf32>,
    return
  }
  func.func @transform_0(%arg0: i32) -> (i32, i32, i32) {
    %c0_i32 = arith.constant 0 : i32
    %c0_i32_0 = arith.constant 0 : i32
    %c0_i32_1 = arith.constant 0 : i32
    return %c0_i32, %arg0, %c0_i32_0 : i32, i32, i32
  }
  func.func @transform_1(%arg0: i32) -> (i32, i32) {
    %c0_i32 = arith.constant 0 : i32
    %c0_i32_0 = arith.constant 0 : i32
    return %arg0, %c0_i32 : i32, i32
  }
  func.func @transform_2(%arg0: i32) -> (i32, i32) {
    %c0_i32 = arith.constant 0 : i32
    %c0_i32_0 = arith.constant 0 : i32
    %c0_i32_1 = arith.constant 0 : i32
    return %c0_i32, %c0_i32_0 : i32, i32
  }
  func.func @transform_3(%arg0: i32) -> (i32, i32) {
    %c0_i32 = arith.constant 0 : i32
    %c0_i32_0 = arith.constant 0 : i32
    %c0_i32_1 = arith.constant 0 : i32
    return %c0_i32, %c0_i32_0 : i32, i32
  }
  func.func @transform_4(%arg0: i32) -> (i32, i32) {
    %c0_i32 = arith.constant 0 : i32
    %c0_i32_0 = arith.constant 0 : i32
    %c0_i32_1 = arith.constant 0 : i32
    return %c0_i32, %c0_i32_0 : i32, i32
  }
  func.func @transform_5(%arg0: i32) -> (i32, i32) {
    %c0_i32 = arith.constant 0 : i32
    %c0_i32_0 = arith.constant 0 : i32
    %c0_i32_1 = arith.constant 0 : i32
    return %c0_i32, %c0_i32_0 : i32, i32
  }
  func.func @transform_6(%arg0: i32) -> (i32, i32) {
    %c0_i32 = arith.constant 0 : i32
    %c0_i32_0 = arith.constant 0 : i32
    %c0_i32_1 = arith.constant 0 : i32
    return %c0_i32, %c0_i32_0 : i32, i32
  }
  func.func @transform_7(%arg0: i32) -> (i32, i32) {
    %c0_i32 = arith.constant 0 : i32
    %c0_i32_0 = arith.constant 0 : i32
    %c0_i32_1 = arith.constant 0 : i32
    return %c0_i32, %c0_i32_0 : i32, i32
  }
  func.func @transform_8(%arg0: i32) -> (i32, i32) {
    %c0_i32 = arith.constant 0 : i32
    %c0_i32_0 = arith.constant 0 : i32
    %c0_i32_1 = arith.constant 0 : i32
    return %c0_i32, %c0_i32_0 : i32, i32
  }
  func.func @transform_9(%arg0: i32) -> (i32, i32) {
    %c0_i32 = arith.constant 0 : i32
    %c0_i32_0 = arith.constant 0 : i32
    %c0_i32_1 = arith.constant 0 : i32
    return %c0_i32, %c0_i32_0 : i32, i32
  }
  func.func @transform_10(%arg0: i32) -> (i32, i32) {
    %c0_i32 = arith.constant 0 : i32
    %c0_i32_0 = arith.constant 0 : i32
    %c0_i32_1 = arith.constant 0 : i32
    return %c0_i32, %c0_i32_0 : i32, i32
  }
  func.func @transform_11(%arg0: i32) -> (i32, i32) {
    %c0_i32 = arith.constant 0 : i32
    %c0_i32_0 = arith.constant 0 : i32
    %c0_i32_1 = arith.constant 0 : i32
    return %c0_i32, %c0_i32_0 : i32, i32
  }
  func.func @transform_12(%arg0: i32) -> (i32, i32) {
    %c0_i32 = arith.constant 0 : i32
    %c0_i32_0 = arith.constant 0 : i32
    %c0_i32_1 = arith.constant 0 : i32
    return %c0_i32, %c0_i32_0 : i32, i32
  }
  func.func @transform_13(%arg0: i32) -> (i32, i32) {
    %c0_i32 = arith.constant 0 : i32
    %c0_i32_0 = arith.constant 0 : i32
    return %arg0, %c0_i32 : i32, i32
  }
}

</mosaic_0001>

<llo_original>
// kernel: tpu_custom_call.1
$region0: #{tpu_custom_call.1}
  #allocation0 [shape = 'u32[]', space=smem, size = 0x4, offset = 0x4, fixed_abs, tag = 'smem constant byte address 0x4 - core index']
  #allocation1 [shape = 'u32[144,128]{1,0:T(1,128)}', space=vmem, size = 0x12000, scoped, tag = 'internal scratch']
  #allocation2 [shape = 'f32[64,96]{1,0:T(8,128)}', space=vmem, size = 0x8000, scoped, tag = 'scratch operand']
  #allocation3 [shape = 'f32[64,96]{1,0:T(8,128)}', space=vmem, size = 0x8000, scoped, tag = 'scratch operand']
  %s0 = inlined_call_operand.vmem [shape: s32[8,8,1], index: 0, kind: input, shape index: {}]
  %s1 = inlined_call_operand.vmem [shape: s32[8,1], index: 1, kind: input, shape index: {}]
  %s2 = inlined_call_operand.vmem [shape: f32[128,96], index: 2, kind: input, shape index: {}]
  %s3 = inlined_call_operand.vmem [shape: f32[128,96], index: 3, kind: input, shape index: {}]
  %s4 = inlined_call_operand.vmem [shape: f32[1,96], index: 4, kind: input, shape index: {}]
  %s5 = inlined_call_operand.vmem [shape: f32[1,96], index: 5, kind: input, shape index: {}]
  %s6 = inlined_call_operand.vmem [shape: f32[32,96], index: 6, kind: input, shape index: {}]
  %s7 = inlined_call_operand.vmem [shape: f32[32,96], index: 7, kind: input, shape index: {}]
  %s8 = inlined_call_operand.vmem [shape: f32[1,32], index: 8, kind: input, shape index: {}]
  %s9 = inlined_call_operand.vmem [shape: f32[1,32], index: 9, kind: input, shape index: {}]
  %s10 = inlined_call_operand.vmem [shape: f32[32,128], index: 10, kind: input, shape index: {}]
  %s11 = inlined_call_operand.vmem [shape: f32[32,128], index: 11, kind: input, shape index: {}]
  %s12 = inlined_call_operand.vmem [shape: f32[1,128], index: 12, kind: input, shape index: {}]
  %s13 = inlined_call_operand.hbm [shape: f32[8,128], index: 13, kind: output, shape index: {}]
  %s14 = sld [smem:[#allocation0]]
  $region62: #{tpu_custom_call.1} parent=0
    _
  %s16 = ssub.s32 1, %s14
  %s17 = scalar_select 0, %s16, %s14
  $region1: #{tpu_custom_call.1} parent=0
    #allocation4 [shape = 'u8[4096]{0}', space=vmem, size = 0x1000, scoped, tag = 'output window, operand 0, single buffered']
    #allocation5 [shape = 's32[1]{0}', space=sflag, size = 0x4, scoped, tag = 'scoped memory for tpu_custom_call.1']
    %18 = vsyncpa [#allocation5], 0
    // Predicated region
    $region2: #{tpu_custom_call.1} parent=1 // pred_check
      _
    $region3: #{tpu_custom_call.1} parent=1 // pred_check_branch
      %20 = sbr.rel (0) target = $region5
    $region4: #{tpu_custom_call.1} parent=1 // pred_region
      _
    $region5: #{tpu_custom_call.1} parent=1 // pred_fallthru
      _
    // Predicated region
    $region6: #{tpu_custom_call.1} parent=1 // pred_check
      _
    $region7: #{tpu_custom_call.1} parent=1 // pred_check_branch
      %22 = sbr.rel (0) target = $region9
    $region8: #{tpu_custom_call.1} parent=1 // pred_region
      _
    $region9: #{tpu_custom_call.1} parent=1 // pred_fallthru
      _
    // Predicated region
    $region10: #{tpu_custom_call.1} parent=1 // pred_check
      _
    $region11: #{tpu_custom_call.1} parent=1 // pred_check_branch
      %24 = sbr.rel (0) target = $region13
    $region12: #{tpu_custom_call.1} parent=1 // pred_region
      _
    $region13: #{tpu_custom_call.1} parent=1 // pred_fallthru
      _
    // Predicated region
    $region14: #{tpu_custom_call.1} parent=1 // pred_check
      _
    $region15: #{tpu_custom_call.1} parent=1 // pred_check_branch
      %26 = sbr.rel (0) target = $region17
    $region16: #{tpu_custom_call.1} parent=1 // pred_region
      _
    $region17: #{tpu_custom_call.1} parent=1 // pred_fallthru
      _
    // Predicated region
    $region18: #{tpu_custom_call.1} parent=1 // pred_check
      _
    $region19: #{tpu_custom_call.1} parent=1 // pred_check_branch
      %28 = sbr.rel (0) target = $region21
    $region20: #{tpu_custom_call.1} parent=1 // pred_region
      _
    $region21: #{tpu_custom_call.1} parent=1 // pred_fallthru
      _
    // Predicated region
    $region22: #{tpu_custom_call.1} parent=1 // pred_check
      _
    $region23: #{tpu_custom_call.1} parent=1 // pred_check_branch
      %30 = sbr.rel (0) target = $region25
    $region24: #{tpu_custom_call.1} parent=1 // pred_region
      _
    $region25: #{tpu_custom_call.1} parent=1 // pred_fallthru
      _
    // Predicated region
    $region26: #{tpu_custom_call.1} parent=1 // pred_check
      _
    $region27: #{tpu_custom_call.1} parent=1 // pred_check_branch
      %32 = sbr.rel (0) target = $region29
    $region28: #{tpu_custom_call.1} parent=1 // pred_region
      _
    $region29: #{tpu_custom_call.1} parent=1 // pred_fallthru
      _
    // Predicated region
    $region30: #{tpu_custom_call.1} parent=1 // pred_check
      _
    $region31: #{tpu_custom_call.1} parent=1 // pred_check_branch
      %34 = sbr.rel (0) target = $region33
    $region32: #{tpu_custom_call.1} parent=1 // pred_region
      _
    $region33: #{tpu_custom_call.1} parent=1 // pred_fallthru
      _
    // Predicated region
    $region34: #{tpu_custom_call.1} parent=1 // pred_check
      _
    $region35: #{tpu_custom_call.1} parent=1 // pred_check_branch
      %36 = sbr.rel (0) target = $region37
    $region36: #{tpu_custom_call.1} parent=1 // pred_region
      _
    $region37: #{tpu_custom_call.1} parent=1 // pred_fallthru
      _
    // Predicated region
    $region38: #{tpu_custom_call.1} parent=1 // pred_check
      _
    $region39: #{tpu_custom_call.1} parent=1 // pred_check_branch
      %38 = sbr.rel (0) target = $region41
    $region40: #{tpu_custom_call.1} parent=1 // pred_region
      _
    $region41: #{tpu_custom_call.1} parent=1 // pred_fallthru
      _
    // Predicated region
    $region42: #{tpu_custom_call.1} parent=1 // pred_check
      _
    $region43: #{tpu_custom_call.1} parent=1 // pred_check_branch
      %40 = sbr.rel (0) target = $region45
    $region44: #{tpu_custom_call.1} parent=1 // pred_region
      _
    $region45: #{tpu_custom_call.1} parent=1 // pred_fallthru
      _
    // Predicated region
    $region46: #{tpu_custom_call.1} parent=1 // pred_check
      _
    $region47: #{tpu_custom_call.1} parent=1 // pred_check_branch
      %42 = sbr.rel (0) target = $region49
    $region48: #{tpu_custom_call.1} parent=1 // pred_region
      _
    $region49: #{tpu_custom_call.1} parent=1 // pred_fallthru
      _
    // Predicated region
    $region50: #{tpu_custom_call.1} parent=1 // pred_check
      _
    $region51: #{tpu_custom_call.1} parent=1 // pred_check_branch
      %44 = sbr.rel (0) target = $region53
    $region52: #{tpu_custom_call.1} parent=1 // pred_region
      _
    $region53: #{tpu_custom_call.1} parent=1 // pred_fallthru
      _
    %v45 = vld [vmem:[%s0] sm:$0xff]
    %v46 = vld [vmem:[%s0 + $0x8] sm:$0xff]
    %v47 = vld [vmem:[%s0 + $0x10] sm:$0xff]
    %v48 = vld [vmem:[%s0 + $0x18] sm:$0xff]
    %v49 = vld [vmem:[%s0 + $0x20] sm:$0xff]
    %v50 = vld [vmem:[%s0 + $0x28] sm:$0xff]
    %v51 = vld [vmem:[%s0 + $0x30] sm:$0xff]
    %v52 = vld [vmem:[%s0 + $0x38] sm:$0xff]
    %v53 = vlaneseq
    %v54 = vand.u32 %v53, 127
    %55 = vset.pattern.permute.xlu0 0
    %56 = vperm.xlu0 %55, %v45
    %v57 = vpop.permute.xlu0 %56
    %58 = vset.pattern.permute.xlu0 0
    %59 = vperm.xlu0 %58, %v46
    %v60 = vpop.permute.xlu0 %59
    %61 = vset.pattern.permute.xlu0 0
    %62 = vperm.xlu0 %61, %v47
    %v63 = vpop.permute.xlu0 %62
    %64 = vset.pattern.permute.xlu0 0
    %65 = vperm.xlu0 %64, %v48
    %v66 = vpop.permute.xlu0 %65
    %67 = vset.pattern.permute.xlu0 0
    %68 = vperm.xlu0 %67, %v49
    %v69 = vpop.permute.xlu0 %68
    %70 = vset.pattern.permute.xlu0 0
    %71 = vperm.xlu0 %70, %v50
    %v72 = vpop.permute.xlu0 %71
    %73 = vset.pattern.permute.xlu0 0
    %74 = vperm.xlu0 %73, %v51
    %v75 = vpop.permute.xlu0 %74
    %76 = vset.pattern.permute.xlu0 0
    %77 = vperm.xlu0 %76, %v52
    %v78 = vpop.permute.xlu0 %77
    %vm79 = vcmp.eq.s32.totalorder %v57, %v54
    %vm80 = vcmp.eq.s32.totalorder %v60, %v54
    %vm81 = vcmp.eq.s32.totalorder %v63, %v54
    %vm82 = vcmp.eq.s32.totalorder %v66, %v54
    %vm83 = vcmp.eq.s32.totalorder %v69, %v54
    %vm84 = vcmp.eq.s32.totalorder %v72, %v54
    %vm85 = vcmp.eq.s32.totalorder %v75, %v54
    %vm86 = vcmp.eq.s32.totalorder %v78, %v54
    %v87 = vsel %vm79, 1, 0
    %v88 = vsel %vm80, 1, 0
    %v89 = vsel %vm81, 1, 0
    %v90 = vsel %vm82, 1, 0
    %v91 = vsel %vm83, 1, 0
    %v92 = vsel %vm84, 1, 0
    %v93 = vsel %vm85, 1, 0
    %v94 = vsel %vm86, 1, 0
    %v95 = vcvt.s32.f32 %v87
    %v96 = vcvt.s32.f32 %v88
    %v97 = vcvt.s32.f32 %v89
    %v98 = vcvt.s32.f32 %v90
    %v99 = vcvt.s32.f32 %v91
    %v100 = vcvt.s32.f32 %v92
    %v101 = vcvt.s32.f32 %v93
    %v102 = vcvt.s32.f32 %v94
    %v103 = vld [vmem:[%s2] sm:$0xff]
    %v104 = vld [vmem:[%s2 + $0x8] sm:$0xff]
    %v105 = vld [vmem:[%s2 + $0x10] sm:$0xff]
    %v106 = vld [vmem:[%s2 + $0x18] sm:$0xff]
    %v107 = vld [vmem:[%s2 + $0x20] sm:$0xff]
    %v108 = vld [vmem:[%s2 + $0x28] sm:$0xff]
    %v109 = vld [vmem:[%s2 + $0x30] sm:$0xff]
    %v110 = vld [vmem:[%s2 + $0x38] sm:$0xff]
    %v111 = vld [vmem:[%s2 + $0x40] sm:$0xff]
    %v112 = vld [vmem:[%s2 + $0x48] sm:$0xff]
    %v113 = vld [vmem:[%s2 + $0x50] sm:$0xff]
    %v114 = vld [vmem:[%s2 + $0x58] sm:$0xff]
    %v115 = vld [vmem:[%s2 + $0x60] sm:$0xff]
    %v116 = vld [vmem:[%s2 + $0x68] sm:$0xff]
    %v117 = vld [vmem:[%s2 + $0x70] sm:$0xff]
    %v118 = vld [vmem:[%s2 + $0x78] sm:$0xff]
    %v119 = vld [vmem:[%s4] sm:$0x1]
    %v121 = vlaneseq
    %v122 = vshrl.u32 %v121, 7
    %v123 = vsub.s32 0, %v122
    %v124 = vrot.slane %v119, %v123
    %126 = vmatprep.subr.mxu0 0.0
    %127 = vmatpush1.msra.mxu0 %v103
    %128 = vmatprep.subr.mxu0 0.0
    %129 = vmatpush1.msra.mxu0 %v104
    %130 = vmatprep.subr.mxu0 0.0
    %131 = vmatpush1.msra.mxu0 %v105
    %132 = vmatprep.subr.mxu0 0.0
    %133 = vmatpush1.msra.mxu0 %v106
    %134 = vmatprep.subr.mxu0 0.0
    %135 = vmatpush1.msra.mxu0 %v107
    %136 = vmatprep.subr.mxu0 0.0
    %137 = vmatpush1.msra.mxu0 %v108
    %138 = vmatprep.subr.mxu0 0.0
    %139 = vmatpush1.msra.mxu0 %v109
    %140 = vmatprep.subr.mxu0 0.0
    %141 = vmatpush1.msra.mxu0 %v110
    %142 = vmatprep.subr.mxu0 0.0
    %143 = vmatpush1.msra.mxu0 %v111
    %144 = vmatprep.subr.mxu0 0.0
    %145 = vmatpush1.msra.mxu0 %v112
    %146 = vmatprep.subr.mxu0 0.0
    %147 = vmatpush1.msra.mxu0 %v113
    %148 = vmatprep.subr.mxu0 0.0
    %149 = vmatpush1.msra.mxu0 %v114
    %150 = vmatprep.subr.mxu0 0.0
    %151 = vmatpush1.msra.mxu0 %v115
    %152 = vmatprep.subr.mxu0 0.0
    %153 = vmatpush1.msra.mxu0 %v116
    %154 = vmatprep.subr.mxu0 0.0
    %155 = vmatpush1.msra.mxu0 %v117
    %156 = vmatprep.subr.mxu0 0.0
    %157 = vmatpush1.msra.mxu0 %v118
    %158 = vmatprep.subr.mxu0 0.0
    %159 = vmatpush1.msra.mxu0 0.0
    %160 = vmatprep.subr.mxu0 0.0
    %161 = vmatpush1.msra.mxu0 0.0
    %162 = vmatprep.subr.mxu0 0.0
    %163 = vmatpush1.msra.mxu0 0.0
    %164 = vmatprep.subr.mxu0 0.0
    %165 = vmatpush1.msra.mxu0 0.0
    %166 = vmatprep.subr.mxu0 0.0
    %167 = vmatpush1.msra.mxu0 0.0
    %168 = vmatprep.subr.mxu0 0.0
    %169 = vmatpush1.msra.mxu0 0.0
    %170 = vmatprep.subr.mxu0 0.0
    %171 = vmatpush1.msra.mxu0 0.0
    %172 = vmatprep.subr.mxu0 0.0
    %173 = vmatpush1.msra.mxu0 0.0
    %174 = vmatprep.subr.mxu0 0.0
    %175 = vmatpush1.msra.mxu0 0.0
    %176 = vmatprep.subr.mxu0 0.0
    %177 = vmatpush1.msra.mxu0 0.0
    %178 = vmatprep.subr.mxu0 0.0
    %179 = vmatpush1.msra.mxu0 0.0
    %180 = vmatprep.subr.mxu0 0.0
    %181 = vmatpush1.msra.mxu0 0.0
    %182 = vmatprep.subr.mxu0 0.0
    %183 = vmatpush1.msra.mxu0 0.0
    %184 = vmatprep.subr.mxu0 0.0
    %185 = vmatpush1.msra.mxu0 0.0
    %186 = vmatprep.subr.mxu0 0.0
    %187 = vmatpush1.msra.mxu0 0.0
    %188 = vmatprep.subr.mxu0 0.0
    %189 = vmatpush1.msra.mxu0 0.0
    %190 = vmatprep.mubr.f32.mxu0 0.0
    %191 = vmatmul.mubr.f32.gmra.mrb[0].mxu0 %v95
    %v192 = vpop.f32.mrb[0].mxu0
    %v193 = vadd.f32 %v124, %v192
    %v194 = vpop.f32.mrb[0].mxu0
    %195 = vmatprep.mubr.f32.mxu0 0.0
    %196 = vmatmul.mubr.f32.gmra.mrb[0].mxu0 %v96
    %v197 = vpop.f32.mrb[0].mxu0
    %v198 = vadd.f32 %v124, %v197
    %v199 = vpop.f32.mrb[0].mxu0
    %200 = vmatprep.mubr.f32.mxu0 0.0
    %201 = vmatmul.mubr.f32.gmra.mrb[0].mxu0 %v97
    %v202 = vpop.f32.mrb[0].mxu0
    %v203 = vadd.f32 %v124, %v202
    %v204 = vpop.f32.mrb[0].mxu0
    %205 = vmatprep.mubr.f32.mxu0 0.0
    %206 = vmatmul.mubr.f32.gmra.mrb[0].mxu0 %v98
    %v207 = vpop.f32.mrb[0].mxu0
    %v208 = vadd.f32 %v124, %v207
    %v209 = vpop.f32.mrb[0].mxu0
    %210 = vmatprep.mubr.f32.mxu0 0.0
    %211 = vmatmul.mubr.f32.gmra.mrb[0].mxu0 %v99
    %v212 = vpop.f32.mrb[0].mxu0
    %v213 = vadd.f32 %v124, %v212
    %v214 = vpop.f32.mrb[0].mxu0
    %215 = vmatprep.mubr.f32.mxu0 0.0
    %216 = vmatmul.mubr.f32.gmra.mrb[0].mxu0 %v100
    %v217 = vpop.f32.mrb[0].mxu0
    %v218 = vadd.f32 %v124, %v217
    %v219 = vpop.f32.mrb[0].mxu0
    %220 = vmatprep.mubr.f32.mxu0 0.0
    %221 = vmatmul.mubr.f32.gmra.mrb[0].mxu0 %v101
    %v222 = vpop.f32.mrb[0].mxu0
    %v223 = vadd.f32 %v124, %v222
    %v224 = vpop.f32.mrb[0].mxu0
    %225 = vmatprep.mubr.f32.mxu0 0.0
    %226 = vmatmul.mubr.f32.gmra.mrb[0].mxu0 %v102
    %v227 = vpop.f32.mrb[0].mxu0
    %v228 = vadd.f32 %v124, %v227
    %v229 = vpop.f32.mrb[0].mxu0
    %230 = vdwg.mxu0
    %vm231 = vcmask 785408
    %232 = vst.msk [vmem:[#allocation2] sm:$0xff] %vm231, %v193
    %233 = vst.msk [vmem:[#allocation2 + $0x8] sm:$0xff] %vm231, %v198
    %234 = vst.msk [vmem:[#allocation2 + $0x10] sm:$0xff] %vm231, %v203
    %235 = vst.msk [vmem:[#allocation2 + $0x18] sm:$0xff] %vm231, %v208
    %236 = vst.msk [vmem:[#allocation2 + $0x20] sm:$0xff] %vm231, %v213
    %237 = vst.msk [vmem:[#allocation2 + $0x28] sm:$0xff] %vm231, %v218
    %238 = vst.msk [vmem:[#allocation2 + $0x30] sm:$0xff] %vm231, %v223
    %239 = vst.msk [vmem:[#allocation2 + $0x38] sm:$0xff] %vm231, %v228
    %v240 = vld [vmem:[%s3] sm:$0xff]
    %v241 = vld [vmem:[%s3 + $0x8] sm:$0xff]
    %v242 = vld [vmem:[%s3 + $0x10] sm:$0xff]
    %v243 = vld [vmem:[%s3 + $0x18] sm:$0xff]
    %v244 = vld [vmem:[%s3 + $0x20] sm:$0xff]
    %v245 = vld [vmem:[%s3 + $0x28] sm:$0xff]
    %v246 = vld [vmem:[%s3 + $0x30] sm:$0xff]
    %v247 = vld [vmem:[%s3 + $0x38] sm:$0xff]
    %v248 = vld [vmem:[%s3 + $0x40] sm:$0xff]
    %v249 = vld [vmem:[%s3 + $0x48] sm:$0xff]
    %v250 = vld [vmem:[%s3 + $0x50] sm:$0xff]
    %v251 = vld [vmem:[%s3 + $0x58] sm:$0xff]
    %v252 = vld [vmem:[%s3 + $0x60] sm:$0xff]
    %v253 = vld [vmem:[%s3 + $0x68] sm:$0xff]
    %v254 = vld [vmem:[%s3 + $0x70] sm:$0xff]
    %v255 = vld [vmem:[%s3 + $0x78] sm:$0xff]
    %v256 = vld [vmem:[%s5] sm:$0x1]
    %v258 = vlaneseq
    %v259 = vshrl.u32 %v258, 7
    %v260 = vsub.s32 0, %v259
    %v261 = vrot.slane %v256, %v260
    %263 = vmatprep.subr.mxu0 0.0
    %264 = vmatpush1.msra.mxu0 %v240
    %265 = vmatprep.subr.mxu0 0.0
    %266 = vmatpush1.msra.mxu0 %v241
    %267 = vmatprep.subr.mxu0 0.0
    %268 = vmatpush1.msra.mxu0 %v242
    %269 = vmatprep.subr.mxu0 0.0
    %270 = vmatpush1.msra.mxu0 %v243
    %271 = vmatprep.subr.mxu0 0.0
    %272 = vmatpush1.msra.mxu0 %v244
    %273 = vmatprep.subr.mxu0 0.0
    %274 = vmatpush1.msra.mxu0 %v245
    %275 = vmatprep.subr.mxu0 0.0
    %276 = vmatpush1.msra.mxu0 %v246
    %277 = vmatprep.subr.mxu0 0.0
    %278 = vmatpush1.msra.mxu0 %v247
    %279 = vmatprep.subr.mxu0 0.0
    %280 = vmatpush1.msra.mxu0 %v248
    %281 = vmatprep.subr.mxu0 0.0
    %282 = vmatpush1.msra.mxu0 %v249
    %283 = vmatprep.subr.mxu0 0.0
    %284 = vmatpush1.msra.mxu0 %v250
    %285 = vmatprep.subr.mxu0 0.0
    %286 = vmatpush1.msra.mxu0 %v251
    %287 = vmatprep.subr.mxu0 0.0
    %288 = vmatpush1.msra.mxu0 %v252
    %289 = vmatprep.subr.mxu0 0.0
    %290 = vmatpush1.msra.mxu0 %v253
    %291 = vmatprep.subr.mxu0 0.0
    %292 = vmatpush1.msra.mxu0 %v254
    %293 = vmatprep.subr.mxu0 0.0
    %294 = vmatpush1.msra.mxu0 %v255
    %295 = vmatprep.subr.mxu0 0.0
    %296 = vmatpush1.msra.mxu0 0.0
    %297 = vmatprep.subr.mxu0 0.0
    %298 = vmatpush1.msra.mxu0 0.0
    %299 = vmatprep.subr.mxu0 0.0
    %300 = vmatpush1.msra.mxu0 0.0
    %301 = vmatprep.subr.mxu0 0.0
    %302 = vmatpush1.msra.mxu0 0.0
    %303 = vmatprep.subr.mxu0 0.0
    %304 = vmatpush1.msra.mxu0 0.0
    %305 = vmatprep.subr.mxu0 0.0
    %306 = vmatpush1.msra.mxu0 0.0
    %307 = vmatprep.subr.mxu0 0.0
    %308 = vmatpush1.msra.mxu0 0.0
    %309 = vmatprep.subr.mxu0 0.0
    %310 = vmatpush1.msra.mxu0 0.0
    %311 = vmatprep.subr.mxu0 0.0
    %312 = vmatpush1.msra.mxu0 0.0
    %313 = vmatprep.subr.mxu0 0.0
    %314 = vmatpush1.msra.mxu0 0.0
    %315 = vmatprep.subr.mxu0 0.0
    %316 = vmatpush1.msra.mxu0 0.0
    %317 = vmatprep.subr.mxu0 0.0
    %318 = vmatpush1.msra.mxu0 0.0
    %319 = vmatprep.subr.mxu0 0.0
    %320 = vmatpush1.msra.mxu0 0.0
    %321 = vmatprep.subr.mxu0 0.0
    %322 = vmatpush1.msra.mxu0 0.0
    %323 = vmatprep.subr.mxu0 0.0
    %324 = vmatpush1.msra.mxu0 0.0
    %325 = vmatprep.subr.mxu0 0.0
    %326 = vmatpush1.msra.mxu0 0.0
    %327 = vmatprep.mubr.f32.mxu0 0.0
    %328 = vmatmul.mubr.f32.gmra.mrb[0].mxu0 %v95
    %v329 = vpop.f32.mrb[0].mxu0
    %v330 = vadd.f32 %v261, %v329
    %v331 = vpop.f32.mrb[0].mxu0
    %332 = vmatprep.mubr.f32.mxu0 0.0
    %333 = vmatmul.mubr.f32.gmra.mrb[0].mxu0 %v96
    %v334 = vpop.f32.mrb[0].mxu0
    %v335 = vadd.f32 %v261, %v334
    %v336 = vpop.f32.mrb[0].mxu0
    %337 = vmatprep.mubr.f32.mxu0 0.0
    %338 = vmatmul.mubr.f32.gmra.mrb[0].mxu0 %v97
    %v339 = vpop.f32.mrb[0].mxu0
    %v340 = vadd.f32 %v261, %v339
    %v341 = vpop.f32.mrb[0].mxu0
    %342 = vmatprep.mubr.f32.mxu0 0.0
    %343 = vmatmul.mubr.f32.gmra.mrb[0].mxu0 %v98
    %v344 = vpop.f32.mrb[0].mxu0
    %v345 = vadd.f32 %v261, %v344
    %v346 = vpop.f32.mrb[0].mxu0
    %347 = vmatprep.mubr.f32.mxu0 0.0
    %348 = vmatmul.mubr.f32.gmra.mrb[0].mxu0 %v99
    %v349 = vpop.f32.mrb[0].mxu0
    %v350 = vadd.f32 %v261, %v349
    %v351 = vpop.f32.mrb[0].mxu0
    %352 = vmatprep.mubr.f32.mxu0 0.0
    %353 = vmatmul.mubr.f32.gmra.mrb[0].mxu0 %v100
    %v354 = vpop.f32.mrb[0].mxu0
    %v355 = vadd.f32 %v261, %v354
    %v356 = vpop.f32.mrb[0].mxu0
    %357 = vmatprep.mubr.f32.mxu0 0.0
    %358 = vmatmul.mubr.f32.gmra.mrb[0].mxu0 %v101
    %v359 = vpop.f32.mrb[0].mxu0
    %v360 = vadd.f32 %v261, %v359
    %v361 = vpop.f32.mrb[0].mxu0
    %362 = vmatprep.mubr.f32.mxu0 0.0
    %363 = vmatmul.mubr.f32.gmra.mrb[0].mxu0 %v102
    %v364 = vpop.f32.mrb[0].mxu0
    %v365 = vadd.f32 %v261, %v364
    %v366 = vpop.f32.mrb[0].mxu0
    %367 = vdwg.mxu0
    %368 = vst.msk [vmem:[#allocation3] sm:$0xff] %vm231, %v330
    %369 = vst.msk [vmem:[#allocation3 + $0x8] sm:$0xff] %vm231, %v335
    %370 = vst.msk [vmem:[#allocation3 + $0x10] sm:$0xff] %vm231, %v340
    %371 = vst.msk [vmem:[#allocation3 + $0x18] sm:$0xff] %vm231, %v345
    %372 = vst.msk [vmem:[#allocation3 + $0x20] sm:$0xff] %vm231, %v350
    %373 = vst.msk [vmem:[#allocation3 + $0x28] sm:$0xff] %vm231, %v355
    %374 = vst.msk [vmem:[#allocation3 + $0x30] sm:$0xff] %vm231, %v360
    %375 = vst.msk [vmem:[#allocation3 + $0x38] sm:$0xff] %vm231, %v365
    %v376 = vld [vmem:[%s6] sm:$0xff]
    %v377 = vld [vmem:[%s6 + $0x8] sm:$0xff]
    %v378 = vld [vmem:[%s6 + $0x10] sm:$0xff]
    %v379 = vld [vmem:[%s6 + $0x18] sm:$0xff]
    %v380 = vld [vmem:[%s7] sm:$0xff]
    %v381 = vld [vmem:[%s7 + $0x8] sm:$0xff]
    %v382 = vld [vmem:[%s7 + $0x10] sm:$0xff]
    %v383 = vld [vmem:[%s7 + $0x18] sm:$0xff]
    %v384 = vld [vmem:[%s8] sm:$0x1]
    %v385 = vld [vmem:[%s9] sm:$0x1]
    %v386 = vld [vmem:[%s1] sm:$0xff]
    %vm387 = vcmp.gt.s32.totalorder %v386, 0
    %vm388 = vcmp.gt.s32.totalorder %v386, 1
    %vm389 = vcmp.gt.s32.totalorder %v386, 2
    %vm390 = vcmp.gt.s32.totalorder %v386, 3
    %vm391 = vcmp.gt.s32.totalorder %v386, 4
    %vm392 = vcmp.gt.s32.totalorder %v386, 5
    %vm393 = vcmp.gt.s32.totalorder %v386, 6
    %vm394 = vcmp.gt.s32.totalorder %v386, 7
    %v395 = vld [vmem:[#allocation2] sm:$0xff]
    %v396 = vld [vmem:[#allocation3 + $0x38] sm:$0xff]
    %vm397 = vcmask 261120
    %v399 = vsel %vm397, 0.0, 0
    %401 = vmatprep.subr.mxu0 0.0
    %402 = vmatpush1.msra.mxu0 %v376
    %403 = vmatprep.subr.mxu0 0.0
    %404 = vmatpush1.msra.mxu0 %v377
    %405 = vmatprep.subr.mxu0 0.0
    %406 = vmatpush1.msra.mxu0 %v378
    %407 = vmatprep.subr.mxu0 0.0
    %408 = vmatpush1.msra.mxu0 %v379
    %409 = vmatprep.subr.mxu0 0.0
    %410 = vmatpush1.msra.mxu0 0.0
    %411 = vmatprep.subr.mxu0 0.0
    %412 = vmatpush1.msra.mxu0 0.0
    %413 = vmatprep.subr.mxu0 0.0
    %414 = vmatpush1.msra.mxu0 0.0
    %415 = vmatprep.subr.mxu0 0.0
    %416 = vmatpush1.msra.mxu0 0.0
    %417 = vmatprep.subr.mxu0 0.0
    %418 = vmatpush1.msra.mxu0 0.0
    %419 = vmatprep.subr.mxu0 0.0
    %420 = vmatpush1.msra.mxu0 0.0
    %421 = vmatprep.subr.mxu0 0.0
    %422 = vmatpush1.msra.mxu0 0.0
    %423 = vmatprep.subr.mxu0 0.0
    %424 = vmatpush1.msra.mxu0 0.0
    %425 = vmatprep.subr.mxu0 0.0
    %426 = vmatpush1.msra.mxu0 0.0
    %427 = vmatprep.subr.mxu0 0.0
    %428 = vmatpush1.msra.mxu0 0.0
    %429 = vmatprep.subr.mxu0 0.0
    %430 = vmatpush1.msra.mxu0 0.0
    %431 = vmatprep.subr.mxu0 0.0
    %432 = vmatpush1.msra.mxu0 0.0
    %433 = vmatprep.subr.mxu0 0.0
    %434 = vmatpush1.msra.mxu0 0.0
    %435 = vmatprep.subr.mxu0 0.0
    %436 = vmatpush1.msra.mxu0 0.0
    %437 = vmatprep.subr.mxu0 0.0
    %438 = vmatpush1.msra.mxu0 0.0
    %439 = vmatprep.subr.mxu0 0.0
    %440 = vmatpush1.msra.mxu0 0.0
    %441 = vmatprep.subr.mxu0 0.0
    %442 = vmatpush1.msra.mxu0 0.0
    %443 = vmatprep.subr.mxu0 0.0
    %444 = vmatpush1.msra.mxu0 0.0
    %445 = vmatprep.subr.mxu0 0.0
    %446 = vmatpush1.msra.mxu0 0.0
    %447 = vmatprep.subr.mxu0 0.0
    %448 = vmatpush1.msra.mxu0 0.0
    %449 = vmatprep.subr.mxu0 0.0
    %450 = vmatpush1.msra.mxu0 0.0
    %451 = vmatprep.subr.mxu0 0.0
    %452 = vmatpush1.msra.mxu0 0.0
    %453 = vmatprep.subr.mxu0 0.0
    %454 = vmatpush1.msra.mxu0 0.0
    %455 = vmatprep.subr.mxu0 0.0
    %456 = vmatpush1.msra.mxu0 0.0
    %457 = vmatprep.subr.mxu0 0.0
    %458 = vmatpush1.msra.mxu0 0.0
    %459 = vmatprep.subr.mxu0 0.0
    %460 = vmatpush1.msra.mxu0 0.0
    %461 = vmatprep.subr.mxu0 0.0
    %462 = vmatpush1.msra.mxu0 0.0
    %463 = vmatprep.subr.mxu0 0.0
    %464 = vmatpush1.msra.mxu0 0.0
    %465 = vmatprep.mubr.f32.mxu0 0.0
    %466 = vmatmul.mubr.f32.gmra.mrb[0].mxu0 %v399
    %v467 = vpop.f32.mrb[0].mxu0
    %v468 = vadd.f32 0.0, %v467
    %v469 = vpop.f32.mrb[0].mxu0
    %470 = vdwg.mxu0
    %v471 = vadd.f32 %v395, %v468
    %v472 = vxor.u32 %v471, 2147483648
    %v473 = vmul.f32 %v472, 1.442695
    %v474 = vpow.pop %v473
    %v475 = vadd.f32 %v474, 1.0
    %v476 = vrcp.pop %v475
    %v477 = vmul.f32 1.0, %v476
    %v479 = vlaneseq
    %v480 = vshrl.u32 %v479, 7
    %v481 = vsub.s32 0, %v480
    %v482 = vrot.slane %v384, %v481
    %483 = vrot.lane.b32.xlu0 %v482, 64
    %v484 = vpop.permute.xlu0 %483
    %v486 = vadd.f32 %v468, %v484
    %488 = vrot.lane.b32.xlu0 %v486, 64
    %v489 = vpop.permute.xlu0 %488
    %v491 = vmul.f32 %v477, %v489
    %493 = vrot.lane.b32.xlu0 %v491, 64
    %v494 = vpop.permute.xlu0 %493
    %v496 = vadd.f32 %v395, %v494
    %v497 = vtanh.pop %v496
    %v498 = vsub.f32 1.0, %v477
    %500 = vrot.lane.b32.xlu0 %v497, 96
    %v501 = vpop.permute.xlu0 %500
    %v503 = vmul.f32 %v498, %v501
    %v504 = vmul.f32 %v477, 0.0
    %v505 = vadd.f32 %v503, %v504
    %506 = vmatprep.subr.mxu0 0.0
    %507 = vmatpush1.msra.mxu0 %v380
    %508 = vmatprep.subr.mxu0 0.0
    %509 = vmatpush1.msra.mxu0 %v381
    %510 = vmatprep.subr.mxu0 0.0
    %511 = vmatpush1.msra.mxu0 %v382
    %512 = vmatprep.subr.mxu0 0.0
    %513 = vmatpush1.msra.mxu0 %v383
    %514 = vmatprep.subr.mxu0 0.0
    %515 = vmatpush1.msra.mxu0 0.0
    %516 = vmatprep.subr.mxu0 0.0
    %517 = vmatpush1.msra.mxu0 0.0
    %518 = vmatprep.subr.mxu0 0.0
    %519 = vmatpush1.msra.mxu0 0.0
    %520 = vmatprep.subr.mxu0 0.0
    %521 = vmatpush1.msra.mxu0 0.0
    %522 = vmatprep.subr.mxu0 0.0
    %523 = vmatpush1.msra.mxu0 0.0
    %524 = vmatprep.subr.mxu0 0.0
    %525 = vmatpush1.msra.mxu0 0.0
    %526 = vmatprep.subr.mxu0 0.0
    %527 = vmatpush1.msra.mxu0 0.0
    %528 = vmatprep.subr.mxu0 0.0
    %529 = vmatpush1.msra.mxu0 0.0
    %530 = vmatprep.subr.mxu0 0.0
    %531 = vmatpush1.msra.mxu0 0.0
    %532 = vmatprep.subr.mxu0 0.0
    %533 = vmatpush1.msra.mxu0 0.0
    %534 = vmatprep.subr.mxu0 0.0
    %535 = vmatpush1.msra.mxu0 0.0
    %536 = vmatprep.subr.mxu0 0.0
    %537 = vmatpush1.msra.mxu0 0.0
    %538 = vmatprep.subr.mxu0 0.0
    %539 = vmatpush1.msra.mxu0 0.0
    %540 = vmatprep.subr.mxu0 0.0
    %541 = vmatpush1.msra.mxu0 0.0
    %542 = vmatprep.subr.mxu0 0.0
    %543 = vmatpush1.msra.mxu0 0.0
    %544 = vmatprep.subr.mxu0 0.0
    %545 = vmatpush1.msra.mxu0 0.0
    %546 = vmatprep.subr.mxu0 0.0
    %547 = vmatpush1.msra.mxu0 0.0
    %548 = vmatprep.subr.mxu0 0.0
    %549 = vmatpush1.msra.mxu0 0.0
    %550 = vmatprep.subr.mxu0 0.0
    %551 = vmatpush1.msra.mxu0 0.0
    %552 = vmatprep.subr.mxu0 0.0
    %553 = vmatpush1.msra.mxu0 0.0
    %554 = vmatprep.subr.mxu0 0.0
    %555 = vmatpush1.msra.mxu0 0.0
    %556 = vmatprep.subr.mxu0 0.0
    %557 = vmatpush1.msra.mxu0 0.0
    %558 = vmatprep.subr.mxu0 0.0
    %559 = vmatpush1.msra.mxu0 0.0
    %560 = vmatprep.subr.mxu0 0.0
    %561 = vmatpush1.msra.mxu0 0.0
    %562 = vmatprep.subr.mxu0 0.0
    %563 = vmatpush1.msra.mxu0 0.0
    %564 = vmatprep.subr.mxu0 0.0
    %565 = vmatpush1.msra.mxu0 0.0
    %566 = vmatprep.subr.mxu0 0.0
    %567 = vmatpush1.msra.mxu0 0.0
    %568 = vmatprep.subr.mxu0 0.0
    %569 = vmatpush1.msra.mxu0 0.0
    %570 = vmatprep.mubr.f32.mxu0 0.0
    %571 = vmatmul.mubr.f32.gmra.mrb[0].mxu0 %v399
    %v572 = vpop.f32.mrb[0].mxu0
    %v573 = vadd.f32 0.0, %v572
    %v574 = vpop.f32.mrb[0].mxu0
    %575 = vdwg.mxu0
    %v576 = vadd.f32 %v396, %v573
    %v577 = vxor.u32 %v576, 2147483648
    %v578 = vmul.f32 %v577, 1.442695
    %v579 = vpow.pop %v578
    %v580 = vadd.f32 %v579, 1.0
    %v581 = vrcp.pop %v580
    %v582 = vmul.f32 1.0, %v581
    %v584 = vlaneseq
    %v585 = vshrl.u32 %v584, 7
    %v586 = vsub.s32 0, %v585
    %v587 = vrot.slane %v385, %v586
    %588 = vrot.lane.b32.xlu0 %v587, 64
    %v589 = vpop.permute.xlu0 %588
    %v591 = vadd.f32 %v573, %v589
    %593 = vrot.lane.b32.xlu0 %v591, 64
    %v594 = vpop.permute.xlu0 %593
    %v596 = vmul.f32 %v582, %v594
    %598 = vrot.lane.b32.xlu0 %v596, 64
    %v599 = vpop.permute.xlu0 %598
    %v601 = vadd.f32 %v396, %v599
    %v602 = vtanh.pop %v601
    %v603 = vsub.f32 1.0, %v582
    %605 = vrot.lane.b32.xlu0 %v602, 96
    %v606 = vpop.permute.xlu0 %605
    %v608 = vmul.f32 %v603, %v606
    %v609 = vmul.f32 %v582, 0.0
    %v610 = vadd.f32 %v608, %v609
    %v611 = vsel %vm387, 1, 0
    %612 = vset.pattern.permute.xlu0 0
    %613 = vperm.xlu0 %612, %v611
    %v614 = vpop.permute.xlu0 %613
    %vm615 = vcmp.eq.s32.totalorder %v614, 1
    %v616 = vsel %vm615, %v505, 0.0
    %v617 = vsel %vm394, 1, 0
    %618 = vset.pattern.permute.xlu0 0
    %619 = vperm.xlu0 %618, %v617
    %v620 = vpop.permute.xlu0 %619
    %vm621 = vcmp.eq.s32.totalorder %v620, 1
    %v622 = vsel %vm621, %v610, 0.0
    %v623 = vld [vmem:[#allocation2 + $0x8] sm:$0xff]
    %v624 = vld [vmem:[#allocation3 + $0x30] sm:$0xff]
    %626 = vrot.lane.b32.xlu0 %v616, 96
    %v627 = vpop.permute.xlu0 %626
    %v628 = vsel %vm397, %v627, 0
    %630 = vmatprep.subr.mxu0 0.0
    %631 = vmatpush1.msra.mxu0 %v376
    %632 = vmatprep.subr.mxu0 0.0
    %633 = vmatpush1.msra.mxu0 %v377
    %634 = vmatprep.subr.mxu0 0.0
    %635 = vmatpush1.msra.mxu0 %v378
    %636 = vmatprep.subr.mxu0 0.0
    %637 = vmatpush1.msra.mxu0 %v379
    %638 = vmatprep.subr.mxu0 0.0
    %639 = vmatpush1.msra.mxu0 0.0
    %640 = vmatprep.subr.mxu0 0.0
    %641 = vmatpush1.msra.mxu0 0.0
    %642 = vmatprep.subr.mxu0 0.0
    %643 = vmatpush1.msra.mxu0 0.0
    %644 = vmatprep.subr.mxu0 0.0
    %645 = vmatpush1.msra.mxu0 0.0
    %646 = vmatprep.subr.mxu0 0.0
    %647 = vmatpush1.msra.mxu0 0.0
    %648 = vmatprep.subr.mxu0 0.0
    %649 = vmatpush1.msra.mxu0 0.0
    %650 = vmatprep.subr.mxu0 0.0
    %651 = vmatpush1.msra.mxu0 0.0
    %652 = vmatprep.subr.mxu0 0.0
    %653 = vmatpush1.msra.mxu0 0.0
    %654 = vmatprep.subr.mxu0 0.0
    %655 = vmatpush1.msra.mxu0 0.0
    %656 = vmatprep.subr.mxu0 0.0
    %657 = vmatpush1.msra.mxu0 0.0
    %658 = vmatprep.subr.mxu0 0.0
    %659 = vmatpush1.msra.mxu0 0.0
    %660 = vmatprep.subr.mxu0 0.0
    %661 = vmatpush1.msra.mxu0 0.0
    %662 = vmatprep.subr.mxu0 0.0
    %663 = vmatpush1.msra.mxu0 0.0
    %664 = vmatprep.subr.mxu0 0.0
    %665 = vmatpush1.msra.mxu0 0.0
    %666 = vmatprep.subr.mxu0 0.0
    %667 = vmatpush1.msra.mxu0 0.0
    %668 = vmatprep.subr.mxu0 0.0
    %669 = vmatpush1.msra.mxu0 0.0
    %670 = vmatprep.subr.mxu0 0.0
    %671 = vmatpush1.msra.mxu0 0.0
    %672 = vmatprep.subr.mxu0 0.0
    %673 = vmatpush1.msra.mxu0 0.0
    %674 = vmatprep.subr.mxu0 0.0
    %675 = vmatpush1.msra.mxu0 0.0
    %676 = vmatprep.subr.mxu0 0.0
    %677 = vmatpush1.msra.mxu0 0.0
    %678 = vmatprep.subr.mxu0 0.0
    %679 = vmatpush1.msra.mxu0 0.0
    %680 = vmatprep.subr.mxu0 0.0
    %681 = vmatpush1.msra.mxu0 0.0
    %682 = vmatprep.subr.mxu0 0.0
    %683 = vmatpush1.msra.mxu0 0.0
    %684 = vmatprep.subr.mxu0 0.0
    %685 = vmatpush1.msra.mxu0 0.0
    %686 = vmatprep.subr.mxu0 0.0
    %687 = vmatpush1.msra.mxu0 0.0
    %688 = vmatprep.subr.mxu0 0.0
    %689 = vmatpush1.msra.mxu0 0.0
    %690 = vmatprep.subr.mxu0 0.0
    %691 = vmatpush1.msra.mxu0 0.0
    %692 = vmatprep.subr.mxu0 0.0
    %693 = vmatpush1.msra.mxu0 0.0
    %694 = vmatprep.mubr.f32.mxu0 0.0
    %695 = vmatmul.mubr.f32.gmra.mrb[0].mxu0 %v628
    %v696 = vpop.f32.mrb[0].mxu0
    %v697 = vadd.f32 0.0, %v696
    %v698 = vpop.f32.mrb[0].mxu0
    %699 = vdwg.mxu0
    %v700 = vadd.f32 %v623, %v697
    %v701 = vxor.u32 %v700, 2147483648
    %v702 = vmul.f32 %v701, 1.442695
    %v703 = vpow.pop %v702
    %v704 = vadd.f32 %v703, 1.0
    %v705 = vrcp.pop %v704
    %v706 = vmul.f32 1.0, %v705
    %v707 = vadd.f32 %v697, %v484
    %709 = vrot.lane.b32.xlu0 %v707, 64
    %v710 = vpop.permute.xlu0 %709
    %v712 = vmul.f32 %v706, %v710
    %714 = vrot.lane.b32.xlu0 %v712, 64
    %v715 = vpop.permute.xlu0 %714
    %v717 = vadd.f32 %v623, %v715
    %v718 = vtanh.pop %v717
    %v719 = vsub.f32 1.0, %v706
    %721 = vrot.lane.b32.xlu0 %v718, 96
    %v722 = vpop.permute.xlu0 %721
    %v724 = vmul.f32 %v719, %v722
    %v725 = vmul.f32 %v706, %v616
    %v726 = vadd.f32 %v724, %v725
    %728 = vrot.lane.b32.xlu0 %v622, 96
    %v729 = vpop.permute.xlu0 %728
    %v730 = vsel %vm397, %v729, 0
    %732 = vmatprep.subr.mxu0 0.0
    %733 = vmatpush1.msra.mxu0 %v380
    %734 = vmatprep.subr.mxu0 0.0
    %735 = vmatpush1.msra.mxu0 %v381
    %736 = vmatprep.subr.mxu0 0.0
    %737 = vmatpush1.msra.mxu0 %v382
    %738 = vmatprep.subr.mxu0 0.0
    %739 = vmatpush1.msra.mxu0 %v383
    %740 = vmatprep.subr.mxu0 0.0
    %741 = vmatpush1.msra.mxu0 0.0
    %742 = vmatprep.subr.mxu0 0.0
    %743 = vmatpush1.msra.mxu0 0.0
    %744 = vmatprep.subr.mxu0 0.0
    %745 = vmatpush1.msra.mxu0 0.0
    %746 = vmatprep.subr.mxu0 0.0
    %747 = vmatpush1.msra.mxu0 0.0
    %748 = vmatprep.subr.mxu0 0.0
    %749 = vmatpush1.msra.mxu0 0.0
    %750 = vmatprep.subr.mxu0 0.0
    %751 = vmatpush1.msra.mxu0 0.0
    %752 = vmatprep.subr.mxu0 0.0
    %753 = vmatpush1.msra.mxu0 0.0
    %754 = vmatprep.subr.mxu0 0.0
    %755 = vmatpush1.msra.mxu0 0.0
    %756 = vmatprep.subr.mxu0 0.0
    %757 = vmatpush1.msra.mxu0 0.0
    %758 = vmatprep.subr.mxu0 0.0
    %759 = vmatpush1.msra.mxu0 0.0
    %760 = vmatprep.subr.mxu0 0.0
    %761 = vmatpush1.msra.mxu0 0.0
    %762 = vmatprep.subr.mxu0 0.0
    %763 = vmatpush1.msra.mxu0 0.0
    %764 = vmatprep.subr.mxu0 0.0
    %765 = vmatpush1.msra.mxu0 0.0
    %766 = vmatprep.subr.mxu0 0.0
    %767 = vmatpush1.msra.mxu0 0.0
    %768 = vmatprep.subr.mxu0 0.0
    %769 = vmatpush1.msra.mxu0 0.0
    %770 = vmatprep.subr.mxu0 0.0
    %771 = vmatpush1.msra.mxu0 0.0
    %772 = vmatprep.subr.mxu0 0.0
    %773 = vmatpush1.msra.mxu0 0.0
    %774 = vmatprep.subr.mxu0 0.0
    %775 = vmatpush1.msra.mxu0 0.0
    %776 = vmatprep.subr.mxu0 0.0
    %777 = vmatpush1.msra.mxu0 0.0
    %778 = vmatprep.subr.mxu0 0.0
    %779 = vmatpush1.msra.mxu0 0.0
    %780 = vmatprep.subr.mxu0 0.0
    %781 = vmatpush1.msra.mxu0 0.0
    %782 = vmatprep.subr.mxu0 0.0
    %783 = vmatpush1.msra.mxu0 0.0
    %784 = vmatprep.subr.mxu0 0.0
    %785 = vmatpush1.msra.mxu0 0.0
    %786 = vmatprep.subr.mxu0 0.0
    %787 = vmatpush1.msra.mxu0 0.0
    %788 = vmatprep.subr.mxu0 0.0
    %789 = vmatpush1.msra.mxu0 0.0
    %790 = vmatprep.subr.mxu0 0.0
    %791 = vmatpush1.msra.mxu0 0.0
    %792 = vmatprep.subr.mxu0 0.0
    %793 = vmatpush1.msra.mxu0 0.0
    %794 = vmatprep.subr.mxu0 0.0
    %795 = vmatpush1.msra.mxu0 0.0
    %796 = vmatprep.mubr.f32.mxu0 0.0
    %797 = vmatmul.mubr.f32.gmra.mrb[0].mxu0 %v730
    %v798 = vpop.f32.mrb[0].mxu0
    %v799 = vadd.f32 0.0, %v798
    %v800 = vpop.f32.mrb[0].mxu0
    %801 = vdwg.mxu0
    %v802 = vadd.f32 %v624, %v799
    %v803 = vxor.u32 %v802, 2147483648
    %v804 = vmul.f32 %v803, 1.442695
    %v805 = vpow.pop %v804
    %v806 = vadd.f32 %v805, 1.0
    %v807 = vrcp.pop %v806
    %v808 = vmul.f32 1.0, %v807
    %v809 = vadd.f32 %v799, %v589
    %811 = vrot.lane.b32.xlu0 %v809, 64
    %v812 = vpop.permute.xlu0 %811
    %v814 = vmul.f32 %v808, %v812
    %816 = vrot.lane.b32.xlu0 %v814, 64
    %v817 = vpop.permute.xlu0 %816
    %v819 = vadd.f32 %v624, %v817
    %v820 = vtanh.pop %v819
    %v821 = vsub.f32 1.0, %v808
    %823 = vrot.lane.b32.xlu0 %v820, 96
    %v824 = vpop.permute.xlu0 %823
    %v826 = vmul.f32 %v821, %v824
    %v827 = vmul.f32 %v808, %v622
    %v828 = vadd.f32 %v826, %v827
    %v829 = vsel %vm388, 1, 0
    %830 = vset.pattern.permute.xlu0 0
    %831 = vperm.xlu0 %830, %v829
    %v832 = vpop.permute.xlu0 %831
    %vm833 = vcmp.eq.s32.totalorder %v832, 1
    %v834 = vsel %vm833, %v726, %v616
    %v835 = vsel %vm393, 1, 0
    %836 = vset.pattern.permute.xlu0 0
    %837 = vperm.xlu0 %836, %v835
    %v838 = vpop.permute.xlu0 %837
    %vm839 = vcmp.eq.s32.totalorder %v838, 1
    %v840 = vsel %vm839, %v828, %v622
    %v841 = vld [vmem:[#allocation2 + $0x10] sm:$0xff]
    %v842 = vld [vmem:[#allocation3 + $0x28] sm:$0xff]
    %844 = vrot.lane.b32.xlu0 %v834, 96
    %v845 = vpop.permute.xlu0 %844
    %v846 = vsel %vm397, %v845, 0
    %848 = vmatprep.subr.mxu0 0.0
    %849 = vmatpush1.msra.mxu0 %v376
    %850 = vmatprep.subr.mxu0 0.0
    %851 = vmatpush1.msra.mxu0 %v377
    %852 = vmatprep.subr.mxu0 0.0
    %853 = vmatpush1.msra.mxu0 %v378
    %854 = vmatprep.subr.mxu0 0.0
    %855 = vmatpush1.msra.mxu0 %v379
    %856 = vmatprep.subr.mxu0 0.0
    %857 = vmatpush1.msra.mxu0 0.0
    %858 = vmatprep.subr.mxu0 0.0
    %859 = vmatpush1.msra.mxu0 0.0
    %860 = vmatprep.subr.mxu0 0.0
    %861 = vmatpush1.msra.mxu0 0.0
    %862 = vmatprep.subr.mxu0 0.0
    %863 = vmatpush1.msra.mxu0 0.0
    %864 = vmatprep.subr.mxu0 0.0
    %865 = vmatpush1.msra.mxu0 0.0
    %866 = vmatprep.subr.mxu0 0.0
    %867 = vmatpush1.msra.mxu0 0.0
    %868 = vmatprep.subr.mxu0 0.0
    %869 = vmatpush1.msra.mxu0 0.0
    %870 = vmatprep.subr.mxu0 0.0
    %871 = vmatpush1.msra.mxu0 0.0
    %872 = vmatprep.subr.mxu0 0.0
    %873 = vmatpush1.msra.mxu0 0.0
    %874 = vmatprep.subr.mxu0 0.0
    %875 = vmatpush1.msra.mxu0 0.0
    %876 = vmatprep.subr.mxu0 0.0
    %877 = vmatpush1.msra.mxu0 0.0
    %878 = vmatprep.subr.mxu0 0.0
    %879 = vmatpush1.msra.mxu0 0.0
    %880 = vmatprep.subr.mxu0 0.0
    %881 = vmatpush1.msra.mxu0 0.0
    %882 = vmatprep.subr.mxu0 0.0
    %883 = vmatpush1.msra.mxu0 0.0
    %884 = vmatprep.subr.mxu0 0.0
    %885 = vmatpush1.msra.mxu0 0.0
    %886 = vmatprep.subr.mxu0 0.0
    %887 = vmatpush1.msra.mxu0 0.0
    %888 = vmatprep.subr.mxu0 0.0
    %889 = vmatpush1.msra.mxu0 0.0
    %890 = vmatprep.subr.mxu0 0.0
    %891 = vmatpush1.msra.mxu0 0.0
    %892 = vmatprep.subr.mxu0 0.0
    %893 = vmatpush1.msra.mxu0 0.0
    %894 = vmatprep.subr.mxu0 0.0
    %895 = vmatpush1.msra.mxu0 0.0
    %896 = vmatprep.subr.mxu0 0.0
    %897 = vmatpush1.msra.mxu0 0.0
    %898 = vmatprep.subr.mxu0 0.0
    %899 = vmatpush1.msra.mxu0 0.0
    %900 = vmatprep.subr.mxu0 0.0
    %901 = vmatpush1.msra.mxu0 0.0
    %902 = vmatprep.subr.mxu0 0.0
    %903 = vmatpush1.msra.mxu0 0.0
    %904 = vmatprep.subr.mxu0 0.0
    %905 = vmatpush1.msra.mxu0 0.0
    %906 = vmatprep.subr.mxu0 0.0
    %907 = vmatpush1.msra.mxu0 0.0
    %908 = vmatprep.subr.mxu0 0.0
    %909 = vmatpush1.msra.mxu0 0.0
    %910 = vmatprep.subr.mxu0 0.0
    %911 = vmatpush1.msra.mxu0 0.0
    %912 = vmatprep.mubr.f32.mxu0 0.0
    %913 = vmatmul.mubr.f32.gmra.mrb[0].mxu0 %v846
    %v914 = vpop.f32.mrb[0].mxu0
    %v915 = vadd.f32 0.0, %v914
    %v916 = vpop.f32.mrb[0].mxu0
    %917 = vdwg.mxu0
    %v918 = vadd.f32 %v841, %v915
    %v919 = vxor.u32 %v918, 2147483648
    %v920 = vmul.f32 %v919, 1.442695
    %v921 = vpow.pop %v920
    %v922 = vadd.f32 %v921, 1.0
    %v923 = vrcp.pop %v922
    %v924 = vmul.f32 1.0, %v923
    %v925 = vadd.f32 %v915, %v484
    %927 = vrot.lane.b32.xlu0 %v925, 64
    %v928 = vpop.permute.xlu0 %927
    %v930 = vmul.f32 %v924, %v928
    %932 = vrot.lane.b32.xlu0 %v930, 64
    %v933 = vpop.permute.xlu0 %932
    %v935 = vadd.f32 %v841, %v933
    %v936 = vtanh.pop %v935
    %v937 = vsub.f32 1.0, %v924
    %939 = vrot.lane.b32.xlu0 %v936, 96
    %v940 = vpop.permute.xlu0 %939
    %v942 = vmul.f32 %v937, %v940
    %v943 = vmul.f32 %v924, %v834
    %v944 = vadd.f32 %v942, %v943
    %946 = vrot.lane.b32.xlu0 %v840, 96
    %v947 = vpop.permute.xlu0 %946
    %v948 = vsel %vm397, %v947, 0
    %950 = vmatprep.subr.mxu0 0.0
    %951 = vmatpush1.msra.mxu0 %v380
    %952 = vmatprep.subr.mxu0 0.0
    %953 = vmatpush1.msra.mxu0 %v381
    %954 = vmatprep.subr.mxu0 0.0
    %955 = vmatpush1.msra.mxu0 %v382
    %956 = vmatprep.subr.mxu0 0.0
    %957 = vmatpush1.msra.mxu0 %v383
    %958 = vmatprep.subr.mxu0 0.0
    %959 = vmatpush1.msra.mxu0 0.0
    %960 = vmatprep.subr.mxu0 0.0
    %961 = vmatpush1.msra.mxu0 0.0
    %962 = vmatprep.subr.mxu0 0.0
    %963 = vmatpush1.msra.mxu0 0.0
    %964 = vmatprep.subr.mxu0 0.0
    %965 = vmatpush1.msra.mxu0 0.0
    %966 = vmatprep.subr.mxu0 0.0
    %967 = vmatpush1.msra.mxu0 0.0
    %968 = vmatprep.subr.mxu0 0.0
    %969 = vmatpush1.msra.mxu0 0.0
    %970 = vmatprep.subr.mxu0 0.0
    %971 = vmatpush1.msra.mxu0 0.0
    %972 = vmatprep.subr.mxu0 0.0
    %973 = vmatpush1.msra.mxu0 0.0
    %974 = vmatprep.subr.mxu0 0.0
    %975 = vmatpush1.msra.mxu0 0.0
    %976 = vmatprep.subr.mxu0 0.0
    %977 = vmatpush1.msra.mxu0 0.0
    %978 = vmatprep.subr.mxu0 0.0
    %979 = vmatpush1.msra.mxu0 0.0
    %980 = vmatprep.subr.mxu0 0.0
    %981 = vmatpush1.msra.mxu0 0.0
    %982 = vmatprep.subr.mxu0 0.0
    %983 = vmatpush1.msra.mxu0 0.0
    %984 = vmatprep.subr.mxu0 0.0
    %985 = vmatpush1.msra.mxu0 0.0
    %986 = vmatprep.subr.mxu0 0.0
    %987 = vmatpush1.msra.mxu0 0.0
    %988 = vmatprep.subr.mxu0 0.0
    %989 = vmatpush1.msra.mxu0 0.0
    %990 = vmatprep.subr.mxu0 0.0
    %991 = vmatpush1.msra.mxu0 0.0
    %992 = vmatprep.subr.mxu0 0.0
    %993 = vmatpush1.msra.mxu0 0.0
    %994 = vmatprep.subr.mxu0 0.0
    %995 = vmatpush1.msra.mxu0 0.0
    %996 = vmatprep.subr.mxu0 0.0
    %997 = vmatpush1.msra.mxu0 0.0
    %998 = vmatprep.subr.mxu0 0.0
    %999 = vmatpush1.msra.mxu0 0.0
    %1000 = vmatprep.subr.mxu0 0.0
    %1001 = vmatpush1.msra.mxu0 0.0
    %1002 = vmatprep.subr.mxu0 0.0
    %1003 = vmatpush1.msra.mxu0 0.0
    %1004 = vmatprep.subr.mxu0 0.0
    %1005 = vmatpush1.msra.mxu0 0.0
    %1006 = vmatprep.subr.mxu0 0.0
    %1007 = vmatpush1.msra.mxu0 0.0
    %1008 = vmatprep.subr.mxu0 0.0
    %1009 = vmatpush1.msra.mxu0 0.0
    %1010 = vmatprep.subr.mxu0 0.0
    %1011 = vmatpush1.msra.mxu0 0.0
    %1012 = vmatprep.subr.mxu0 0.0
    %1013 = vmatpush1.msra.mxu0 0.0
    %1014 = vmatprep.mubr.f32.mxu0 0.0
    %1015 = vmatmul.mubr.f32.gmra.mrb[0].mxu0 %v948
    %v1016 = vpop.f32.mrb[0].mxu0
    %v1017 = vadd.f32 0.0, %v1016
    %v1018 = vpop.f32.mrb[0].mxu0
    %1019 = vdwg.mxu0
    %v1020 = vadd.f32 %v842, %v1017
    %v1021 = vxor.u32 %v1020, 2147483648
    %v1022 = vmul.f32 %v1021, 1.442695
    %v1023 = vpow.pop %v1022
    %v1024 = vadd.f32 %v1023, 1.0
    %v1025 = vrcp.pop %v1024
    %v1026 = vmul.f32 1.0, %v1025
    %v1027 = vadd.f32 %v1017, %v589
    %1029 = vrot.lane.b32.xlu0 %v1027, 64
    %v1030 = vpop.permute.xlu0 %1029
    %v1032 = vmul.f32 %v1026, %v1030
    %1034 = vrot.lane.b32.xlu0 %v1032, 64
    %v1035 = vpop.permute.xlu0 %1034
    %v1037 = vadd.f32 %v842, %v1035
    %v1038 = vtanh.pop %v1037
    %v1039 = vsub.f32 1.0, %v1026
    %1041 = vrot.lane.b32.xlu0 %v1038, 96
    %v1042 = vpop.permute.xlu0 %1041
    %v1044 = vmul.f32 %v1039, %v1042
    %v1045 = vmul.f32 %v1026, %v840
    %v1046 = vadd.f32 %v1044, %v1045
    %v1047 = vsel %vm389, 1, 0
    %1048 = vset.pattern.permute.xlu0 0
    %1049 = vperm.xlu0 %1048, %v1047
    %v1050 = vpop.permute.xlu0 %1049
    %vm1051 = vcmp.eq.s32.totalorder %v1050, 1
    %v1052 = vsel %vm1051, %v944, %v834
    %v1053 = vsel %vm392, 1, 0
    %1054 = vset.pattern.permute.xlu0 0
    %1055 = vperm.xlu0 %1054, %v1053
    %v1056 = vpop.permute.xlu0 %1055
    %vm1057 = vcmp.eq.s32.totalorder %v1056, 1
    %v1058 = vsel %vm1057, %v1046, %v840
    %v1059 = vld [vmem:[#allocation2 + $0x18] sm:$0xff]
    %v1060 = vld [vmem:[#allocation3 + $0x20] sm:$0xff]
    %1062 = vrot.lane.b32.xlu0 %v1052, 96
    %v1063 = vpop.permute.xlu0 %1062
    %v1064 = vsel %vm397, %v1063, 0
    %1066 = vmatprep.subr.mxu0 0.0
    %1067 = vmatpush1.msra.mxu0 %v376
    %1068 = vmatprep.subr.mxu0 0.0
    %1069 = vmatpush1.msra.mxu0 %v377
    %1070 = vmatprep.subr.mxu0 0.0
    %1071 = vmatpush1.msra.mxu0 %v378
    %1072 = vmatprep.subr.mxu0 0.0
    %1073 = vmatpush1.msra.mxu0 %v379
    %1074 = vmatprep.subr.mxu0 0.0
    %1075 = vmatpush1.msra.mxu0 0.0
    %1076 = vmatprep.subr.mxu0 0.0
    %1077 = vmatpush1.msra.mxu0 0.0
    %1078 = vmatprep.subr.mxu0 0.0
    %1079 = vmatpush1.msra.mxu0 0.0
    %1080 = vmatprep.subr.mxu0 0.0
    %1081 = vmatpush1.msra.mxu0 0.0
    %1082 = vmatprep.subr.mxu0 0.0
    %1083 = vmatpush1.msra.mxu0 0.0
    %1084 = vmatprep.subr.mxu0 0.0
    %1085 = vmatpush1.msra.mxu0 0.0
    %1086 = vmatprep.subr.mxu0 0.0
    %1087 = vmatpush1.msra.mxu0 0.0
    %1088 = vmatprep.subr.mxu0 0.0
    %1089 = vmatpush1.msra.mxu0 0.0
    %1090 = vmatprep.subr.mxu0 0.0
    %1091 = vmatpush1.msra.mxu0 0.0
    %1092 = vmatprep.subr.mxu0 0.0
    %1093 = vmatpush1.msra.mxu0 0.0
    %1094 = vmatprep.subr.mxu0 0.0
    %1095 = vmatpush1.msra.mxu0 0.0
    %1096 = vmatprep.subr.mxu0 0.0
    %1097 = vmatpush1.msra.mxu0 0.0
    %1098 = vmatprep.subr.mxu0 0.0
    %1099 = vmatpush1.msra.mxu0 0.0
    %1100 = vmatprep.subr.mxu0 0.0
    %1101 = vmatpush1.msra.mxu0 0.0
    %1102 = vmatprep.subr.mxu0 0.0
    %1103 = vmatpush1.msra.mxu0 0.0
    %1104 = vmatprep.subr.mxu0 0.0
    %1105 = vmatpush1.msra.mxu0 0.0
    %1106 = vmatprep.subr.mxu0 0.0
    %1107 = vmatpush1.msra.mxu0 0.0
    %1108 = vmatprep.subr.mxu0 0.0
    %1109 = vmatpush1.msra.mxu0 0.0
    %1110 = vmatprep.subr.mxu0 0.0
    %1111 = vmatpush1.msra.mxu0 0.0
    %1112 = vmatprep.subr.mxu0 0.0
    %1113 = vmatpush1.msra.mxu0 0.0
    %1114 = vmatprep.subr.mxu0 0.0
    %1115 = vmatpush1.msra.mxu0 0.0
    %1116 = vmatprep.subr.mxu0 0.0
    %1117 = vmatpush1.msra.mxu0 0.0
    %1118 = vmatprep.subr.mxu0 0.0
    %1119 = vmatpush1.msra.mxu0 0.0
    %1120 = vmatprep.subr.mxu0 0.0
    %1121 = vmatpush1.msra.mxu0 0.0
    %1122 = vmatprep.subr.mxu0 0.0
    %1123 = vmatpush1.msra.mxu0 0.0
    %1124 = vmatprep.subr.mxu0 0.0
    %1125 = vmatpush1.msra.mxu0 0.0
    %1126 = vmatprep.subr.mxu0 0.0
    %1127 = vmatpush1.msra.mxu0 0.0
    %1128 = vmatprep.subr.mxu0 0.0
    %1129 = vmatpush1.msra.mxu0 0.0
    %1130 = vmatprep.mubr.f32.mxu0 0.0
    %1131 = vmatmul.mubr.f32.gmra.mrb[0].mxu0 %v1064
    %v1132 = vpop.f32.mrb[0].mxu0
    %v1133 = vadd.f32 0.0, %v1132
    %v1134 = vpop.f32.mrb[0].mxu0
    %1135 = vdwg.mxu0
    %v1136 = vadd.f32 %v1059, %v1133
    %v1137 = vxor.u32 %v1136, 2147483648
    %v1138 = vmul.f32 %v1137, 1.442695
    %v1139 = vpow.pop %v1138
    %v1140 = vadd.f32 %v1139, 1.0
    %v1141 = vrcp.pop %v1140
    %v1142 = vmul.f32 1.0, %v1141
    %v1143 = vadd.f32 %v1133, %v484
    %1145 = vrot.lane.b32.xlu0 %v1143, 64
    %v1146 = vpop.permute.xlu0 %1145
    %v1148 = vmul.f32 %v1142, %v1146
    %1150 = vrot.lane.b32.xlu0 %v1148, 64
    %v1151 = vpop.permute.xlu0 %1150
    %v1153 = vadd.f32 %v1059, %v1151
    %v1154 = vtanh.pop %v1153
    %v1155 = vsub.f32 1.0, %v1142
    %1157 = vrot.lane.b32.xlu0 %v1154, 96
    %v1158 = vpop.permute.xlu0 %1157
    %v1160 = vmul.f32 %v1155, %v1158
    %v1161 = vmul.f32 %v1142, %v1052
    %v1162 = vadd.f32 %v1160, %v1161
    %1164 = vrot.lane.b32.xlu0 %v1058, 96
    %v1165 = vpop.permute.xlu0 %1164
    %v1166 = vsel %vm397, %v1165, 0
    %1168 = vmatprep.subr.mxu0 0.0
    %1169 = vmatpush1.msra.mxu0 %v380
    %1170 = vmatprep.subr.mxu0 0.0
    %1171 = vmatpush1.msra.mxu0 %v381
    %1172 = vmatprep.subr.mxu0 0.0
    %1173 = vmatpush1.msra.mxu0 %v382
    %1174 = vmatprep.subr.mxu0 0.0
    %1175 = vmatpush1.msra.mxu0 %v383
    %1176 = vmatprep.subr.mxu0 0.0
    %1177 = vmatpush1.msra.mxu0 0.0
    %1178 = vmatprep.subr.mxu0 0.0
    %1179 = vmatpush1.msra.mxu0 0.0
    %1180 = vmatprep.subr.mxu0 0.0
    %1181 = vmatpush1.msra.mxu0 0.0
    %1182 = vmatprep.subr.mxu0 0.0
    %1183 = vmatpush1.msra.mxu0 0.0
    %1184 = vmatprep.subr.mxu0 0.0
    %1185 = vmatpush1.msra.mxu0 0.0
    %1186 = vmatprep.subr.mxu0 0.0
    %1187 = vmatpush1.msra.mxu0 0.0
    %1188 = vmatprep.subr.mxu0 0.0
    %1189 = vmatpush1.msra.mxu0 0.0
    %1190 = vmatprep.subr.mxu0 0.0
    %1191 = vmatpush1.msra.mxu0 0.0
    %1192 = vmatprep.subr.mxu0 0.0
    %1193 = vmatpush1.msra.mxu0 0.0
    %1194 = vmatprep.subr.mxu0 0.0
    %1195 = vmatpush1.msra.mxu0 0.0
    %1196 = vmatprep.subr.mxu0 0.0
    %1197 = vmatpush1.msra.mxu0 0.0
    %1198 = vmatprep.subr.mxu0 0.0
    %1199 = vmatpush1.msra.mxu0 0.0
    %1200 = vmatprep.subr.mxu0 0.0
    %1201 = vmatpush1.msra.mxu0 0.0
    %1202 = vmatprep.subr.mxu0 0.0
    %1203 = vmatpush1.msra.mxu0 0.0
    %1204 = vmatprep.subr.mxu0 0.0
    %1205 = vmatpush1.msra.mxu0 0.0
    %1206 = vmatprep.subr.mxu0 0.0
    %1207 = vmatpush1.msra.mxu0 0.0
    %1208 = vmatprep.subr.mxu0 0.0
    %1209 = vmatpush1.msra.mxu0 0.0
    %1210 = vmatprep.subr.mxu0 0.0
    %1211 = vmatpush1.msra.mxu0 0.0
    %1212 = vmatprep.subr.mxu0 0.0
    %1213 = vmatpush1.msra.mxu0 0.0
    %1214 = vmatprep.subr.mxu0 0.0
    %1215 = vmatpush1.msra.mxu0 0.0
    %1216 = vmatprep.subr.mxu0 0.0
    %1217 = vmatpush1.msra.mxu0 0.0
    %1218 = vmatprep.subr.mxu0 0.0
    %1219 = vmatpush1.msra.mxu0 0.0
    %1220 = vmatprep.subr.mxu0 0.0
    %1221 = vmatpush1.msra.mxu0 0.0
    %1222 = vmatprep.subr.mxu0 0.0
    %1223 = vmatpush1.msra.mxu0 0.0
    %1224 = vmatprep.subr.mxu0 0.0
    %1225 = vmatpush1.msra.mxu0 0.0
    %1226 = vmatprep.subr.mxu0 0.0
    %1227 = vmatpush1.msra.mxu0 0.0
    %1228 = vmatprep.subr.mxu0 0.0
    %1229 = vmatpush1.msra.mxu0 0.0
    %1230 = vmatprep.subr.mxu0 0.0
    %1231 = vmatpush1.msra.mxu0 0.0
    %1232 = vmatprep.mubr.f32.mxu0 0.0
    %1233 = vmatmul.mubr.f32.gmra.mrb[0].mxu0 %v1166
    %v1234 = vpop.f32.mrb[0].mxu0
    %v1235 = vadd.f32 0.0, %v1234
    %v1236 = vpop.f32.mrb[0].mxu0
    %1237 = vdwg.mxu0
    %v1238 = vadd.f32 %v1060, %v1235
    %v1239 = vxor.u32 %v1238, 2147483648
    %v1240 = vmul.f32 %v1239, 1.442695
    %v1241 = vpow.pop %v1240
    %v1242 = vadd.f32 %v1241, 1.0
    %v1243 = vrcp.pop %v1242
    %v1244 = vmul.f32 1.0, %v1243
    %v1245 = vadd.f32 %v1235, %v589
    %1247 = vrot.lane.b32.xlu0 %v1245, 64
    %v1248 = vpop.permute.xlu0 %1247
    %v1250 = vmul.f32 %v1244, %v1248
    %1252 = vrot.lane.b32.xlu0 %v1250, 64
    %v1253 = vpop.permute.xlu0 %1252
    %v1255 = vadd.f32 %v1060, %v1253
    %v1256 = vtanh.pop %v1255
    %v1257 = vsub.f32 1.0, %v1244
    %1259 = vrot.lane.b32.xlu0 %v1256, 96
    %v1260 = vpop.permute.xlu0 %1259
    %v1262 = vmul.f32 %v1257, %v1260
    %v1263 = vmul.f32 %v1244, %v1058
    %v1264 = vadd.f32 %v1262, %v1263
    %v1265 = vsel %vm390, 1, 0
    %1266 = vset.pattern.permute.xlu0 0
    %1267 = vperm.xlu0 %1266, %v1265
    %v1268 = vpop.permute.xlu0 %1267
    %vm1269 = vcmp.eq.s32.totalorder %v1268, 1
    %v1270 = vsel %vm1269, %v1162, %v1052
    %v1271 = vsel %vm391, 1, 0
    %1272 = vset.pattern.permute.xlu0 0
    %1273 = vperm.xlu0 %1272, %v1271
    %v1274 = vpop.permute.xlu0 %1273
    %vm1275 = vcmp.eq.s32.totalorder %v1274, 1
    %v1276 = vsel %vm1275, %v1264, %v1058
    %v1277 = vld [vmem:[#allocation2 + $0x20] sm:$0xff]
    %v1278 = vld [vmem:[#allocation3 + $0x18] sm:$0xff]
    %1280 = vrot.lane.b32.xlu0 %v1270, 96
    %v1281 = vpop.permute.xlu0 %1280
    %v1282 = vsel %vm397, %v1281, 0
    %1284 = vmatprep.subr.mxu0 0.0
    %1285 = vmatpush1.msra.mxu0 %v376
    %1286 = vmatprep.subr.mxu0 0.0
    %1287 = vmatpush1.msra.mxu0 %v377
    %1288 = vmatprep.subr.mxu0 0.0
    %1289 = vmatpush1.msra.mxu0 %v378
    %1290 = vmatprep.subr.mxu0 0.0
    %1291 = vmatpush1.msra.mxu0 %v379
    %1292 = vmatprep.subr.mxu0 0.0
    %1293 = vmatpush1.msra.mxu0 0.0
    %1294 = vmatprep.subr.mxu0 0.0
    %1295 = vmatpush1.msra.mxu0 0.0
    %1296 = vmatprep.subr.mxu0 0.0
    %1297 = vmatpush1.msra.mxu0 0.0
    %1298 = vmatprep.subr.mxu0 0.0
    %1299 = vmatpush1.msra.mxu0 0.0
    %1300 = vmatprep.subr.mxu0 0.0
    %1301 = vmatpush1.msra.mxu0 0.0
    %1302 = vmatprep.subr.mxu0 0.0
    %1303 = vmatpush1.msra.mxu0 0.0
    %1304 = vmatprep.subr.mxu0 0.0
    %1305 = vmatpush1.msra.mxu0 0.0
    %1306 = vmatprep.subr.mxu0 0.0
    %1307 = vmatpush1.msra.mxu0 0.0
    %1308 = vmatprep.subr.mxu0 0.0
    %1309 = vmatpush1.msra.mxu0 0.0
    %1310 = vmatprep.subr.mxu0 0.0
    %1311 = vmatpush1.msra.mxu0 0.0
    %1312 = vmatprep.subr.mxu0 0.0
    %1313 = vmatpush1.msra.mxu0 0.0
    %1314 = vmatprep.subr.mxu0 0.0
    %1315 = vmatpush1.msra.mxu0 0.0
    %1316 = vmatprep.subr.mxu0 0.0
    %1317 = vmatpush1.msra.mxu0 0.0
    %1318 = vmatprep.subr.mxu0 0.0
    %1319 = vmatpush1.msra.mxu0 0.0
    %1320 = vmatprep.subr.mxu0 0.0
    %1321 = vmatpush1.msra.mxu0 0.0
    %1322 = vmatprep.subr.mxu0 0.0
    %1323 = vmatpush1.msra.mxu0 0.0
    %1324 = vmatprep.subr.mxu0 0.0
    %1325 = vmatpush1.msra.mxu0 0.0
    %1326 = vmatprep.subr.mxu0 0.0
    %1327 = vmatpush1.msra.mxu0 0.0
    %1328 = vmatprep.subr.mxu0 0.0
    %1329 = vmatpush1.msra.mxu0 0.0
    %1330 = vmatprep.subr.mxu0 0.0
    %1331 = vmatpush1.msra.mxu0 0.0
    %1332 = vmatprep.subr.mxu0 0.0
    %1333 = vmatpush1.msra.mxu0 0.0
    %1334 = vmatprep.subr.mxu0 0.0
    %1335 = vmatpush1.msra.mxu0 0.0
    %1336 = vmatprep.subr.mxu0 0.0
    %1337 = vmatpush1.msra.mxu0 0.0
    %1338 = vmatprep.subr.mxu0 0.0
    %1339 = vmatpush1.msra.mxu0 0.0
    %1340 = vmatprep.subr.mxu0 0.0
    %1341 = vmatpush1.msra.mxu0 0.0
    %1342 = vmatprep.subr.mxu0 0.0
    %1343 = vmatpush1.msra.mxu0 0.0
    %1344 = vmatprep.subr.mxu0 0.0
    %1345 = vmatpush1.msra.mxu0 0.0
    %1346 = vmatprep.subr.mxu0 0.0
    %1347 = vmatpush1.msra.mxu0 0.0
    %1348 = vmatprep.mubr.f32.mxu0 0.0
    %1349 = vmatmul.mubr.f32.gmra.mrb[0].mxu0 %v1282
    %v1350 = vpop.f32.mrb[0].mxu0
    %v1351 = vadd.f32 0.0, %v1350
    %v1352 = vpop.f32.mrb[0].mxu0
    %1353 = vdwg.mxu0
    %v1354 = vadd.f32 %v1277, %v1351
    %v1355 = vxor.u32 %v1354, 2147483648
    %v1356 = vmul.f32 %v1355, 1.442695
    %v1357 = vpow.pop %v1356
    %v1358 = vadd.f32 %v1357, 1.0
    %v1359 = vrcp.pop %v1358
    %v1360 = vmul.f32 1.0, %v1359
    %v1361 = vadd.f32 %v1351, %v484
    %1363 = vrot.lane.b32.xlu0 %v1361, 64
    %v1364 = vpop.permute.xlu0 %1363
    %v1366 = vmul.f32 %v1360, %v1364
    %1368 = vrot.lane.b32.xlu0 %v1366, 64
    %v1369 = vpop.permute.xlu0 %1368
    %v1371 = vadd.f32 %v1277, %v1369
    %v1372 = vtanh.pop %v1371
    %v1373 = vsub.f32 1.0, %v1360
    %1375 = vrot.lane.b32.xlu0 %v1372, 96
    %v1376 = vpop.permute.xlu0 %1375
    %v1378 = vmul.f32 %v1373, %v1376
    %v1379 = vmul.f32 %v1360, %v1270
    %v1380 = vadd.f32 %v1378, %v1379
    %1382 = vrot.lane.b32.xlu0 %v1276, 96
    %v1383 = vpop.permute.xlu0 %1382
    %v1384 = vsel %vm397, %v1383, 0
    %1386 = vmatprep.subr.mxu0 0.0
    %1387 = vmatpush1.msra.mxu0 %v380
    %1388 = vmatprep.subr.mxu0 0.0
    %1389 = vmatpush1.msra.mxu0 %v381
    %1390 = vmatprep.subr.mxu0 0.0
    %1391 = vmatpush1.msra.mxu0 %v382
    %1392 = vmatprep.subr.mxu0 0.0
    %1393 = vmatpush1.msra.mxu0 %v383
    %1394 = vmatprep.subr.mxu0 0.0
    %1395 = vmatpush1.msra.mxu0 0.0
    %1396 = vmatprep.subr.mxu0 0.0
    %1397 = vmatpush1.msra.mxu0 0.0
    %1398 = vmatprep.subr.mxu0 0.0
    %1399 = vmatpush1.msra.mxu0 0.0
    %1400 = vmatprep.subr.mxu0 0.0
    %1401 = vmatpush1.msra.mxu0 0.0
    %1402 = vmatprep.subr.mxu0 0.0
    %1403 = vmatpush1.msra.mxu0 0.0
    %1404 = vmatprep.subr.mxu0 0.0
    %1405 = vmatpush1.msra.mxu0 0.0
    %1406 = vmatprep.subr.mxu0 0.0
    %1407 = vmatpush1.msra.mxu0 0.0
    %1408 = vmatprep.subr.mxu0 0.0
    %1409 = vmatpush1.msra.mxu0 0.0
    %1410 = vmatprep.subr.mxu0 0.0
    %1411 = vmatpush1.msra.mxu0 0.0
    %1412 = vmatprep.subr.mxu0 0.0
    %1413 = vmatpush1.msra.mxu0 0.0
    %1414 = vmatprep.subr.mxu0 0.0
    %1415 = vmatpush1.msra.mxu0 0.0
    %1416 = vmatprep.subr.mxu0 0.0
    %1417 = vmatpush1.msra.mxu0 0.0
    %1418 = vmatprep.subr.mxu0 0.0
    %1419 = vmatpush1.msra.mxu0 0.0
    %1420 = vmatprep.subr.mxu0 0.0
    %1421 = vmatpush1.msra.mxu0 0.0
    %1422 = vmatprep.subr.mxu0 0.0
    %1423 = vmatpush1.msra.mxu0 0.0
    %1424 = vmatprep.subr.mxu0 0.0
    %1425 = vmatpush1.msra.mxu0 0.0
    %1426 = vmatprep.subr.mxu0 0.0
    %1427 = vmatpush1.msra.mxu0 0.0
    %1428 = vmatprep.subr.mxu0 0.0
    %1429 = vmatpush1.msra.mxu0 0.0
    %1430 = vmatprep.subr.mxu0 0.0
    %1431 = vmatpush1.msra.mxu0 0.0
    %1432 = vmatprep.subr.mxu0 0.0
    %1433 = vmatpush1.msra.mxu0 0.0
    %1434 = vmatprep.subr.mxu0 0.0
    %1435 = vmatpush1.msra.mxu0 0.0
    %1436 = vmatprep.subr.mxu0 0.0
    %1437 = vmatpush1.msra.mxu0 0.0
    %1438 = vmatprep.subr.mxu0 0.0
    %1439 = vmatpush1.msra.mxu0 0.0
    %1440 = vmatprep.subr.mxu0 0.0
    %1441 = vmatpush1.msra.mxu0 0.0
    %1442 = vmatprep.subr.mxu0 0.0
    %1443 = vmatpush1.msra.mxu0 0.0
    %1444 = vmatprep.subr.mxu0 0.0
    %1445 = vmatpush1.msra.mxu0 0.0
    %1446 = vmatprep.subr.mxu0 0.0
    %1447 = vmatpush1.msra.mxu0 0.0
    %1448 = vmatprep.subr.mxu0 0.0
    %1449 = vmatpush1.msra.mxu0 0.0
    %1450 = vmatprep.mubr.f32.mxu0 0.0
    %1451 = vmatmul.mubr.f32.gmra.mrb[0].mxu0 %v1384
    %v1452 = vpop.f32.mrb[0].mxu0
    %v1453 = vadd.f32 0.0, %v1452
    %v1454 = vpop.f32.mrb[0].mxu0
    %1455 = vdwg.mxu0
    %v1456 = vadd.f32 %v1278, %v1453
    %v1457 = vxor.u32 %v1456, 2147483648
    %v1458 = vmul.f32 %v1457, 1.442695
    %v1459 = vpow.pop %v1458
    %v1460 = vadd.f32 %v1459, 1.0
    %v1461 = vrcp.pop %v1460
    %v1462 = vmul.f32 1.0, %v1461
    %v1463 = vadd.f32 %v1453, %v589
    %1465 = vrot.lane.b32.xlu0 %v1463, 64
    %v1466 = vpop.permute.xlu0 %1465
    %v1468 = vmul.f32 %v1462, %v1466
    %1470 = vrot.lane.b32.xlu0 %v1468, 64
    %v1471 = vpop.permute.xlu0 %1470
    %v1473 = vadd.f32 %v1278, %v1471
    %v1474 = vtanh.pop %v1473
    %v1475 = vsub.f32 1.0, %v1462
    %1477 = vrot.lane.b32.xlu0 %v1474, 96
    %v1478 = vpop.permute.xlu0 %1477
    %v1480 = vmul.f32 %v1475, %v1478
    %v1481 = vmul.f32 %v1462, %v1276
    %v1482 = vadd.f32 %v1480, %v1481
    %v1483 = vsel %vm1275, %v1380, %v1270
    %v1484 = vsel %vm1269, %v1482, %v1276
    %v1485 = vld [vmem:[#allocation2 + $0x28] sm:$0xff]
    %v1486 = vld [vmem:[#allocation3 + $0x10] sm:$0xff]
    %1488 = vrot.lane.b32.xlu0 %v1483, 96
    %v1489 = vpop.permute.xlu0 %1488
    %v1490 = vsel %vm397, %v1489, 0
    %1492 = vmatprep.subr.mxu0 0.0
    %1493 = vmatpush1.msra.mxu0 %v376
    %1494 = vmatprep.subr.mxu0 0.0
    %1495 = vmatpush1.msra.mxu0 %v377
    %1496 = vmatprep.subr.mxu0 0.0
    %1497 = vmatpush1.msra.mxu0 %v378
    %1498 = vmatprep.subr.mxu0 0.0
    %1499 = vmatpush1.msra.mxu0 %v379
    %1500 = vmatprep.subr.mxu0 0.0
    %1501 = vmatpush1.msra.mxu0 0.0
    %1502 = vmatprep.subr.mxu0 0.0
    %1503 = vmatpush1.msra.mxu0 0.0
    %1504 = vmatprep.subr.mxu0 0.0
    %1505 = vmatpush1.msra.mxu0 0.0
    %1506 = vmatprep.subr.mxu0 0.0
    %1507 = vmatpush1.msra.mxu0 0.0
    %1508 = vmatprep.subr.mxu0 0.0
    %1509 = vmatpush1.msra.mxu0 0.0
    %1510 = vmatprep.subr.mxu0 0.0
    %1511 = vmatpush1.msra.mxu0 0.0
    %1512 = vmatprep.subr.mxu0 0.0
    %1513 = vmatpush1.msra.mxu0 0.0
    %1514 = vmatprep.subr.mxu0 0.0
    %1515 = vmatpush1.msra.mxu0 0.0
    %1516 = vmatprep.subr.mxu0 0.0
    %1517 = vmatpush1.msra.mxu0 0.0
    %1518 = vmatprep.subr.mxu0 0.0
    %1519 = vmatpush1.msra.mxu0 0.0
    %1520 = vmatprep.subr.mxu0 0.0
    %1521 = vmatpush1.msra.mxu0 0.0
    %1522 = vmatprep.subr.mxu0 0.0
    %1523 = vmatpush1.msra.mxu0 0.0
    %1524 = vmatprep.subr.mxu0 0.0
    %1525 = vmatpush1.msra.mxu0 0.0
    %1526 = vmatprep.subr.mxu0 0.0
    %1527 = vmatpush1.msra.mxu0 0.0
    %1528 = vmatprep.subr.mxu0 0.0
    %1529 = vmatpush1.msra.mxu0 0.0
    %1530 = vmatprep.subr.mxu0 0.0
    %1531 = vmatpush1.msra.mxu0 0.0
    %1532 = vmatprep.subr.mxu0 0.0
    %1533 = vmatpush1.msra.mxu0 0.0
    %1534 = vmatprep.subr.mxu0 0.0
    %1535 = vmatpush1.msra.mxu0 0.0
    %1536 = vmatprep.subr.mxu0 0.0
    %1537 = vmatpush1.msra.mxu0 0.0
    %1538 = vmatprep.subr.mxu0 0.0
    %1539 = vmatpush1.msra.mxu0 0.0
    %1540 = vmatprep.subr.mxu0 0.0
    %1541 = vmatpush1.msra.mxu0 0.0
    %1542 = vmatprep.subr.mxu0 0.0
    %1543 = vmatpush1.msra.mxu0 0.0
    %1544 = vmatprep.subr.mxu0 0.0
    %1545 = vmatpush1.msra.mxu0 0.0
    %1546 = vmatprep.subr.mxu0 0.0
    %1547 = vmatpush1.msra.mxu0 0.0
    %1548 = vmatprep.subr.mxu0 0.0
    %1549 = vmatpush1.msra.mxu0 0.0
    %1550 = vmatprep.subr.mxu0 0.0
    %1551 = vmatpush1.msra.mxu0 0.0
    %1552 = vmatprep.subr.mxu0 0.0
    %1553 = vmatpush1.msra.mxu0 0.0
    %1554 = vmatprep.subr.mxu0 0.0
    %1555 = vmatpush1.msra.mxu0 0.0
    %1556 = vmatprep.mubr.f32.mxu0 0.0
    %1557 = vmatmul.mubr.f32.gmra.mrb[0].mxu0 %v1490
    %v1558 = vpop.f32.mrb[0].mxu0
    %v1559 = vadd.f32 0.0, %v1558
    %v1560 = vpop.f32.mrb[0].mxu0
    %1561 = vdwg.mxu0
    %v1562 = vadd.f32 %v1485, %v1559
    %v1563 = vxor.u32 %v1562, 2147483648
    %v1564 = vmul.f32 %v1563, 1.442695
    %v1565 = vpow.pop %v1564
    %v1566 = vadd.f32 %v1565, 1.0
    %v1567 = vrcp.pop %v1566
    %v1568 = vmul.f32 1.0, %v1567
    %v1569 = vadd.f32 %v1559, %v484
    %1571 = vrot.lane.b32.xlu0 %v1569, 64
    %v1572 = vpop.permute.xlu0 %1571
    %v1574 = vmul.f32 %v1568, %v1572
    %1576 = vrot.lane.b32.xlu0 %v1574, 64
    %v1577 = vpop.permute.xlu0 %1576
    %v1579 = vadd.f32 %v1485, %v1577
    %v1580 = vtanh.pop %v1579
    %v1581 = vsub.f32 1.0, %v1568
    %1583 = vrot.lane.b32.xlu0 %v1580, 96
    %v1584 = vpop.permute.xlu0 %1583
    %v1586 = vmul.f32 %v1581, %v1584
    %v1587 = vmul.f32 %v1568, %v1483
    %v1588 = vadd.f32 %v1586, %v1587
    %1590 = vrot.lane.b32.xlu0 %v1484, 96
    %v1591 = vpop.permute.xlu0 %1590
    %v1592 = vsel %vm397, %v1591, 0
    %1594 = vmatprep.subr.mxu0 0.0
    %1595 = vmatpush1.msra.mxu0 %v380
    %1596 = vmatprep.subr.mxu0 0.0
    %1597 = vmatpush1.msra.mxu0 %v381
    %1598 = vmatprep.subr.mxu0 0.0
    %1599 = vmatpush1.msra.mxu0 %v382
    %1600 = vmatprep.subr.mxu0 0.0
    %1601 = vmatpush1.msra.mxu0 %v383
    %1602 = vmatprep.subr.mxu0 0.0
    %1603 = vmatpush1.msra.mxu0 0.0
    %1604 = vmatprep.subr.mxu0 0.0
    %1605 = vmatpush1.msra.mxu0 0.0
    %1606 = vmatprep.subr.mxu0 0.0
    %1607 = vmatpush1.msra.mxu0 0.0
    %1608 = vmatprep.subr.mxu0 0.0
    %1609 = vmatpush1.msra.mxu0 0.0
    %1610 = vmatprep.subr.mxu0 0.0
    %1611 = vmatpush1.msra.mxu0 0.0
    %1612 = vmatprep.subr.mxu0 0.0
    %1613 = vmatpush1.msra.mxu0 0.0
    %1614 = vmatprep.subr.mxu0 0.0
    %1615 = vmatpush1.msra.mxu0 0.0
    %1616 = vmatprep.subr.mxu0 0.0
    %1617 = vmatpush1.msra.mxu0 0.0
    %1618 = vmatprep.subr.mxu0 0.0
    %1619 = vmatpush1.msra.mxu0 0.0
    %1620 = vmatprep.subr.mxu0 0.0
    %1621 = vmatpush1.msra.mxu0 0.0
    %1622 = vmatprep.subr.mxu0 0.0
    %1623 = vmatpush1.msra.mxu0 0.0
    %1624 = vmatprep.subr.mxu0 0.0
    %1625 = vmatpush1.msra.mxu0 0.0
    %1626 = vmatprep.subr.mxu0 0.0
    %1627 = vmatpush1.msra.mxu0 0.0
    %1628 = vmatprep.subr.mxu0 0.0
    %1629 = vmatpush1.msra.mxu0 0.0
    %1630 = vmatprep.subr.mxu0 0.0
    %1631 = vmatpush1.msra.mxu0 0.0
    %1632 = vmatprep.subr.mxu0 0.0
    %1633 = vmatpush1.msra.mxu0 0.0
    %1634 = vmatprep.subr.mxu0 0.0
    %1635 = vmatpush1.msra.mxu0 0.0
    %1636 = vmatprep.subr.mxu0 0.0
    %1637 = vmatpush1.msra.mxu0 0.0
    %1638 = vmatprep.subr.mxu0 0.0
    %1639 = vmatpush1.msra.mxu0 0.0
    %1640 = vmatprep.subr.mxu0 0.0
    %1641 = vmatpush1.msra.mxu0 0.0
    %1642 = vmatprep.subr.mxu0 0.0
    %1643 = vmatpush1.msra.mxu0 0.0
    %1644 = vmatprep.subr.mxu0 0.0
    %1645 = vmatpush1.msra.mxu0 0.0
    %1646 = vmatprep.subr.mxu0 0.0
    %1647 = vmatpush1.msra.mxu0 0.0
    %1648 = vmatprep.subr.mxu0 0.0
    %1649 = vmatpush1.msra.mxu0 0.0
    %1650 = vmatprep.subr.mxu0 0.0
    %1651 = vmatpush1.msra.mxu0 0.0
    %1652 = vmatprep.subr.mxu0 0.0
    %1653 = vmatpush1.msra.mxu0 0.0
    %1654 = vmatprep.subr.mxu0 0.0
    %1655 = vmatpush1.msra.mxu0 0.0
    %1656 = vmatprep.subr.mxu0 0.0
    %1657 = vmatpush1.msra.mxu0 0.0
    %1658 = vmatprep.mubr.f32.mxu0 0.0
    %1659 = vmatmul.mubr.f32.gmra.mrb[0].mxu0 %v1592
    %v1660 = vpop.f32.mrb[0].mxu0
    %v1661 = vadd.f32 0.0, %v1660
    %v1662 = vpop.f32.mrb[0].mxu0
    %1663 = vdwg.mxu0
    %v1664 = vadd.f32 %v1486, %v1661
    %v1665 = vxor.u32 %v1664, 2147483648
    %v1666 = vmul.f32 %v1665, 1.442695
    %v1667 = vpow.pop %v1666
    %v1668 = vadd.f32 %v1667, 1.0
    %v1669 = vrcp.pop %v1668
    %v1670 = vmul.f32 1.0, %v1669
    %v1671 = vadd.f32 %v1661, %v589
    %1673 = vrot.lane.b32.xlu0 %v1671, 64
    %v1674 = vpop.permute.xlu0 %1673
    %v1676 = vmul.f32 %v1670, %v1674
    %1678 = vrot.lane.b32.xlu0 %v1676, 64
    %v1679 = vpop.permute.xlu0 %1678
    %v1681 = vadd.f32 %v1486, %v1679
    %v1682 = vtanh.pop %v1681
    %v1683 = vsub.f32 1.0, %v1670
    %1685 = vrot.lane.b32.xlu0 %v1682, 96
    %v1686 = vpop.permute.xlu0 %1685
    %v1688 = vmul.f32 %v1683, %v1686
    %v1689 = vmul.f32 %v1670, %v1484
    %v1690 = vadd.f32 %v1688, %v1689
    %v1691 = vsel %vm1057, %v1588, %v1483
    %v1692 = vsel %vm1051, %v1690, %v1484
    %v1693 = vld [vmem:[#allocation2 + $0x30] sm:$0xff]
    %v1694 = vld [vmem:[#allocation3 + $0x8] sm:$0xff]
    %1696 = vrot.lane.b32.xlu0 %v1691, 96
    %v1697 = vpop.permute.xlu0 %1696
    %v1698 = vsel %vm397, %v1697, 0
    %1700 = vmatprep.subr.mxu0 0.0
    %1701 = vmatpush1.msra.mxu0 %v376
    %1702 = vmatprep.subr.mxu0 0.0
    %1703 = vmatpush1.msra.mxu0 %v377
    %1704 = vmatprep.subr.mxu0 0.0
    %1705 = vmatpush1.msra.mxu0 %v378
    %1706 = vmatprep.subr.mxu0 0.0
    %1707 = vmatpush1.msra.mxu0 %v379
    %1708 = vmatprep.subr.mxu0 0.0
    %1709 = vmatpush1.msra.mxu0 0.0
    %1710 = vmatprep.subr.mxu0 0.0
    %1711 = vmatpush1.msra.mxu0 0.0
    %1712 = vmatprep.subr.mxu0 0.0
    %1713 = vmatpush1.msra.mxu0 0.0
    %1714 = vmatprep.subr.mxu0 0.0
    %1715 = vmatpush1.msra.mxu0 0.0
    %1716 = vmatprep.subr.mxu0 0.0
    %1717 = vmatpush1.msra.mxu0 0.0
    %1718 = vmatprep.subr.mxu0 0.0
    %1719 = vmatpush1.msra.mxu0 0.0
    %1720 = vmatprep.subr.mxu0 0.0
    %1721 = vmatpush1.msra.mxu0 0.0
    %1722 = vmatprep.subr.mxu0 0.0
    %1723 = vmatpush1.msra.mxu0 0.0
    %1724 = vmatprep.subr.mxu0 0.0
    %1725 = vmatpush1.msra.mxu0 0.0
    %1726 = vmatprep.subr.mxu0 0.0
    %1727 = vmatpush1.msra.mxu0 0.0
    %1728 = vmatprep.subr.mxu0 0.0
    %1729 = vmatpush1.msra.mxu0 0.0
    %1730 = vmatprep.subr.mxu0 0.0
    %1731 = vmatpush1.msra.mxu0 0.0
    %1732 = vmatprep.subr.mxu0 0.0
    %1733 = vmatpush1.msra.mxu0 0.0
    %1734 = vmatprep.subr.mxu0 0.0
    %1735 = vmatpush1.msra.mxu0 0.0
    %1736 = vmatprep.subr.mxu0 0.0
    %1737 = vmatpush1.msra.mxu0 0.0
    %1738 = vmatprep.subr.mxu0 0.0
    %1739 = vmatpush1.msra.mxu0 0.0
    %1740 = vmatprep.subr.mxu0 0.0
    %1741 = vmatpush1.msra.mxu0 0.0
    %1742 = vmatprep.subr.mxu0 0.0
    %1743 = vmatpush1.msra.mxu0 0.0
    %1744 = vmatprep.subr.mxu0 0.0
    %1745 = vmatpush1.msra.mxu0 0.0
    %1746 = vmatprep.subr.mxu0 0.0
    %1747 = vmatpush1.msra.mxu0 0.0
    %1748 = vmatprep.subr.mxu0 0.0
    %1749 = vmatpush1.msra.mxu0 0.0
    %1750 = vmatprep.subr.mxu0 0.0
    %1751 = vmatpush1.msra.mxu0 0.0
    %1752 = vmatprep.subr.mxu0 0.0
    %1753 = vmatpush1.msra.mxu0 0.0
    %1754 = vmatprep.subr.mxu0 0.0
    %1755 = vmatpush1.msra.mxu0 0.0
    %1756 = vmatprep.subr.mxu0 0.0
    %1757 = vmatpush1.msra.mxu0 0.0
    %1758 = vmatprep.subr.mxu0 0.0
    %1759 = vmatpush1.msra.mxu0 0.0
    %1760 = vmatprep.subr.mxu0 0.0
    %1761 = vmatpush1.msra.mxu0 0.0
    %1762 = vmatprep.subr.mxu0 0.0
    %1763 = vmatpush1.msra.mxu0 0.0
    %1764 = vmatprep.mubr.f32.mxu0 0.0
    %1765 = vmatmul.mubr.f32.gmra.mrb[0].mxu0 %v1698
    %v1766 = vpop.f32.mrb[0].mxu0
    %v1767 = vadd.f32 0.0, %v1766
    %v1768 = vpop.f32.mrb[0].mxu0
    %1769 = vdwg.mxu0
    %v1770 = vadd.f32 %v1693, %v1767
    %v1771 = vxor.u32 %v1770, 2147483648
    %v1772 = vmul.f32 %v1771, 1.442695
    %v1773 = vpow.pop %v1772
    %v1774 = vadd.f32 %v1773, 1.0
    %v1775 = vrcp.pop %v1774
    %v1776 = vmul.f32 1.0, %v1775
    %v1777 = vadd.f32 %v1767, %v484
    %1779 = vrot.lane.b32.xlu0 %v1777, 64
    %v1780 = vpop.permute.xlu0 %1779
    %v1782 = vmul.f32 %v1776, %v1780
    %1784 = vrot.lane.b32.xlu0 %v1782, 64
    %v1785 = vpop.permute.xlu0 %1784
    %v1787 = vadd.f32 %v1693, %v1785
    %v1788 = vtanh.pop %v1787
    %v1789 = vsub.f32 1.0, %v1776
    %1791 = vrot.lane.b32.xlu0 %v1788, 96
    %v1792 = vpop.permute.xlu0 %1791
    %v1794 = vmul.f32 %v1789, %v1792
    %v1795 = vmul.f32 %v1776, %v1691
    %v1796 = vadd.f32 %v1794, %v1795
    %1798 = vrot.lane.b32.xlu0 %v1692, 96
    %v1799 = vpop.permute.xlu0 %1798
    %v1800 = vsel %vm397, %v1799, 0
    %1802 = vmatprep.subr.mxu0 0.0
    %1803 = vmatpush1.msra.mxu0 %v380
    %1804 = vmatprep.subr.mxu0 0.0
    %1805 = vmatpush1.msra.mxu0 %v381
    %1806 = vmatprep.subr.mxu0 0.0
    %1807 = vmatpush1.msra.mxu0 %v382
    %1808 = vmatprep.subr.mxu0 0.0
    %1809 = vmatpush1.msra.mxu0 %v383
    %1810 = vmatprep.subr.mxu0 0.0
    %1811 = vmatpush1.msra.mxu0 0.0
    %1812 = vmatprep.subr.mxu0 0.0
    %1813 = vmatpush1.msra.mxu0 0.0
    %1814 = vmatprep.subr.mxu0 0.0
    %1815 = vmatpush1.msra.mxu0 0.0
    %1816 = vmatprep.subr.mxu0 0.0
    %1817 = vmatpush1.msra.mxu0 0.0
    %1818 = vmatprep.subr.mxu0 0.0
    %1819 = vmatpush1.msra.mxu0 0.0
    %1820 = vmatprep.subr.mxu0 0.0
    %1821 = vmatpush1.msra.mxu0 0.0
    %1822 = vmatprep.subr.mxu0 0.0
    %1823 = vmatpush1.msra.mxu0 0.0
    %1824 = vmatprep.subr.mxu0 0.0
    %1825 = vmatpush1.msra.mxu0 0.0
    %1826 = vmatprep.subr.mxu0 0.0
    %1827 = vmatpush1.msra.mxu0 0.0
    %1828 = vmatprep.subr.mxu0 0.0
    %1829 = vmatpush1.msra.mxu0 0.0
    %1830 = vmatprep.subr.mxu0 0.0
    %1831 = vmatpush1.msra.mxu0 0.0
    %1832 = vmatprep.subr.mxu0 0.0
    %1833 = vmatpush1.msra.mxu0 0.0
    %1834 = vmatprep.subr.mxu0 0.0
    %1835 = vmatpush1.msra.mxu0 0.0
    %1836 = vmatprep.subr.mxu0 0.0
    %1837 = vmatpush1.msra.mxu0 0.0
    %1838 = vmatprep.subr.mxu0 0.0
    %1839 = vmatpush1.msra.mxu0 0.0
    %1840 = vmatprep.subr.mxu0 0.0
    %1841 = vmatpush1.msra.mxu0 0.0
    %1842 = vmatprep.subr.mxu0 0.0
    %1843 = vmatpush1.msra.mxu0 0.0
    %1844 = vmatprep.subr.mxu0 0.0
    %1845 = vmatpush1.msra.mxu0 0.0
    %1846 = vmatprep.subr.mxu0 0.0
    %1847 = vmatpush1.msra.mxu0 0.0
    %1848 = vmatprep.subr.mxu0 0.0
    %1849 = vmatpush1.msra.mxu0 0.0
    %1850 = vmatprep.subr.mxu0 0.0
    %1851 = vmatpush1.msra.mxu0 0.0
    %1852 = vmatprep.subr.mxu0 0.0
    %1853 = vmatpush1.msra.mxu0 0.0
    %1854 = vmatprep.subr.mxu0 0.0
    %1855 = vmatpush1.msra.mxu0 0.0
    %1856 = vmatprep.subr.mxu0 0.0
    %1857 = vmatpush1.msra.mxu0 0.0
    %1858 = vmatprep.subr.mxu0 0.0
    %1859 = vmatpush1.msra.mxu0 0.0
    %1860 = vmatprep.subr.mxu0 0.0
    %1861 = vmatpush1.msra.mxu0 0.0
    %1862 = vmatprep.subr.mxu0 0.0
    %1863 = vmatpush1.msra.mxu0 0.0
    %1864 = vmatprep.subr.mxu0 0.0
    %1865 = vmatpush1.msra.mxu0 0.0
    %1866 = vmatprep.mubr.f32.mxu0 0.0
    %1867 = vmatmul.mubr.f32.gmra.mrb[0].mxu0 %v1800
    %v1868 = vpop.f32.mrb[0].mxu0
    %v1869 = vadd.f32 0.0, %v1868
    %v1870 = vpop.f32.mrb[0].mxu0
    %1871 = vdwg.mxu0
    %v1872 = vadd.f32 %v1694, %v1869
    %v1873 = vxor.u32 %v1872, 2147483648
    %v1874 = vmul.f32 %v1873, 1.442695
    %v1875 = vpow.pop %v1874
    %v1876 = vadd.f32 %v1875, 1.0
    %v1877 = vrcp.pop %v1876
    %v1878 = vmul.f32 1.0, %v1877
    %v1879 = vadd.f32 %v1869, %v589
    %1881 = vrot.lane.b32.xlu0 %v1879, 64
    %v1882 = vpop.permute.xlu0 %1881
    %v1884 = vmul.f32 %v1878, %v1882
    %1886 = vrot.lane.b32.xlu0 %v1884, 64
    %v1887 = vpop.permute.xlu0 %1886
    %v1889 = vadd.f32 %v1694, %v1887
    %v1890 = vtanh.pop %v1889
    %v1891 = vsub.f32 1.0, %v1878
    %1893 = vrot.lane.b32.xlu0 %v1890, 96
    %v1894 = vpop.permute.xlu0 %1893
    %v1896 = vmul.f32 %v1891, %v1894
    %v1897 = vmul.f32 %v1878, %v1692
    %v1898 = vadd.f32 %v1896, %v1897
    %v1899 = vsel %vm839, %v1796, %v1691
    %v1900 = vsel %vm833, %v1898, %v1692
    %v1901 = vld [vmem:[#allocation2 + $0x38] sm:$0xff]
    %v1902 = vld [vmem:[#allocation3] sm:$0xff]
    %1904 = vrot.lane.b32.xlu0 %v1899, 96
    %v1905 = vpop.permute.xlu0 %1904
    %v1906 = vsel %vm397, %v1905, 0
    %1908 = vmatprep.subr.mxu0 0.0
    %1909 = vmatpush1.msra.mxu0 %v376
    %1910 = vmatprep.subr.mxu0 0.0
    %1911 = vmatpush1.msra.mxu0 %v377
    %1912 = vmatprep.subr.mxu0 0.0
    %1913 = vmatpush1.msra.mxu0 %v378
    %1914 = vmatprep.subr.mxu0 0.0
    %1915 = vmatpush1.msra.mxu0 %v379
    %1916 = vmatprep.subr.mxu0 0.0
    %1917 = vmatpush1.msra.mxu0 0.0
    %1918 = vmatprep.subr.mxu0 0.0
    %1919 = vmatpush1.msra.mxu0 0.0
    %1920 = vmatprep.subr.mxu0 0.0
    %1921 = vmatpush1.msra.mxu0 0.0
    %1922 = vmatprep.subr.mxu0 0.0
    %1923 = vmatpush1.msra.mxu0 0.0
    %1924 = vmatprep.subr.mxu0 0.0
    %1925 = vmatpush1.msra.mxu0 0.0
    %1926 = vmatprep.subr.mxu0 0.0
    %1927 = vmatpush1.msra.mxu0 0.0
    %1928 = vmatprep.subr.mxu0 0.0
    %1929 = vmatpush1.msra.mxu0 0.0
    %1930 = vmatprep.subr.mxu0 0.0
    %1931 = vmatpush1.msra.mxu0 0.0
    %1932 = vmatprep.subr.mxu0 0.0
    %1933 = vmatpush1.msra.mxu0 0.0
    %1934 = vmatprep.subr.mxu0 0.0
    %1935 = vmatpush1.msra.mxu0 0.0
    %1936 = vmatprep.subr.mxu0 0.0
    %1937 = vmatpush1.msra.mxu0 0.0
    %1938 = vmatprep.subr.mxu0 0.0
    %1939 = vmatpush1.msra.mxu0 0.0
    %1940 = vmatprep.subr.mxu0 0.0
    %1941 = vmatpush1.msra.mxu0 0.0
    %1942 = vmatprep.subr.mxu0 0.0
    %1943 = vmatpush1.msra.mxu0 0.0
    %1944 = vmatprep.subr.mxu0 0.0
    %1945 = vmatpush1.msra.mxu0 0.0
    %1946 = vmatprep.subr.mxu0 0.0
    %1947 = vmatpush1.msra.mxu0 0.0
    %1948 = vmatprep.subr.mxu0 0.0
    %1949 = vmatpush1.msra.mxu0 0.0
    %1950 = vmatprep.subr.mxu0 0.0
    %1951 = vmatpush1.msra.mxu0 0.0
    %1952 = vmatprep.subr.mxu0 0.0
    %1953 = vmatpush1.msra.mxu0 0.0
    %1954 = vmatprep.subr.mxu0 0.0
    %1955 = vmatpush1.msra.mxu0 0.0
    %1956 = vmatprep.subr.mxu0 0.0
    %1957 = vmatpush1.msra.mxu0 0.0
    %1958 = vmatprep.subr.mxu0 0.0
    %1959 = vmatpush1.msra.mxu0 0.0
    %1960 = vmatprep.subr.mxu0 0.0
    %1961 = vmatpush1.msra.mxu0 0.0
    %1962 = vmatprep.subr.mxu0 0.0
    %1963 = vmatpush1.msra.mxu0 0.0
    %1964 = vmatprep.subr.mxu0 0.0
    %1965 = vmatpush1.msra.mxu0 0.0
    %1966 = vmatprep.subr.mxu0 0.0
    %1967 = vmatpush1.msra.mxu0 0.0
    %1968 = vmatprep.subr.mxu0 0.0
    %1969 = vmatpush1.msra.mxu0 0.0
    %1970 = vmatprep.subr.mxu0 0.0
    %1971 = vmatpush1.msra.mxu0 0.0
    %1972 = vmatprep.mubr.f32.mxu0 0.0
    %1973 = vmatmul.mubr.f32.gmra.mrb[0].mxu0 %v1906
    %v1974 = vpop.f32.mrb[0].mxu0
    %v1975 = vadd.f32 0.0, %v1974
    %v1976 = vpop.f32.mrb[0].mxu0
    %1977 = vdwg.mxu0
    %v1978 = vadd.f32 %v1901, %v1975
    %v1979 = vxor.u32 %v1978, 2147483648
    %v1980 = vmul.f32 %v1979, 1.442695
    %v1981 = vpow.pop %v1980
    %v1982 = vadd.f32 %v1981, 1.0
    %v1983 = vrcp.pop %v1982
    %v1984 = vmul.f32 1.0, %v1983
    %v1985 = vadd.f32 %v1975, %v484
    %1987 = vrot.lane.b32.xlu0 %v1985, 64
    %v1988 = vpop.permute.xlu0 %1987
    %v1990 = vmul.f32 %v1984, %v1988
    %1992 = vrot.lane.b32.xlu0 %v1990, 64
    %v1993 = vpop.permute.xlu0 %1992
    %v1995 = vadd.f32 %v1901, %v1993
    %v1996 = vtanh.pop %v1995
    %v1997 = vsub.f32 1.0, %v1984
    %1999 = vrot.lane.b32.xlu0 %v1996, 96
    %v2000 = vpop.permute.xlu0 %1999
    %v2002 = vmul.f32 %v1997, %v2000
    %v2003 = vmul.f32 %v1984, %v1899
    %v2004 = vadd.f32 %v2002, %v2003
    %2006 = vrot.lane.b32.xlu0 %v1900, 96
    %v2007 = vpop.permute.xlu0 %2006
    %v2008 = vsel %vm397, %v2007, 0
    %2010 = vmatprep.subr.mxu0 0.0
    %2011 = vmatpush1.msra.mxu0 %v380
    %2012 = vmatprep.subr.mxu0 0.0
    %2013 = vmatpush1.msra.mxu0 %v381
    %2014 = vmatprep.subr.mxu0 0.0
    %2015 = vmatpush1.msra.mxu0 %v382
    %2016 = vmatprep.subr.mxu0 0.0
    %2017 = vmatpush1.msra.mxu0 %v383
    %2018 = vmatprep.subr.mxu0 0.0
    %2019 = vmatpush1.msra.mxu0 0.0
    %2020 = vmatprep.subr.mxu0 0.0
    %2021 = vmatpush1.msra.mxu0 0.0
    %2022 = vmatprep.subr.mxu0 0.0
    %2023 = vmatpush1.msra.mxu0 0.0
    %2024 = vmatprep.subr.mxu0 0.0
    %2025 = vmatpush1.msra.mxu0 0.0
    %2026 = vmatprep.subr.mxu0 0.0
    %2027 = vmatpush1.msra.mxu0 0.0
    %2028 = vmatprep.subr.mxu0 0.0
    %2029 = vmatpush1.msra.mxu0 0.0
    %2030 = vmatprep.subr.mxu0 0.0
    %2031 = vmatpush1.msra.mxu0 0.0
    %2032 = vmatprep.subr.mxu0 0.0
    %2033 = vmatpush1.msra.mxu0 0.0
    %2034 = vmatprep.subr.mxu0 0.0
    %2035 = vmatpush1.msra.mxu0 0.0
    %2036 = vmatprep.subr.mxu0 0.0
    %2037 = vmatpush1.msra.mxu0 0.0
    %2038 = vmatprep.subr.mxu0 0.0
    %2039 = vmatpush1.msra.mxu0 0.0
    %2040 = vmatprep.subr.mxu0 0.0
    %2041 = vmatpush1.msra.mxu0 0.0
    %2042 = vmatprep.subr.mxu0 0.0
    %2043 = vmatpush1.msra.mxu0 0.0
    %2044 = vmatprep.subr.mxu0 0.0
    %2045 = vmatpush1.msra.mxu0 0.0
    %2046 = vmatprep.subr.mxu0 0.0
    %2047 = vmatpush1.msra.mxu0 0.0
    %2048 = vmatprep.subr.mxu0 0.0
    %2049 = vmatpush1.msra.mxu0 0.0
    %2050 = vmatprep.subr.mxu0 0.0
    %2051 = vmatpush1.msra.mxu0 0.0
    %2052 = vmatprep.subr.mxu0 0.0
    %2053 = vmatpush1.msra.mxu0 0.0
    %2054 = vmatprep.subr.mxu0 0.0
    %2055 = vmatpush1.msra.mxu0 0.0
    %2056 = vmatprep.subr.mxu0 0.0
    %2057 = vmatpush1.msra.mxu0 0.0
    %2058 = vmatprep.subr.mxu0 0.0
    %2059 = vmatpush1.msra.mxu0 0.0
    %2060 = vmatprep.subr.mxu0 0.0
    %2061 = vmatpush1.msra.mxu0 0.0
    %2062 = vmatprep.subr.mxu0 0.0
    %2063 = vmatpush1.msra.mxu0 0.0
    %2064 = vmatprep.subr.mxu0 0.0
    %2065 = vmatpush1.msra.mxu0 0.0
    %2066 = vmatprep.subr.mxu0 0.0
    %2067 = vmatpush1.msra.mxu0 0.0
    %2068 = vmatprep.subr.mxu0 0.0
    %2069 = vmatpush1.msra.mxu0 0.0
    %2070 = vmatprep.subr.mxu0 0.0
    %2071 = vmatpush1.msra.mxu0 0.0
    %2072 = vmatprep.subr.mxu0 0.0
    %2073 = vmatpush1.msra.mxu0 0.0
    %2074 = vmatprep.mubr.f32.mxu0 0.0
    %2075 = vmatmul.mubr.f32.gmra.mrb[0].mxu0 %v2008
    %v2076 = vpop.f32.mrb[0].mxu0
    %v2077 = vadd.f32 0.0, %v2076
    %v2078 = vpop.f32.mrb[0].mxu0
    %2079 = vdwg.mxu0
    %v2080 = vadd.f32 %v1902, %v2077
    %v2081 = vxor.u32 %v2080, 2147483648
    %v2082 = vmul.f32 %v2081, 1.442695
    %v2083 = vpow.pop %v2082
    %v2084 = vadd.f32 %v2083, 1.0
    %v2085 = vrcp.pop %v2084
    %v2086 = vmul.f32 1.0, %v2085
    %v2087 = vadd.f32 %v2077, %v589
    %2089 = vrot.lane.b32.xlu0 %v2087, 64
    %v2090 = vpop.permute.xlu0 %2089
    %v2092 = vmul.f32 %v2086, %v2090
    %2094 = vrot.lane.b32.xlu0 %v2092, 64
    %v2095 = vpop.permute.xlu0 %2094
    %v2097 = vadd.f32 %v1902, %v2095
    %v2098 = vtanh.pop %v2097
    %v2099 = vsub.f32 1.0, %v2086
    %2101 = vrot.lane.b32.xlu0 %v2098, 96
    %v2102 = vpop.permute.xlu0 %2101
    %v2104 = vmul.f32 %v2099, %v2102
    %v2105 = vmul.f32 %v2086, %v1900
    %v2106 = vadd.f32 %v2104, %v2105
    %v2107 = vsel %vm621, %v2004, %v1899
    %v2108 = vsel %vm615, %v2106, %v1900
    %v2109 = vld [vmem:[%s11] sm:$0xff]
    %v2110 = vld [vmem:[%s11 + $0x8] sm:$0xff]
    %v2111 = vld [vmem:[%s11 + $0x10] sm:$0xff]
    %v2112 = vld [vmem:[%s11 + $0x18] sm:$0xff]
    %v2113 = vld [vmem:[%s10] sm:$0xff]
    %v2114 = vld [vmem:[%s10 + $0x8] sm:$0xff]
    %v2115 = vld [vmem:[%s10 + $0x10] sm:$0xff]
    %v2116 = vld [vmem:[%s10 + $0x18] sm:$0xff]
    %2118 = vrot.lane.b32.xlu0 %v2107, 96
    %v2119 = vpop.permute.xlu0 %2118
    %v2120 = vsel %vm397, %v2119, 0
    %2122 = vmatprep.subr.mxu0 0.0
    %2123 = vmatpush1.msra.mxu0 %v2113
    %2124 = vmatprep.subr.mxu0 0.0
    %2125 = vmatpush1.msra.mxu0 %v2114
    %2126 = vmatprep.subr.mxu0 0.0
    %2127 = vmatpush1.msra.mxu0 %v2115
    %2128 = vmatprep.subr.mxu0 0.0
    %2129 = vmatpush1.msra.mxu0 %v2116
    %2130 = vmatprep.subr.mxu0 0.0
    %2131 = vmatpush1.msra.mxu0 0.0
    %2132 = vmatprep.subr.mxu0 0.0
    %2133 = vmatpush1.msra.mxu0 0.0
    %2134 = vmatprep.subr.mxu0 0.0
    %2135 = vmatpush1.msra.mxu0 0.0
    %2136 = vmatprep.subr.mxu0 0.0
    %2137 = vmatpush1.msra.mxu0 0.0
    %2138 = vmatprep.subr.mxu0 0.0
    %2139 = vmatpush1.msra.mxu0 0.0
    %2140 = vmatprep.subr.mxu0 0.0
    %2141 = vmatpush1.msra.mxu0 0.0
    %2142 = vmatprep.subr.mxu0 0.0
    %2143 = vmatpush1.msra.mxu0 0.0
    %2144 = vmatprep.subr.mxu0 0.0
    %2145 = vmatpush1.msra.mxu0 0.0
    %2146 = vmatprep.subr.mxu0 0.0
    %2147 = vmatpush1.msra.mxu0 0.0
    %2148 = vmatprep.subr.mxu0 0.0
    %2149 = vmatpush1.msra.mxu0 0.0
    %2150 = vmatprep.subr.mxu0 0.0
    %2151 = vmatpush1.msra.mxu0 0.0
    %2152 = vmatprep.subr.mxu0 0.0
    %2153 = vmatpush1.msra.mxu0 0.0
    %2154 = vmatprep.subr.mxu0 0.0
    %2155 = vmatpush1.msra.mxu0 0.0
    %2156 = vmatprep.subr.mxu0 0.0
    %2157 = vmatpush1.msra.mxu0 0.0
    %2158 = vmatprep.subr.mxu0 0.0
    %2159 = vmatpush1.msra.mxu0 0.0
    %2160 = vmatprep.subr.mxu0 0.0
    %2161 = vmatpush1.msra.mxu0 0.0
    %2162 = vmatprep.subr.mxu0 0.0
    %2163 = vmatpush1.msra.mxu0 0.0
    %2164 = vmatprep.subr.mxu0 0.0
    %2165 = vmatpush1.msra.mxu0 0.0
    %2166 = vmatprep.subr.mxu0 0.0
    %2167 = vmatpush1.msra.mxu0 0.0
    %2168 = vmatprep.subr.mxu0 0.0
    %2169 = vmatpush1.msra.mxu0 0.0
    %2170 = vmatprep.subr.mxu0 0.0
    %2171 = vmatpush1.msra.mxu0 0.0
    %2172 = vmatprep.subr.mxu0 0.0
    %2173 = vmatpush1.msra.mxu0 0.0
    %2174 = vmatprep.subr.mxu0 0.0
    %2175 = vmatpush1.msra.mxu0 0.0
    %2176 = vmatprep.subr.mxu0 0.0
    %2177 = vmatpush1.msra.mxu0 0.0
    %2178 = vmatprep.subr.mxu0 0.0
    %2179 = vmatpush1.msra.mxu0 0.0
    %2180 = vmatprep.subr.mxu0 0.0
    %2181 = vmatpush1.msra.mxu0 0.0
    %2182 = vmatprep.subr.mxu0 0.0
    %2183 = vmatpush1.msra.mxu0 0.0
    %2184 = vmatprep.subr.mxu0 0.0
    %2185 = vmatpush1.msra.mxu0 0.0
    %2186 = vmatprep.mubr.f32.mxu0 0.0
    %2187 = vmatmul.mubr.f32.gmra.mrb[0].mxu0 %v2120
    %v2188 = vpop.f32.mrb[0].mxu0
    %v2189 = vadd.f32 0.0, %v2188
    %v2190 = vpop.f32.mrb[0].mxu0
    %2191 = vdwg.mxu0
    %2193 = vrot.lane.b32.xlu0 %v2108, 96
    %v2194 = vpop.permute.xlu0 %2193
    %v2195 = vsel %vm397, %v2194, 0
    %2197 = vmatprep.subr.mxu0 0.0
    %2198 = vmatpush1.msra.mxu0 %v2109
    %2199 = vmatprep.subr.mxu0 0.0
    %2200 = vmatpush1.msra.mxu0 %v2110
    %2201 = vmatprep.subr.mxu0 0.0
    %2202 = vmatpush1.msra.mxu0 %v2111
    %2203 = vmatprep.subr.mxu0 0.0
    %2204 = vmatpush1.msra.mxu0 %v2112
    %2205 = vmatprep.subr.mxu0 0.0
    %2206 = vmatpush1.msra.mxu0 0.0
    %2207 = vmatprep.subr.mxu0 0.0
    %2208 = vmatpush1.msra.mxu0 0.0
    %2209 = vmatprep.subr.mxu0 0.0
    %2210 = vmatpush1.msra.mxu0 0.0
    %2211 = vmatprep.subr.mxu0 0.0
    %2212 = vmatpush1.msra.mxu0 0.0
    %2213 = vmatprep.subr.mxu0 0.0
    %2214 = vmatpush1.msra.mxu0 0.0
    %2215 = vmatprep.subr.mxu0 0.0
    %2216 = vmatpush1.msra.mxu0 0.0
    %2217 = vmatprep.subr.mxu0 0.0
    %2218 = vmatpush1.msra.mxu0 0.0
    %2219 = vmatprep.subr.mxu0 0.0
    %2220 = vmatpush1.msra.mxu0 0.0
    %2221 = vmatprep.subr.mxu0 0.0
    %2222 = vmatpush1.msra.mxu0 0.0
    %2223 = vmatprep.subr.mxu0 0.0
    %2224 = vmatpush1.msra.mxu0 0.0
    %2225 = vmatprep.subr.mxu0 0.0
    %2226 = vmatpush1.msra.mxu0 0.0
    %2227 = vmatprep.subr.mxu0 0.0
    %2228 = vmatpush1.msra.mxu0 0.0
    %2229 = vmatprep.subr.mxu0 0.0
    %2230 = vmatpush1.msra.mxu0 0.0
    %2231 = vmatprep.subr.mxu0 0.0
    %2232 = vmatpush1.msra.mxu0 0.0
    %2233 = vmatprep.subr.mxu0 0.0
    %2234 = vmatpush1.msra.mxu0 0.0
    %2235 = vmatprep.subr.mxu0 0.0
    %2236 = vmatpush1.msra.mxu0 0.0
    %2237 = vmatprep.subr.mxu0 0.0
    %2238 = vmatpush1.msra.mxu0 0.0
    %2239 = vmatprep.subr.mxu0 0.0
    %2240 = vmatpush1.msra.mxu0 0.0
    %2241 = vmatprep.subr.mxu0 0.0
    %2242 = vmatpush1.msra.mxu0 0.0
    %2243 = vmatprep.subr.mxu0 0.0
    %2244 = vmatpush1.msra.mxu0 0.0
    %2245 = vmatprep.subr.mxu0 0.0
    %2246 = vmatpush1.msra.mxu0 0.0
    %2247 = vmatprep.subr.mxu0 0.0
    %2248 = vmatpush1.msra.mxu0 0.0
    %2249 = vmatprep.subr.mxu0 0.0
    %2250 = vmatpush1.msra.mxu0 0.0
    %2251 = vmatprep.subr.mxu0 0.0
    %2252 = vmatpush1.msra.mxu0 0.0
    %2253 = vmatprep.subr.mxu0 0.0
    %2254 = vmatpush1.msra.mxu0 0.0
    %2255 = vmatprep.subr.mxu0 0.0
    %2256 = vmatpush1.msra.mxu0 0.0
    %2257 = vmatprep.subr.mxu0 0.0
    %2258 = vmatpush1.msra.mxu0 0.0
    %2259 = vmatprep.subr.mxu0 0.0
    %2260 = vmatpush1.msra.mxu0 0.0
    %2261 = vmatprep.mubr.f32.mxu0 0.0
    %2262 = vmatmul.mubr.f32.gmra.mrb[0].mxu0 %v2195
    %v2263 = vpop.f32.mrb[0].mxu0
    %v2264 = vadd.f32 %v2189, %v2263
    %v2265 = vpop.f32.mrb[0].mxu0
    %2266 = vdwg.mxu0
    %v2267 = vld [vmem:[%s12] sm:$0x1]
    %v2269 = vlaneseq
    %v2270 = vshrl.u32 %v2269, 7
    %v2271 = vsub.s32 0, %v2270
    %v2272 = vrot.slane %v2267, %v2271
    %v2274 = vadd.f32 %v2264, %v2272
    %2275 = vst [vmem:[#allocation4] sm:$0xff] %v2274
    // Predicated region
    $region54: #{tpu_custom_call.1} parent=1 // pred_check
      _
    $region55: #{tpu_custom_call.1} parent=1 // pred_check_branch
      %2277 = sbr.rel (0) target = $region57
    $region56: #{tpu_custom_call.1} parent=1 // pred_region
      %s2279 = ssub.s32 128, 128
      %2280 = vsyncadd [#allocation5], %s2279
      %s2282 = sshll.u32 [#allocation4], 4
      %s2283 = int_to_ptr.vmem [resolvable:$true] %s2282
      %2285 = dma.vmem_to_hbm [thread:$0]  %s2283, 128, %s13, [#allocation5]
    $region57: #{tpu_custom_call.1} parent=1 // pred_fallthru
      _
    // Predicated region
    $region58: #{tpu_custom_call.1} parent=1 // pred_check
      _
    $region59: #{tpu_custom_call.1} parent=1 // pred_check_branch
      %2287 = sbr.rel (0) target = $region61
    $region60: #{tpu_custom_call.1} parent=1 // pred_region
      %2288 = dma.done [#allocation5], 128
    $region61: #{tpu_custom_call.1} parent=1 // pred_fallthru
      _
    %2289 = vsyncpa [#allocation5], 1

</llo_original>
